<compile_context>
chip_gen: v7x
topology: tpu7x:2x2x1
jax: 0.10.0
libtpu: 0.0.40
codegen_flags: <defaults>
</compile_context>

<pallas_src>
import jax
import jax.numpy as jnp
from jax.experimental import pallas as pl
from jax.experimental.pallas import tpu as pltpu


def _pick_tile(n, target, align):
    """Largest divisor of n that is <= target and a multiple of `align`.
    Falls back to the full extent n (always a legal block size)."""
    if n <= target:
        return n
    for cand in range(target, align - 1, -1):
        if n % cand == 0 and cand % align == 0:
            return cand
    return n


# ----------------------------------------------------------------------------
# Pass 1: fused q/k/v projection (three 1x1 convs as one wide matmul).
# ----------------------------------------------------------------------------
def _qkv_proj_kernel(x_ref, w_ref, b_ref, q_ref, k_ref, v_ref):
    c8 = q_ref.shape[-1]
    # One MXU matmul with a lane-dense N = 2*C8 + C output, f32 accumulation.
    qkv = jnp.dot(x_ref[...], w_ref[...],
                  preferred_element_type=jnp.float32) + b_ref[...]
    q_ref[...] = qkv[:, :c8].astype(q_ref.dtype)
    k_ref[...] = qkv[:, c8:2 * c8].astype(k_ref.dtype)
    v_ref[...] = qkv[:, 2 * c8:].astype(v_ref.dtype)


# ----------------------------------------------------------------------------
# Pass 2: criss-cross attention for one batch element and one tile of T.
# ----------------------------------------------------------------------------
def _cc_attn_kernel(q_ref, kcol_ref, vcol_ref, krow_ref, vrow_ref, gamma_ref,
                    o_ref):
    V = q_ref.shape[1]

    # ---- H direction (attend along V, one column per t in the tile) --------
    # Single up-front transpose to a leading-batch (TT, V, .) layout so both
    # H einsums lower to canonical batched MXU matmuls.
    q_h = jnp.swapaxes(q_ref[0], 0, 1)        # (TT, V, C8) bf16
    k_h = jnp.swapaxes(kcol_ref[0], 0, 1)     # (TT, V, C8) bf16
    v_h = jnp.swapaxes(vcol_ref[0], 0, 1)     # (TT, V, C)  bf16

    energy_h = jnp.einsum('tvd,tud->tvu', q_h, k_h,
                          preferred_element_type=jnp.float32)     # (TT, V, V)
    row = jax.lax.broadcasted_iota(jnp.int32, (V, V), 0)
    col = jax.lax.broadcasted_iota(jnp.int32, (V, V), 1)
    energy_h = jnp.where((row == col)[None, :, :],
                         jnp.float32(-1e30), energy_h)

    m_h = jnp.max(energy_h, axis=-1, keepdims=True)               # (TT, V, 1)
    p_h = jnp.exp(energy_h - m_h)                                 # (TT, V, V)
    s_h = jnp.sum(p_h, axis=-1, keepdims=True)                    # (TT, V, 1)
    out_h = jnp.einsum('tvu,tuc->tvc', p_h.astype(jnp.bfloat16), v_h,
                       preferred_element_type=jnp.float32)        # (TT, V, C)

    # Move the H-direction partials into the (V, TT, .) output layout.
    out_h = jnp.swapaxes(out_h, 0, 1)                             # (V, TT, C)
    stat_h = jnp.swapaxes(jnp.concatenate([m_h, s_h], axis=-1), 0, 1)
    m_h = stat_h[:, :, 0:1]                                       # (V, TT, 1)
    s_h = stat_h[:, :, 1:2]                                       # (V, TT, 1)

    # ---- W direction (attend along T, one row per v) ------------------------
    q_w = q_ref[0]                                                # (V, TT, C8)
    k_w = krow_ref[0]                                             # (V, T,  C8)
    v_w = vrow_ref[0]                                             # (V, T,  C)
    energy_w = jnp.einsum('vtd,vsd->vts', q_w, k_w,
                          preferred_element_type=jnp.float32)     # (V, TT, T)
    m_w = jnp.max(energy_w, axis=-1, keepdims=True)               # (V, TT, 1)
    p_w = jnp.exp(energy_w - m_w)                                 # (V, TT, T)
    s_w = jnp.sum(p_w, axis=-1, keepdims=True)                    # (V, TT, 1)
    out_w = jnp.einsum('vts,vsc->vtc', p_w.astype(jnp.bfloat16), v_w,
                       preferred_element_type=jnp.float32)        # (V, TT, C)

    # ---- Merge the two partial softmaxes (joint softmax over V + T) --------
    m = jnp.maximum(m_h, m_w)                                     # (V, TT, 1)
    a_h = jnp.exp(m_h - m)
    a_w = jnp.exp(m_w - m)
    denom = s_h * a_h + s_w * a_w                                 # (V, TT, 1)
    # Deferred normalization (EUP reciprocal) folded with gamma.
    scale = gamma_ref[0] * pl.reciprocal(denom, approx=True)      # (V, TT, 1)
    o_ref[0] = ((scale * a_h) * out_h
                + (scale * a_w) * out_w).astype(o_ref.dtype)


# ----------------------------------------------------------------------------
# Wrapper
# ----------------------------------------------------------------------------
def criss_cross_attention(x_nchw, wq, bq, wk, bk, wv, bv, gamma):
    """x_nchw: (B, C, V, T) float32. Returns (B, C, V, T) float32."""
    B, C, V, T = x_nchw.shape
    C8 = wq.shape[1]
    Ctot = 2 * C8 + C
    N = B * V * T

    # TODO(synk): these NCHW<->channels-last transposes are pure HBM traffic;
    # keep the surrounding model channels-last (or fuse via allow_input_fusion)
    # to eliminate them.
    x2 = (jnp.transpose(x_nchw, (0, 2, 3, 1))
          .reshape(N, C).astype(jnp.bfloat16))
    w_all = jnp.concatenate([wq, wk, wv], axis=1).astype(jnp.bfloat16)
    b_all = jnp.concatenate([bq, bk, bv], axis=0).reshape(1, Ctot)
    b_all = b_all.astype(jnp.float32)

    # ---- Pass 1: fused projections, row-tiled over B*V*T pixels ------------
    RT = _pick_tile(N, 512, 16)
    q2, k2, v2 = pl.pallas_call(
        _qkv_proj_kernel,
        out_shape=(jax.ShapeDtypeStruct((N, C8), jnp.bfloat16),
                   jax.ShapeDtypeStruct((N, C8), jnp.bfloat16),
                   jax.ShapeDtypeStruct((N, C), jnp.bfloat16)),
        grid=(N // RT,),
        in_specs=[pl.BlockSpec((RT, C), lambda i: (i, 0)),
                  pl.BlockSpec((C, Ctot), lambda i: (0, 0)),
                  pl.BlockSpec((1, Ctot), lambda i: (0, 0))],
        out_specs=(pl.BlockSpec((RT, C8), lambda i: (i, 0)),
                   pl.BlockSpec((RT, C8), lambda i: (i, 0)),
                   pl.BlockSpec((RT, C), lambda i: (i, 0))),
        compiler_params=pltpu.CompilerParams(
            dimension_semantics=("parallel",),
            vmem_limit_bytes=64 * 1024 * 1024),
    )(x2, w_all, b_all)

    q = q2.reshape(B, V, T, C8)
    k = k2.reshape(B, V, T, C8)
    vv = v2.reshape(B, V, T, C)

    # ---- Pass 2: attention, grid over (batch, T tiles) ----------------------
    TT = _pick_tile(T, 128, 8)
    out = pl.pallas_call(
        _cc_attn_kernel,
        out_shape=jax.ShapeDtypeStruct((B, V, T, C), jnp.float32),
        grid=(B, T // TT),
        in_specs=[
            pl.BlockSpec((1, V, TT, C8), lambda b, tj: (b, 0, tj, 0)),  # q tile
            pl.BlockSpec((1, V, TT, C8), lambda b, tj: (b, 0, tj, 0)),  # k cols (H)
            pl.BlockSpec((1, V, TT, C), lambda b, tj: (b, 0, tj, 0)),   # v cols (H)
            pl.BlockSpec((1, V, T, C8), lambda b, tj: (b, 0, 0, 0)),    # k rows (W)
            pl.BlockSpec((1, V, T, C), lambda b, tj: (b, 0, 0, 0)),     # v rows (W)
            pl.BlockSpec(memory_space=pltpu.MemorySpace.SMEM),          # gamma
        ],
        out_specs=pl.BlockSpec((1, V, TT, C), lambda b, tj: (b, 0, tj, 0)),
        compiler_params=pltpu.CompilerParams(
            dimension_semantics=("parallel", "parallel"),
            vmem_limit_bytes=64 * 1024 * 1024),
    )(q, k, vv, k, vv, gamma)

    return jnp.transpose(out, (0, 3, 1, 2))  # back to NCHW


def _reference(x, wq, bq, wk, bk, wv, bv, gamma):
    """Plain-JAX f32 replica of the PyTorch forward (numeric cross-check)."""
    B, C, V, T = x.shape
    q = jnp.einsum('bcvt,cd->bdvt', x, wq) + bq[None, :, None, None]
    k = jnp.einsum('bcvt,cd->bdvt', x, wk) + bk[None, :, None, None]
    v = jnp.einsum('bcvt,cd->bdvt', x, wv) + bv[None, :, None, None]
    energy_h = jnp.einsum('bdvt,bdut->bvtu', q, k)
    diag = jnp.eye(V, dtype=bool)[None, :, None, :]
    energy_h = jnp.where(diag, -jnp.inf, energy_h)
    energy_w = jnp.einsum('bdvt,bdvs->bvts', q, k)
    att = jax.nn.softmax(jnp.concatenate([energy_h, energy_w], -1), axis=-1)
    out_h = jnp.einsum('bvtu,bcut->bcvt', att[..., :V], v)
    out_w = jnp.einsum('bvts,bcvs->bcvt', att[..., V:], v)
    return gamma[0] * (out_h + out_w)


if __name__ == "__main__":
    key = jax.random.PRNGKey(0)
    B, C, V, T = 2, 16, 8, 8
    C8 = C // 8

    kx, kq, kbq, kk, kbk, kv, kbv = jax.random.split(key, 7)
    x = jax.random.normal(kx, (B, C, V, T), dtype=jnp.float32)

    # PyTorch conv weights (out, in, 1, 1) are stored here directly as
    # (in, out) matmul matrices.
    wq = 0.1 * jax.random.normal(kq, (C, C8), dtype=jnp.float32)
    bq = 0.1 * jax.random.normal(kbq, (C8,), dtype=jnp.float32)
    wk = 0.1 * jax.random.normal(kk, (C, C8), dtype=jnp.float32)
    bk = 0.1 * jax.random.normal(kbk, (C8,), dtype=jnp.float32)
    wv = 0.1 * jax.random.normal(kv, (C, C), dtype=jnp.float32)
    bv = 0.1 * jax.random.normal(kbv, (C,), dtype=jnp.float32)
    # Module inits gamma to 0 (which would zero the output); use a nonzero
    # value so the kernel math is actually exercised.
    gamma = jnp.array([0.5], dtype=jnp.float32)

    cc = jax.jit(criss_cross_attention)
    out = jax.block_until_ready(cc(x, wq, bq, wk, bk, wv, bv, gamma))

    ref = _reference(x, wq, bq, wk, bk, wv, bv, gamma)
    assert out.shape == (B, C, V, T)
    err = float(jnp.max(jnp.abs(out - ref)))
    scl = float(jnp.max(jnp.abs(ref))) + 1e-6
    # bf16 MXU matmuls + approx reciprocal: allow a few-percent deviation vs
    # the pure-f32 reference; structural bugs would be orders of magnitude off.
    assert err <= 5e-2 * scl + 1e-3, f"mismatch vs reference: {err} (scale {scl})"

    print("KERNEL_OK")
</pallas_src>

<mosaic_0001>
module attributes {stable_mosaic.version = 11 : i64} {
  func.func @_qkv_proj_kernel(%arg0: i32, %arg1: memref<128x16xbf16, #tpu.memory_space<vmem>>, %arg2: memref<16x20xbf16, #tpu.memory_space<vmem>>, %arg3: memref<1x20xf32, #tpu.memory_space<vmem>>, %arg4: memref<128x2xbf16, #tpu.memory_space<vmem>>, %arg5: memref<128x2xbf16, #tpu.memory_space<vmem>>, %arg6: memref<128x16xbf16, #tpu.memory_space<vmem>>) attributes {dimension_semantics = [#tpu.dimension_semantics<parallel>], iteration_bounds = array<i64: 1>, scalar_prefetch = 0 : i64, scratch_operands = 0 : i64, tpu.core_type = #tpu.core_type<tc>, window_params = [{transform_indices = @transform_0, window_bounds = array<i64: 128, 16>}, {pipeline_mode = #tpu.pipeline_mode<synchronous>, transform_indices = @transform_1, window_bounds = array<i64: 16, 20>}, {pipeline_mode = #tpu.pipeline_mode<synchronous>, transform_indices = @transform_2, window_bounds = array<i64: 1, 20>}, {transform_indices = @transform_3, window_bounds = array<i64: 128, 2>}, {transform_indices = @transform_4, window_bounds = array<i64: 128, 2>}, {transform_indices = @transform_5, window_bounds = array<i64: 128, 16>}]} {
    %c0 = arith.constant 0 : index
    %c0_0 = arith.constant 0 : index
    %0 = vector.load %arg1[%c0, %c0_0] : memref<128x16xbf16, #tpu.memory_space<vmem>>, vector<128x16xbf16>
    %c0_1 = arith.constant 0 : index
    %c0_2 = arith.constant 0 : index
    %1 = vector.load %arg2[%c0_1, %c0_2] : memref<16x20xbf16, #tpu.memory_space<vmem>>, vector<16x20xbf16>
    %cst = arith.constant dense<0.000000e+00> : vector<128x20xf32>
    %2 = tpu.matmul %0, %1, %cst {dimension_numbers = #tpu.dot_dimension_numbers<[1], [0], [0], [1], [0, 0, 1, 1], [], []>} : vector<128x16xbf16>, vector<16x20xbf16>, vector<128x20xf32> -> vector<128x20xf32>
    %c0_3 = arith.constant 0 : index
    %c0_4 = arith.constant 0 : index
    %3 = vector.load %arg3[%c0_3, %c0_4] : memref<1x20xf32, #tpu.memory_space<vmem>>, vector<1x20xf32>
    %4 = vector.broadcast %3 : vector<1x20xf32> to vector<128x20xf32>
    %5 = arith.addf %2, %4 : vector<128x20xf32>
    %6 = vector.extract_strided_slice %5 {offsets = [0, 0], sizes = [128, 2], strides = [1, 1]} : vector<128x20xf32> to vector<128x2xf32>
    %7 = arith.truncf %6 : vector<128x2xf32> to vector<128x2xbf16>
    %c0_5 = arith.constant 0 : index
    %c0_6 = arith.constant 0 : index
    %8 = vector.load %arg4[%c0_5, %c0_6] : memref<128x2xbf16, #tpu.memory_space<vmem>>, vector<128x2xbf16>
    tpu.vector_store %arg4[%c0_5, %c0_6], %7 {strides = array<i32>} : memref<128x2xbf16, #tpu.memory_space<vmem>>, vector<128x2xbf16>,
    %9 = vector.extract_strided_slice %5 {offsets = [0, 2], sizes = [128, 2], strides = [1, 1]} : vector<128x20xf32> to vector<128x2xf32>
    %10 = arith.truncf %9 : vector<128x2xf32> to vector<128x2xbf16>
    %c0_7 = arith.constant 0 : index
    %c0_8 = arith.constant 0 : index
    %11 = vector.load %arg5[%c0_7, %c0_8] : memref<128x2xbf16, #tpu.memory_space<vmem>>, vector<128x2xbf16>
    tpu.vector_store %arg5[%c0_7, %c0_8], %10 {strides = array<i32>} : memref<128x2xbf16, #tpu.memory_space<vmem>>, vector<128x2xbf16>,
    %12 = vector.extract_strided_slice %5 {offsets = [0, 4], sizes = [128, 16], strides = [1, 1]} : vector<128x20xf32> to vector<128x16xf32>
    %13 = arith.truncf %12 : vector<128x16xf32> to vector<128x16xbf16>
    %c0_9 = arith.constant 0 : index
    %c0_10 = arith.constant 0 : index
    %14 = vector.load %arg6[%c0_9, %c0_10] : memref<128x16xbf16, #tpu.memory_space<vmem>>, vector<128x16xbf16>
    tpu.vector_store %arg6[%c0_9, %c0_10], %13 {strides = array<i32>} : memref<128x16xbf16, #tpu.memory_space<vmem>>, vector<128x16xbf16>,
    return
  }
  func.func @transform_0(%arg0: i32) -> (i32, i32) {
    %c0_i32 = arith.constant 0 : i32
    %c0_i32_0 = arith.constant 0 : i32
    return %arg0, %c0_i32 : i32, i32
  }
  func.func @transform_1(%arg0: i32) -> (i32, i32) {
    %c0_i32 = arith.constant 0 : i32
    %c0_i32_0 = arith.constant 0 : i32
    %c0_i32_1 = arith.constant 0 : i32
    return %c0_i32, %c0_i32_0 : i32, i32
  }
  func.func @transform_2(%arg0: i32) -> (i32, i32) {
    %c0_i32 = arith.constant 0 : i32
    %c0_i32_0 = arith.constant 0 : i32
    %c0_i32_1 = arith.constant 0 : i32
    return %c0_i32, %c0_i32_0 : i32, i32
  }
  func.func @transform_3(%arg0: i32) -> (i32, i32) {
    %c0_i32 = arith.constant 0 : i32
    %c0_i32_0 = arith.constant 0 : i32
    return %arg0, %c0_i32 : i32, i32
  }
  func.func @transform_4(%arg0: i32) -> (i32, i32) {
    %c0_i32 = arith.constant 0 : i32
    %c0_i32_0 = arith.constant 0 : i32
    return %arg0, %c0_i32 : i32, i32
  }
  func.func @transform_5(%arg0: i32) -> (i32, i32) {
    %c0_i32 = arith.constant 0 : i32
    %c0_i32_0 = arith.constant 0 : i32
    return %arg0, %c0_i32 : i32, i32
  }
}

module attributes {stable_mosaic.version = 11 : i64} {
  func.func @_cc_attn_kernel(%arg0: i32, %arg1: i32, %arg2: memref<1x8x8x2xbf16, #tpu.memory_space<vmem>>, %arg3: memref<1x8x8x2xbf16, #tpu.memory_space<vmem>>, %arg4: memref<1x8x8x16xbf16, #tpu.memory_space<vmem>>, %arg5: memref<1x8x8x2xbf16, #tpu.memory_space<vmem>>, %arg6: memref<1x8x8x16xbf16, #tpu.memory_space<vmem>>, %arg7: memref<1xf32, #tpu.memory_space<smem>>, %arg8: memref<1x8x8x16xf32, #tpu.memory_space<vmem>>) attributes {dimension_semantics = [#tpu.dimension_semantics<parallel>, #tpu.dimension_semantics<parallel>], iteration_bounds = array<i64: 2, 1>, scalar_prefetch = 0 : i64, scratch_operands = 0 : i64, tpu.core_type = #tpu.core_type<tc>, window_params = [{transform_indices = @transform_0, window_bounds = array<i64: 1, 8, 8, 2>}, {transform_indices = @transform_1, window_bounds = array<i64: 1, 8, 8, 2>}, {transform_indices = @transform_2, window_bounds = array<i64: 1, 8, 8, 16>}, {transform_indices = @transform_3, window_bounds = array<i64: 1, 8, 8, 2>}, {transform_indices = @transform_4, window_bounds = array<i64: 1, 8, 8, 16>}, {transform_indices = @transform_5, window_bounds = array<i64: 1>}, {transform_indices = @transform_6, window_bounds = array<i64: 1, 8, 8, 16>}]} {
    %c0 = arith.constant 0 : index
    %c0_0 = arith.constant 0 : index
    %c0_1 = arith.constant 0 : index
    %c0_2 = arith.constant 0 : index
    %0 = vector.load %arg2[%c0, %c0_0, %c0_1, %c0_2] : memref<1x8x8x2xbf16, #tpu.memory_space<vmem>>, vector<1x8x8x2xbf16>
    %1 = vector.shape_cast %0 : vector<1x8x8x2xbf16> to vector<8x8x2xbf16>
    %2 = tpu.transpose %1, [1, 0, 2] : vector<8x8x2xbf16> -> vector<8x8x2xbf16>
    %c0_3 = arith.constant 0 : index
    %c0_4 = arith.constant 0 : index
    %c0_5 = arith.constant 0 : index
    %c0_6 = arith.constant 0 : index
    %3 = vector.load %arg3[%c0_3, %c0_4, %c0_5, %c0_6] : memref<1x8x8x2xbf16, #tpu.memory_space<vmem>>, vector<1x8x8x2xbf16>
    %4 = vector.shape_cast %3 : vector<1x8x8x2xbf16> to vector<8x8x2xbf16>
    %5 = tpu.transpose %4, [1, 0, 2] : vector<8x8x2xbf16> -> vector<8x8x2xbf16>
    %c0_7 = arith.constant 0 : index
    %c0_8 = arith.constant 0 : index
    %c0_9 = arith.constant 0 : index
    %c0_10 = arith.constant 0 : index
    %6 = vector.load %arg4[%c0_7, %c0_8, %c0_9, %c0_10] : memref<1x8x8x16xbf16, #tpu.memory_space<vmem>>, vector<1x8x8x16xbf16>
    %7 = vector.shape_cast %6 : vector<1x8x8x16xbf16> to vector<8x8x16xbf16>
    %8 = tpu.transpose %7, [1, 0, 2] : vector<8x8x16xbf16> -> vector<8x8x16xbf16>
    "tpu.trace_start"() <{level = 10 : i32, message = "tvd,tud->tvu"}> : () -> ()
    %cst = arith.constant dense<0.000000e+00> : vector<8x8x8xf32>
    %9 = tpu.matmul %2, %5, %cst {dimension_numbers = #tpu.dot_dimension_numbers<[2], [2], [1], [1], [0, 0, 0, 1, 1, 1], [0], [0]>} : vector<8x8x2xbf16>, vector<8x8x2xbf16>, vector<8x8x8xf32> -> vector<8x8x8xf32>
    "tpu.trace_stop"() : () -> ()
    %10 = tpu.iota {dimensions = array<i32: 0>} : vector<8x8xi32>
    %11 = tpu.iota {dimensions = array<i32: 1>} : vector<8x8xi32>
    %12 = arith.cmpi eq, %10, %11 : vector<8x8xi32>
    %13 = vector.shape_cast %12 : vector<8x8xi1> to vector<1x8x8xi1>
    %cst_11 = arith.constant -1.000000e+30 : f32
    %14 = vector.shape_cast %13 : vector<1x8x8xi1> to vector<1x8x8xi1>
    %15 = vector.broadcast %14 : vector<1x8x8xi1> to vector<8x8x8xi1>
    %16 = vector.broadcast %cst_11 : f32 to vector<8x8x8xf32>
    %17 = arith.select %15, %16, %9 : vector<8x8x8xi1>, vector<8x8x8xf32>
    %cst_12 = arith.constant dense<0xFF800000> : vector<8x8xf32>
    %18 = vector.multi_reduction <maximumf>, %17, %cst_12 [2] : vector<8x8x8xf32> to vector<8x8xf32>
    %19 = vector.shape_cast %18 : vector<8x8xf32> to vector<8x8x1xf32>
    %20 = vector.broadcast %19 : vector<8x8x1xf32> to vector<8x8x8xf32>
    %21 = arith.subf %17, %20 : vector<8x8x8xf32>
    %22 = math.exp %21 : vector<8x8x8xf32>
    %cst_13 = arith.constant dense<0.000000e+00> : vector<8x8xf32>
    %23 = vector.multi_reduction <add>, %22, %cst_13 [2] : vector<8x8x8xf32> to vector<8x8xf32>
    %24 = vector.shape_cast %23 : vector<8x8xf32> to vector<8x8x1xf32>
    %25 = arith.truncf %22 : vector<8x8x8xf32> to vector<8x8x8xbf16>
    "tpu.trace_start"() <{level = 10 : i32, message = "tvu,tuc->tvc"}> : () -> ()
    %cst_14 = arith.constant dense<0.000000e+00> : vector<8x8x16xf32>
    %26 = tpu.matmul %25, %8, %cst_14 {dimension_numbers = #tpu.dot_dimension_numbers<[2], [1], [1], [2], [0, 0, 0, 1, 1, 2], [0], [0]>} : vector<8x8x8xbf16>, vector<8x8x16xbf16>, vector<8x8x16xf32> -> vector<8x8x16xf32>
    "tpu.trace_stop"() : () -> ()
    %27 = tpu.transpose %26, [1, 0, 2] : vector<8x8x16xf32> -> vector<8x8x16xf32>
    %28 = tpu.concatenate %19, %24 in 2 : vector<8x8x1xf32>, vector<8x8x1xf32> -> vector<8x8x2xf32>
    %29 = tpu.transpose %28, [1, 0, 2] : vector<8x8x2xf32> -> vector<8x8x2xf32>
    %30 = vector.extract_strided_slice %29 {offsets = [0, 0, 0], sizes = [8, 8, 1], strides = [1, 1, 1]} : vector<8x8x2xf32> to vector<8x8x1xf32>
    %31 = vector.extract_strided_slice %29 {offsets = [0, 0, 1], sizes = [8, 8, 1], strides = [1, 1, 1]} : vector<8x8x2xf32> to vector<8x8x1xf32>
    %c0_15 = arith.constant 0 : index
    %c0_16 = arith.constant 0 : index
    %c0_17 = arith.constant 0 : index
    %c0_18 = arith.constant 0 : index
    %32 = vector.load %arg2[%c0_15, %c0_16, %c0_17, %c0_18] : memref<1x8x8x2xbf16, #tpu.memory_space<vmem>>, vector<1x8x8x2xbf16>
    %33 = vector.shape_cast %32 : vector<1x8x8x2xbf16> to vector<8x8x2xbf16>
    %c0_19 = arith.constant 0 : index
    %c0_20 = arith.constant 0 : index
    %c0_21 = arith.constant 0 : index
    %c0_22 = arith.constant 0 : index
    %34 = vector.load %arg5[%c0_19, %c0_20, %c0_21, %c0_22] : memref<1x8x8x2xbf16, #tpu.memory_space<vmem>>, vector<1x8x8x2xbf16>
    %35 = vector.shape_cast %34 : vector<1x8x8x2xbf16> to vector<8x8x2xbf16>
    %c0_23 = arith.constant 0 : index
    %c0_24 = arith.constant 0 : index
    %c0_25 = arith.constant 0 : index
    %c0_26 = arith.constant 0 : index
    %36 = vector.load %arg6[%c0_23, %c0_24, %c0_25, %c0_26] : memref<1x8x8x16xbf16, #tpu.memory_space<vmem>>, vector<1x8x8x16xbf16>
    %37 = vector.shape_cast %36 : vector<1x8x8x16xbf16> to vector<8x8x16xbf16>
    "tpu.trace_start"() <{level = 10 : i32, message = "vtd,vsd->vts"}> : () -> ()
    %cst_27 = arith.constant dense<0.000000e+00> : vector<8x8x8xf32>
    %38 = tpu.matmul %33, %35, %cst_27 {dimension_numbers = #tpu.dot_dimension_numbers<[2], [2], [1], [1], [0, 0, 0, 1, 1, 1], [0], [0]>} : vector<8x8x2xbf16>, vector<8x8x2xbf16>, vector<8x8x8xf32> -> vector<8x8x8xf32>
    "tpu.trace_stop"() : () -> ()
    %cst_28 = arith.constant dense<0xFF800000> : vector<8x8xf32>
    %39 = vector.multi_reduction <maximumf>, %38, %cst_28 [2] : vector<8x8x8xf32> to vector<8x8xf32>
    %40 = vector.shape_cast %39 : vector<8x8xf32> to vector<8x8x1xf32>
    %41 = vector.broadcast %40 : vector<8x8x1xf32> to vector<8x8x8xf32>
    %42 = arith.subf %38, %41 : vector<8x8x8xf32>
    %43 = math.exp %42 : vector<8x8x8xf32>
    %cst_29 = arith.constant dense<0.000000e+00> : vector<8x8xf32>
    %44 = vector.multi_reduction <add>, %43, %cst_29 [2] : vector<8x8x8xf32> to vector<8x8xf32>
    %45 = vector.shape_cast %44 : vector<8x8xf32> to vector<8x8x1xf32>
    %46 = arith.truncf %43 : vector<8x8x8xf32> to vector<8x8x8xbf16>
    "tpu.trace_start"() <{level = 10 : i32, message = "vts,vsc->vtc"}> : () -> ()
    %cst_30 = arith.constant dense<0.000000e+00> : vector<8x8x16xf32>
    %47 = tpu.matmul %46, %37, %cst_30 {dimension_numbers = #tpu.dot_dimension_numbers<[2], [1], [1], [2], [0, 0, 0, 1, 1, 2], [0], [0]>} : vector<8x8x8xbf16>, vector<8x8x16xbf16>, vector<8x8x16xf32> -> vector<8x8x16xf32>
    "tpu.trace_stop"() : () -> ()
    %48 = arith.maximumf %30, %40 : vector<8x8x1xf32>
    %49 = arith.subf %30, %48 : vector<8x8x1xf32>
    %50 = math.exp %49 : vector<8x8x1xf32>
    %51 = arith.subf %40, %48 : vector<8x8x1xf32>
    %52 = math.exp %51 : vector<8x8x1xf32>
    %53 = arith.mulf %31, %50 : vector<8x8x1xf32>
    %54 = arith.mulf %45, %52 : vector<8x8x1xf32>
    %55 = arith.addf %53, %54 : vector<8x8x1xf32>
    %c0_31 = arith.constant 0 : index
    %56 = memref.load %arg7[%c0_31] : memref<1xf32, #tpu.memory_space<smem>>
    %57 = tpu.reciprocal %55 {approx = true} : vector<8x8x1xf32> -> vector<8x8x1xf32>
    %58 = vector.broadcast %56 : f32 to vector<8x8x1xf32>
    %59 = arith.mulf %58, %57 : vector<8x8x1xf32>
    %60 = arith.mulf %59, %50 : vector<8x8x1xf32>
    %61 = vector.broadcast %60 : vector<8x8x1xf32> to vector<8x8x16xf32>
    %62 = arith.mulf %61, %27 : vector<8x8x16xf32>
    %63 = arith.mulf %59, %52 : vector<8x8x1xf32>
    %64 = vector.broadcast %63 : vector<8x8x1xf32> to vector<8x8x16xf32>
    %65 = arith.mulf %64, %47 : vector<8x8x16xf32>
    %66 = arith.addf %62, %65 : vector<8x8x16xf32>
    %c0_32 = arith.constant 0 : index
    %c0_33 = arith.constant 0 : index
    %c0_34 = arith.constant 0 : index
    %c0_35 = arith.constant 0 : index
    %67 = vector.load %arg8[%c0_32, %c0_33, %c0_34, %c0_35] : memref<1x8x8x16xf32, #tpu.memory_space<vmem>>, vector<1x8x8x16xf32>
    %68 = vector.shape_cast %67 : vector<1x8x8x16xf32> to vector<8x8x16xf32>
    %69 = vector.shape_cast %66 : vector<8x8x16xf32> to vector<1x8x8x16xf32>
    tpu.vector_store %arg8[%c0_32, %c0_33, %c0_34, %c0_35], %69 {strides = array<i32>} : memref<1x8x8x16xf32, #tpu.memory_space<vmem>>, vector<1x8x8x16xf32>,
    return
  }
  func.func @transform_0(%arg0: i32, %arg1: i32) -> (i32, i32, i32, i32) {
    %c0_i32 = arith.constant 0 : i32
    %c0_i32_0 = arith.constant 0 : i32
    %c0_i32_1 = arith.constant 0 : i32
    return %arg0, %c0_i32, %arg1, %c0_i32_0 : i32, i32, i32, i32
  }
  func.func @transform_1(%arg0: i32, %arg1: i32) -> (i32, i32, i32, i32) {
    %c0_i32 = arith.constant 0 : i32
    %c0_i32_0 = arith.constant 0 : i32
    %c0_i32_1 = arith.constant 0 : i32
    return %arg0, %c0_i32, %arg1, %c0_i32_0 : i32, i32, i32, i32
  }
  func.func @transform_2(%arg0: i32, %arg1: i32) -> (i32, i32, i32, i32) {
    %c0_i32 = arith.constant 0 : i32
    %c0_i32_0 = arith.constant 0 : i32
    %c0_i32_1 = arith.constant 0 : i32
    return %arg0, %c0_i32, %arg1, %c0_i32_0 : i32, i32, i32, i32
  }
  func.func @transform_3(%arg0: i32, %arg1: i32) -> (i32, i32, i32, i32) {
    %c0_i32 = arith.constant 0 : i32
    %c0_i32_0 = arith.constant 0 : i32
    %c0_i32_1 = arith.constant 0 : i32
    %c0_i32_2 = arith.constant 0 : i32
    return %arg0, %c0_i32, %c0_i32_0, %c0_i32_1 : i32, i32, i32, i32
  }
  func.func @transform_4(%arg0: i32, %arg1: i32) -> (i32, i32, i32, i32) {
    %c0_i32 = arith.constant 0 : i32
    %c0_i32_0 = arith.constant 0 : i32
    %c0_i32_1 = arith.constant 0 : i32
    %c0_i32_2 = arith.constant 0 : i32
    return %arg0, %c0_i32, %c0_i32_0, %c0_i32_1 : i32, i32, i32, i32
  }
  func.func @transform_5(%arg0: i32, %arg1: i32) -> i32 {
    %c0_i32 = arith.constant 0 : i32
    %c0_i32_0 = arith.constant 0 : i32
    return %c0_i32 : i32
  }
  func.func @transform_6(%arg0: i32, %arg1: i32) -> (i32, i32, i32, i32) {
    %c0_i32 = arith.constant 0 : i32
    %c0_i32_0 = arith.constant 0 : i32
    %c0_i32_1 = arith.constant 0 : i32
    return %arg0, %c0_i32, %arg1, %c0_i32_0 : i32, i32, i32, i32
  }
}

</mosaic_0001>

<llo_original>
// kernel: criss_cross_attention.2
$region0: #{criss_cross_attention.2}
  #allocation0 [shape = 'u32[]', space=smem, size = 0x4, offset = 0x4, fixed_abs, tag = 'smem constant byte address 0x4 - core index']
  #allocation1 [shape = 'u32[144,128]{1,0:T(1,128)}', space=vmem, size = 0x12000, scoped, tag = 'internal scratch']
  %s0 = inlined_call_operand.hbm [shape: bf16[128,16], index: 0, kind: input, shape index: {}]
  %s1 = inlined_call_operand.hbm [shape: bf16[16,20], index: 1, kind: input, shape index: {}]
  %s2 = inlined_call_operand.hbm [shape: f32[1,20], index: 2, kind: input, shape index: {}]
  %s3 = inlined_call_operand.hbm [shape: bf16[128,2], index: 3, kind: output, shape index: {0}]
  %s4 = inlined_call_operand.hbm [shape: bf16[128,2], index: 4, kind: output, shape index: {1}]
  %s5 = inlined_call_operand.hbm [shape: bf16[128,16], index: 5, kind: output, shape index: {2}]
  %6 = xla_tuple %s3, %s4, %s5
  %s7 = sld [smem:[#allocation0]]
  $region50: #{criss_cross_attention.2} parent=0
    _
  %s9 = ssub.s32 1, %s7
  %s10 = scalar_select 0, %s9, %s7
  $region1: #{criss_cross_attention.2} parent=0
    #allocation2 [shape = 'u8[32768]{0}', space=vmem, size = 0x8000, scoped, tag = 'input window, operand 0, single buffered']
    #allocation3 [shape = 's32[1]{0}', space=sflag, size = 0x4, scoped, tag = 'scoped memory for criss_cross_attention.2']
    #allocation4 [shape = 's32[1]{0}', space=sflag, size = 0x4, scoped, tag = 'scoped memory for criss_cross_attention.2']
    #allocation5 [shape = 'u8[4096]{0}', space=vmem, size = 0x1000, scoped, tag = 'input window, operand 1, single buffered']
    #allocation6 [shape = 's32[1]{0}', space=sflag, size = 0x4, scoped, tag = 'scoped memory for criss_cross_attention.2']
    #allocation7 [shape = 'u8[512]{0}', space=vmem, size = 0x400, scoped, tag = 'input window, operand 2, single buffered']
    #allocation8 [shape = 'u8[32768]{0}', space=vmem, size = 0x8000, scoped, tag = 'output window, operand 0, single buffered']
    #allocation9 [shape = 'u8[32768]{0}', space=vmem, size = 0x8000, scoped, tag = 'output window, operand 1, single buffered']
    #allocation10 [shape = 's32[1]{0}', space=sflag, size = 0x4, scoped, tag = 'scoped memory for criss_cross_attention.2']
    #allocation11 [shape = 'u8[32768]{0}', space=vmem, size = 0x8000, scoped, tag = 'output window, operand 2, single buffered']
    %11 = vsyncpa [#allocation3], 0
    %12 = vsyncpa [#allocation6], 0
    %13 = vsyncpa [#allocation4], 0
    %14 = vsyncpa [#allocation10], 0
    // Predicated region
    $region2: #{criss_cross_attention.2} parent=1 // pred_check
      _
    $region3: #{criss_cross_attention.2} parent=1 // pred_check_branch
      %16 = sbr.rel (0) target = $region5
    $region4: #{criss_cross_attention.2} parent=1 // pred_region
      %s18 = ssub.s32 1024, 1024
      %19 = vsyncadd [#allocation3], %s18
      %s20 = sshll.u32 [#allocation2], 4
      %s21 = int_to_ptr.vmem [resolvable:$true] %s20
      %26 = dma.hbm_to_vmem [thread:$0]  %s0, 1024, %s21, [#allocation3], 64, 64, 4
    $region5: #{criss_cross_attention.2} parent=1 // pred_fallthru
      _
    // Predicated region
    $region6: #{criss_cross_attention.2} parent=1 // pred_check
      _
    $region7: #{criss_cross_attention.2} parent=1 // pred_check_branch
      %28 = sbr.rel (0) target = $region9
    $region8: #{criss_cross_attention.2} parent=1 // pred_region
      %s30 = ssub.s32 128, 128
      %31 = vsyncadd [#allocation6], %s30
      %s32 = sshll.u32 [#allocation5], 4
      %s33 = int_to_ptr.vmem [resolvable:$true] %s32
      %38 = dma.hbm_to_vmem [thread:$0]  %s1, 128, %s33, [#allocation6], 64, 64, 4
    $region9: #{criss_cross_attention.2} parent=1 // pred_fallthru
      _
    // Predicated region
    $region10: #{criss_cross_attention.2} parent=1 // pred_check
      _
    $region11: #{criss_cross_attention.2} parent=1 // pred_check_branch
      %40 = sbr.rel (0) target = $region13
    $region12: #{criss_cross_attention.2} parent=1 // pred_region
      %s42 = ssub.s32 16, 16
      %43 = vsyncadd [#allocation6], %s42
      %s45 = sshll.u32 [#allocation7], 4
      %s46 = int_to_ptr.vmem [resolvable:$true] %s45
      %48 = dma.hbm_to_vmem [thread:$0]  %s2, 16, %s46, [#allocation6]
    $region13: #{criss_cross_attention.2} parent=1 // pred_fallthru
      _
    // Predicated region
    $region14: #{criss_cross_attention.2} parent=1 // pred_check
      _
    $region15: #{criss_cross_attention.2} parent=1 // pred_check_branch
      %50 = sbr.rel (0) target = $region17
    $region16: #{criss_cross_attention.2} parent=1 // pred_region
      %51 = dma.done [#allocation3], 1024
    $region17: #{criss_cross_attention.2} parent=1 // pred_fallthru
      _
    // Predicated region
    $region18: #{criss_cross_attention.2} parent=1 // pred_check
      _
    $region19: #{criss_cross_attention.2} parent=1 // pred_check_branch
      %53 = sbr.rel (0) target = $region21
    $region20: #{criss_cross_attention.2} parent=1 // pred_region
      %54 = dma.done [#allocation6], 128
    $region21: #{criss_cross_attention.2} parent=1 // pred_fallthru
      _
    // Predicated region
    $region22: #{criss_cross_attention.2} parent=1 // pred_check
      _
    $region23: #{criss_cross_attention.2} parent=1 // pred_check_branch
      %56 = sbr.rel (0) target = $region25
    $region24: #{criss_cross_attention.2} parent=1 // pred_region
      %57 = dma.done [#allocation6], 16
    $region25: #{criss_cross_attention.2} parent=1 // pred_fallthru
      _
    %v59 = vld [vmem:[#allocation2] sm:$0xf]
    %v60 = vld [vmem:[#allocation2 + $0x4] sm:$0xf]
    %v61 = vld [vmem:[#allocation2 + $0x8] sm:$0xf]
    %v62 = vld [vmem:[#allocation2 + $0xc] sm:$0xf]
    %v63 = vld [vmem:[#allocation2 + $0x10] sm:$0xf]
    %v64 = vld [vmem:[#allocation2 + $0x14] sm:$0xf]
    %v65 = vld [vmem:[#allocation2 + $0x18] sm:$0xf]
    %v66 = vld [vmem:[#allocation2 + $0x1c] sm:$0xf]
    %v67 = vld [vmem:[#allocation2 + $0x20] sm:$0xf]
    %v68 = vld [vmem:[#allocation2 + $0x24] sm:$0xf]
    %v69 = vld [vmem:[#allocation2 + $0x28] sm:$0xf]
    %v70 = vld [vmem:[#allocation2 + $0x2c] sm:$0xf]
    %v71 = vld [vmem:[#allocation2 + $0x30] sm:$0xf]
    %v72 = vld [vmem:[#allocation2 + $0x34] sm:$0xf]
    %v73 = vld [vmem:[#allocation2 + $0x38] sm:$0xf]
    %v74 = vld [vmem:[#allocation2 + $0x3c] sm:$0xf]
    %v75 = vld [vmem:[#allocation5] sm:$0xf]
    %v76 = vld [vmem:[#allocation5 + $0x4] sm:$0xf]
    %v77 = vld [vmem:[#allocation7] sm:$0x1]
    %v79 = vlaneseq
    %v80 = vshrl.u32 %v79, 7
    %v81 = vsub.s32 0, %v80
    %v82 = vrot.slane %v77, %v81
    %v100 = vunpack.c.l.b16 %v59
    %v101 = vunpack.c.l.b16 %v60
    %v102 = vunpack.c.l.b16 %v61
    %v103 = vunpack.c.l.b16 %v62
    %v104 = vunpack.c.l.b16 %v63
    %v105 = vunpack.c.l.b16 %v64
    %v106 = vunpack.c.l.b16 %v65
    %v107 = vunpack.c.l.b16 %v66
    %v108 = vunpack.c.l.b16 %v67
    %v109 = vunpack.c.l.b16 %v68
    %v110 = vunpack.c.l.b16 %v69
    %v111 = vunpack.c.l.b16 %v70
    %v112 = vunpack.c.l.b16 %v71
    %v113 = vunpack.c.l.b16 %v72
    %v114 = vunpack.c.l.b16 %v73
    %v115 = vunpack.c.l.b16 %v74
    %v116 = vpack.c.b16 %v101, %v100
    %v117 = vpack.c.b16 %v103, %v102
    %v118 = vpack.c.b16 %v105, %v104
    %v119 = vpack.c.b16 %v107, %v106
    %v120 = vpack.c.b16 %v109, %v108
    %v121 = vpack.c.b16 %v111, %v110
    %v122 = vpack.c.b16 %v113, %v112
    %v123 = vpack.c.b16 %v115, %v114
    %v126 = vunpack.c.l.b16 %v75
    %v127 = vunpack.c.l.b16 %v76
    %v128 = vpack.c.b16 %v127, %v126
    %vm130 = vcmask 130048
    %v132 = vsel %vm130, %v116, 0
    %v135 = vsel %vm130, %v117, 0
    %v138 = vsel %vm130, %v118, 0
    %v141 = vsel %vm130, %v119, 0
    %v144 = vsel %vm130, %v120, 0
    %v147 = vsel %vm130, %v121, 0
    %v150 = vsel %vm130, %v122, 0
    %v153 = vsel %vm130, %v123, 0
    %155 = vmatprep.subr.bf16.mxu0 0
    %156 = vmatpush1.bf16.msra.mxu0 %v128
    %157 = vmatprep.subr.bf16.mxu0 0
    %158 = vmatpush1.bf16.msra.mxu0 0
    %159 = vmatprep.subr.bf16.mxu0 0
    %160 = vmatpush1.bf16.msra.mxu0 0
    %161 = vmatprep.subr.bf16.mxu0 0
    %162 = vmatpush1.bf16.msra.mxu0 0
    %163 = vmatprep.subr.bf16.mxu0 0
    %164 = vmatpush1.bf16.msra.mxu0 0
    %165 = vmatprep.subr.bf16.mxu0 0
    %166 = vmatpush1.bf16.msra.mxu0 0
    %167 = vmatprep.subr.bf16.mxu0 0
    %168 = vmatpush1.bf16.msra.mxu0 0
    %169 = vmatprep.subr.bf16.mxu0 0
    %170 = vmatpush1.bf16.msra.mxu0 0
    %171 = vmatprep.subr.bf16.mxu0 0
    %172 = vmatpush1.bf16.msra.mxu0 0
    %173 = vmatprep.subr.bf16.mxu0 0
    %174 = vmatpush1.bf16.msra.mxu0 0
    %175 = vmatprep.subr.bf16.mxu0 0
    %176 = vmatpush1.bf16.msra.mxu0 0
    %177 = vmatprep.subr.bf16.mxu0 0
    %178 = vmatpush1.bf16.msra.mxu0 0
    %179 = vmatprep.subr.bf16.mxu0 0
    %180 = vmatpush1.bf16.msra.mxu0 0
    %181 = vmatprep.subr.bf16.mxu0 0
    %182 = vmatpush1.bf16.msra.mxu0 0
    %183 = vmatprep.subr.bf16.mxu0 0
    %184 = vmatpush1.bf16.msra.mxu0 0
    %185 = vmatprep.subr.bf16.mxu0 0
    %186 = vmatpush1.bf16.msra.mxu0 0
    %187 = vmatprep.mubr.bf16.mxu0 0
    %188 = vmatmul.mubr.bf16.gmra.mrb[0].mxu0 %v132
    %v189 = vpop.f32.mrb[0].mxu0
    %v190 = vadd.f32 %v82, %v189
    %v191 = vpop.f32.mrb[0].mxu0
    %v192 = vpop.f32.mrb[0].mxu0
    %v193 = vadd.f32 %v82, %v192
    %v194 = vpop.f32.mrb[0].mxu0
    %195 = vmatprep.mubr.bf16.mxu0 0
    %196 = vmatmul.mubr.bf16.gmra.mrb[0].mxu0 %v135
    %v197 = vpop.f32.mrb[0].mxu0
    %v198 = vadd.f32 %v82, %v197
    %v199 = vpop.f32.mrb[0].mxu0
    %v200 = vpop.f32.mrb[0].mxu0
    %v201 = vadd.f32 %v82, %v200
    %v202 = vpop.f32.mrb[0].mxu0
    %203 = vmatprep.mubr.bf16.mxu0 0
    %204 = vmatmul.mubr.bf16.gmra.mrb[0].mxu0 %v138
    %v205 = vpop.f32.mrb[0].mxu0
    %v206 = vadd.f32 %v82, %v205
    %v207 = vpop.f32.mrb[0].mxu0
    %v208 = vpop.f32.mrb[0].mxu0
    %v209 = vadd.f32 %v82, %v208
    %v210 = vpop.f32.mrb[0].mxu0
    %211 = vmatprep.mubr.bf16.mxu0 0
    %212 = vmatmul.mubr.bf16.gmra.mrb[0].mxu0 %v141
    %v213 = vpop.f32.mrb[0].mxu0
    %v214 = vadd.f32 %v82, %v213
    %v215 = vpop.f32.mrb[0].mxu0
    %v216 = vpop.f32.mrb[0].mxu0
    %v217 = vadd.f32 %v82, %v216
    %v218 = vpop.f32.mrb[0].mxu0
    %219 = vmatprep.mubr.bf16.mxu0 0
    %220 = vmatmul.mubr.bf16.gmra.mrb[0].mxu0 %v144
    %v221 = vpop.f32.mrb[0].mxu0
    %v222 = vadd.f32 %v82, %v221
    %v223 = vpop.f32.mrb[0].mxu0
    %v224 = vpop.f32.mrb[0].mxu0
    %v225 = vadd.f32 %v82, %v224
    %v226 = vpop.f32.mrb[0].mxu0
    %227 = vmatprep.mubr.bf16.mxu0 0
    %228 = vmatmul.mubr.bf16.gmra.mrb[0].mxu0 %v147
    %v229 = vpop.f32.mrb[0].mxu0
    %v230 = vadd.f32 %v82, %v229
    %v231 = vpop.f32.mrb[0].mxu0
    %v232 = vpop.f32.mrb[0].mxu0
    %v233 = vadd.f32 %v82, %v232
    %v234 = vpop.f32.mrb[0].mxu0
    %235 = vmatprep.mubr.bf16.mxu0 0
    %236 = vmatmul.mubr.bf16.gmra.mrb[0].mxu0 %v150
    %v237 = vpop.f32.mrb[0].mxu0
    %v238 = vadd.f32 %v82, %v237
    %v239 = vpop.f32.mrb[0].mxu0
    %v240 = vpop.f32.mrb[0].mxu0
    %v241 = vadd.f32 %v82, %v240
    %v242 = vpop.f32.mrb[0].mxu0
    %243 = vmatprep.mubr.bf16.mxu0 0
    %244 = vmatmul.mubr.bf16.gmra.mrb[0].mxu0 %v153
    %v245 = vpop.f32.mrb[0].mxu0
    %v246 = vadd.f32 %v82, %v245
    %v247 = vpop.f32.mrb[0].mxu0
    %v248 = vpop.f32.mrb[0].mxu0
    %v249 = vadd.f32 %v82, %v248
    %v250 = vpop.f32.mrb[0].mxu0
    %251 = vdwg.mxu0
    %v252 = vpack.c.bf16 %v193, %v190
    %v253 = vpack.c.bf16 %v201, %v198
    %v254 = vpack.c.bf16 %v209, %v206
    %v255 = vpack.c.bf16 %v217, %v214
    %v256 = vpack.c.bf16 %v225, %v222
    %v257 = vpack.c.bf16 %v233, %v230
    %v258 = vpack.c.bf16 %v241, %v238
    %v259 = vpack.c.bf16 %v249, %v246
    %v268 = vunpack.c.l.b16 %v252
    %v269 = vunpack.c.h.b16 %v252
    %v270 = vunpack.c.l.b16 %v253
    %v271 = vunpack.c.h.b16 %v253
    %v272 = vunpack.c.l.b16 %v254
    %v273 = vunpack.c.h.b16 %v254
    %v274 = vunpack.c.l.b16 %v255
    %v275 = vunpack.c.h.b16 %v255
    %v276 = vunpack.c.l.b16 %v256
    %v277 = vunpack.c.h.b16 %v256
    %v278 = vunpack.c.l.b16 %v257
    %v279 = vunpack.c.h.b16 %v257
    %v280 = vunpack.c.l.b16 %v258
    %v281 = vunpack.c.h.b16 %v258
    %v282 = vunpack.c.l.b16 %v259
    %v283 = vunpack.c.h.b16 %v259
    %v284 = vpack.c.b16 %v268, %v268
    %v285 = vpack.c.b16 %v269, %v269
    %v286 = vpack.c.b16 %v270, %v270
    %v287 = vpack.c.b16 %v271, %v271
    %v288 = vpack.c.b16 %v272, %v272
    %v289 = vpack.c.b16 %v273, %v273
    %v290 = vpack.c.b16 %v274, %v274
    %v291 = vpack.c.b16 %v275, %v275
    %v292 = vpack.c.b16 %v276, %v276
    %v293 = vpack.c.b16 %v277, %v277
    %v294 = vpack.c.b16 %v278, %v278
    %v295 = vpack.c.b16 %v279, %v279
    %v296 = vpack.c.b16 %v280, %v280
    %v297 = vpack.c.b16 %v281, %v281
    %v298 = vpack.c.b16 %v282, %v282
    %v299 = vpack.c.b16 %v283, %v283
    %vm316 = vcmask 11264
    %317 = vst.msk [vmem:[#allocation8] sm:$0xf] %vm316, %v284
    %318 = vst.msk [vmem:[#allocation8 + $0x4] sm:$0xf] %vm316, %v285
    %319 = vst.msk [vmem:[#allocation8 + $0x8] sm:$0xf] %vm316, %v286
    %320 = vst.msk [vmem:[#allocation8 + $0xc] sm:$0xf] %vm316, %v287
    %321 = vst.msk [vmem:[#allocation8 + $0x10] sm:$0xf] %vm316, %v288
    %322 = vst.msk [vmem:[#allocation8 + $0x14] sm:$0xf] %vm316, %v289
    %323 = vst.msk [vmem:[#allocation8 + $0x18] sm:$0xf] %vm316, %v290
    %324 = vst.msk [vmem:[#allocation8 + $0x1c] sm:$0xf] %vm316, %v291
    %325 = vst.msk [vmem:[#allocation8 + $0x20] sm:$0xf] %vm316, %v292
    %326 = vst.msk [vmem:[#allocation8 + $0x24] sm:$0xf] %vm316, %v293
    %327 = vst.msk [vmem:[#allocation8 + $0x28] sm:$0xf] %vm316, %v294
    %328 = vst.msk [vmem:[#allocation8 + $0x2c] sm:$0xf] %vm316, %v295
    %329 = vst.msk [vmem:[#allocation8 + $0x30] sm:$0xf] %vm316, %v296
    %330 = vst.msk [vmem:[#allocation8 + $0x34] sm:$0xf] %vm316, %v297
    %331 = vst.msk [vmem:[#allocation8 + $0x38] sm:$0xf] %vm316, %v298
    %332 = vst.msk [vmem:[#allocation8 + $0x3c] sm:$0xf] %vm316, %v299
    %333 = vrot.lane.b32.xlu0 %v284, 126
    %v334 = vpop.permute.xlu0 %333
    %335 = vrot.lane.b32.xlu0 %v285, 126
    %v336 = vpop.permute.xlu0 %335
    %337 = vrot.lane.b32.xlu0 %v286, 126
    %v338 = vpop.permute.xlu0 %337
    %339 = vrot.lane.b32.xlu0 %v287, 126
    %v340 = vpop.permute.xlu0 %339
    %341 = vrot.lane.b32.xlu0 %v288, 126
    %v342 = vpop.permute.xlu0 %341
    %343 = vrot.lane.b32.xlu0 %v289, 126
    %v344 = vpop.permute.xlu0 %343
    %345 = vrot.lane.b32.xlu0 %v290, 126
    %v346 = vpop.permute.xlu0 %345
    %347 = vrot.lane.b32.xlu0 %v291, 126
    %v348 = vpop.permute.xlu0 %347
    %349 = vrot.lane.b32.xlu0 %v292, 126
    %v350 = vpop.permute.xlu0 %349
    %351 = vrot.lane.b32.xlu0 %v293, 126
    %v352 = vpop.permute.xlu0 %351
    %353 = vrot.lane.b32.xlu0 %v294, 126
    %v354 = vpop.permute.xlu0 %353
    %355 = vrot.lane.b32.xlu0 %v295, 126
    %v356 = vpop.permute.xlu0 %355
    %357 = vrot.lane.b32.xlu0 %v296, 126
    %v358 = vpop.permute.xlu0 %357
    %359 = vrot.lane.b32.xlu0 %v297, 126
    %v360 = vpop.permute.xlu0 %359
    %361 = vrot.lane.b32.xlu0 %v298, 126
    %v362 = vpop.permute.xlu0 %361
    %363 = vrot.lane.b32.xlu0 %v299, 126
    %v364 = vpop.permute.xlu0 %363
    %381 = vst.msk [vmem:[#allocation9] sm:$0xf] %vm316, %v334
    %382 = vst.msk [vmem:[#allocation9 + $0x4] sm:$0xf] %vm316, %v336
    %383 = vst.msk [vmem:[#allocation9 + $0x8] sm:$0xf] %vm316, %v338
    %384 = vst.msk [vmem:[#allocation9 + $0xc] sm:$0xf] %vm316, %v340
    %385 = vst.msk [vmem:[#allocation9 + $0x10] sm:$0xf] %vm316, %v342
    %386 = vst.msk [vmem:[#allocation9 + $0x14] sm:$0xf] %vm316, %v344
    %387 = vst.msk [vmem:[#allocation9 + $0x18] sm:$0xf] %vm316, %v346
    %388 = vst.msk [vmem:[#allocation9 + $0x1c] sm:$0xf] %vm316, %v348
    %389 = vst.msk [vmem:[#allocation9 + $0x20] sm:$0xf] %vm316, %v350
    %390 = vst.msk [vmem:[#allocation9 + $0x24] sm:$0xf] %vm316, %v352
    %391 = vst.msk [vmem:[#allocation9 + $0x28] sm:$0xf] %vm316, %v354
    %392 = vst.msk [vmem:[#allocation9 + $0x2c] sm:$0xf] %vm316, %v356
    %393 = vst.msk [vmem:[#allocation9 + $0x30] sm:$0xf] %vm316, %v358
    %394 = vst.msk [vmem:[#allocation9 + $0x34] sm:$0xf] %vm316, %v360
    %395 = vst.msk [vmem:[#allocation9 + $0x38] sm:$0xf] %vm316, %v362
    %396 = vst.msk [vmem:[#allocation9 + $0x3c] sm:$0xf] %vm316, %v364
    %397 = vrot.lane.b32.xlu0 %v284, 124
    %v398 = vpop.permute.xlu0 %397
    %399 = vrot.lane.b32.xlu0 %v285, 124
    %v400 = vpop.permute.xlu0 %399
    %401 = vrot.lane.b32.xlu0 %v286, 124
    %v402 = vpop.permute.xlu0 %401
    %403 = vrot.lane.b32.xlu0 %v287, 124
    %v404 = vpop.permute.xlu0 %403
    %405 = vrot.lane.b32.xlu0 %v288, 124
    %v406 = vpop.permute.xlu0 %405
    %407 = vrot.lane.b32.xlu0 %v289, 124
    %v408 = vpop.permute.xlu0 %407
    %409 = vrot.lane.b32.xlu0 %v290, 124
    %v410 = vpop.permute.xlu0 %409
    %411 = vrot.lane.b32.xlu0 %v291, 124
    %v412 = vpop.permute.xlu0 %411
    %413 = vrot.lane.b32.xlu0 %v292, 124
    %v414 = vpop.permute.xlu0 %413
    %415 = vrot.lane.b32.xlu0 %v293, 124
    %v416 = vpop.permute.xlu0 %415
    %417 = vrot.lane.b32.xlu0 %v294, 124
    %v418 = vpop.permute.xlu0 %417
    %419 = vrot.lane.b32.xlu0 %v295, 124
    %v420 = vpop.permute.xlu0 %419
    %421 = vrot.lane.b32.xlu0 %v296, 124
    %v422 = vpop.permute.xlu0 %421
    %423 = vrot.lane.b32.xlu0 %v297, 124
    %v424 = vpop.permute.xlu0 %423
    %425 = vrot.lane.b32.xlu0 %v298, 124
    %v426 = vpop.permute.xlu0 %425
    %427 = vrot.lane.b32.xlu0 %v299, 124
    %v428 = vpop.permute.xlu0 %427
    %vm445 = vcmask 125952
    %446 = vst.msk [vmem:[#allocation11] sm:$0xf] %vm445, %v398
    %447 = vst.msk [vmem:[#allocation11 + $0x4] sm:$0xf] %vm445, %v400
    %448 = vst.msk [vmem:[#allocation11 + $0x8] sm:$0xf] %vm445, %v402
    %449 = vst.msk [vmem:[#allocation11 + $0xc] sm:$0xf] %vm445, %v404
    %450 = vst.msk [vmem:[#allocation11 + $0x10] sm:$0xf] %vm445, %v406
    %451 = vst.msk [vmem:[#allocation11 + $0x14] sm:$0xf] %vm445, %v408
    %452 = vst.msk [vmem:[#allocation11 + $0x18] sm:$0xf] %vm445, %v410
    %453 = vst.msk [vmem:[#allocation11 + $0x1c] sm:$0xf] %vm445, %v412
    %454 = vst.msk [vmem:[#allocation11 + $0x20] sm:$0xf] %vm445, %v414
    %455 = vst.msk [vmem:[#allocation11 + $0x24] sm:$0xf] %vm445, %v416
    %456 = vst.msk [vmem:[#allocation11 + $0x28] sm:$0xf] %vm445, %v418
    %457 = vst.msk [vmem:[#allocation11 + $0x2c] sm:$0xf] %vm445, %v420
    %458 = vst.msk [vmem:[#allocation11 + $0x30] sm:$0xf] %vm445, %v422
    %459 = vst.msk [vmem:[#allocation11 + $0x34] sm:$0xf] %vm445, %v424
    %460 = vst.msk [vmem:[#allocation11 + $0x38] sm:$0xf] %vm445, %v426
    %461 = vst.msk [vmem:[#allocation11 + $0x3c] sm:$0xf] %vm445, %v428
    // Predicated region
    $region26: #{criss_cross_attention.2} parent=1 // pred_check
      _
    $region27: #{criss_cross_attention.2} parent=1 // pred_check_branch
      %463 = sbr.rel (0) target = $region29
    $region28: #{criss_cross_attention.2} parent=1 // pred_region
      %s465 = ssub.s32 1024, 1024
      %466 = vsyncadd [#allocation4], %s465
      %s467 = sshll.u32 [#allocation8], 4
      %s468 = int_to_ptr.vmem [resolvable:$true] %s467
      %473 = dma.vmem_to_hbm [thread:$0]  %s468, 1024, %s3, [#allocation4], 64, 64, 4
    $region29: #{criss_cross_attention.2} parent=1 // pred_fallthru
      _
    // Predicated region
    $region30: #{criss_cross_attention.2} parent=1 // pred_check
      _
    $region31: #{criss_cross_attention.2} parent=1 // pred_check_branch
      %475 = sbr.rel (0) target = $region33
    $region32: #{criss_cross_attention.2} parent=1 // pred_region
      %s477 = ssub.s32 1024, 1024
      %478 = vsyncadd [#allocation10], %s477
      %s479 = sshll.u32 [#allocation9], 4
      %s480 = int_to_ptr.vmem [resolvable:$true] %s479
      %485 = dma.vmem_to_hbm [thread:$0]  %s480, 1024, %s4, [#allocation10], 64, 64, 4
    $region33: #{criss_cross_attention.2} parent=1 // pred_fallthru
      _
    // Predicated region
    $region34: #{criss_cross_attention.2} parent=1 // pred_check
      _
    $region35: #{criss_cross_attention.2} parent=1 // pred_check_branch
      %487 = sbr.rel (0) target = $region37
    $region36: #{criss_cross_attention.2} parent=1 // pred_region
      %s489 = ssub.s32 1024, 1024
      %490 = vsyncadd [#allocation10], %s489
      %s491 = sshll.u32 [#allocation11], 4
      %s492 = int_to_ptr.vmem [resolvable:$true] %s491
      %497 = dma.vmem_to_hbm [thread:$0]  %s492, 1024, %s5, [#allocation10], 64, 64, 4
    $region37: #{criss_cross_attention.2} parent=1 // pred_fallthru
      _
    // Predicated region
    $region38: #{criss_cross_attention.2} parent=1 // pred_check
      _
    $region39: #{criss_cross_attention.2} parent=1 // pred_check_branch
      %499 = sbr.rel (0) target = $region41
    $region40: #{criss_cross_attention.2} parent=1 // pred_region
      %500 = dma.done [#allocation4], 1024
    $region41: #{criss_cross_attention.2} parent=1 // pred_fallthru
      _
    // Predicated region
    $region42: #{criss_cross_attention.2} parent=1 // pred_check
      _
    $region43: #{criss_cross_attention.2} parent=1 // pred_check_branch
      %502 = sbr.rel (0) target = $region45
    $region44: #{criss_cross_attention.2} parent=1 // pred_region
      %503 = dma.done [#allocation10], 1024
    $region45: #{criss_cross_attention.2} parent=1 // pred_fallthru
      _
    // Predicated region
    $region46: #{criss_cross_attention.2} parent=1 // pred_check
      _
    $region47: #{criss_cross_attention.2} parent=1 // pred_check_branch
      %505 = sbr.rel (0) target = $region49
    $region48: #{criss_cross_attention.2} parent=1 // pred_region
      %506 = dma.done [#allocation10], 1024
    $region49: #{criss_cross_attention.2} parent=1 // pred_fallthru
      _
    %507 = vsyncpa [#allocation3], 1
    %508 = vsyncpa [#allocation6], 1
    %509 = vsyncpa [#allocation4], 1
    %510 = vsyncpa [#allocation10], 1

// kernel: criss_cross_attention.3
$region0: #{criss_cross_attention.3}
  #allocation0 [shape = 'u32[]', space=smem, size = 0x4, offset = 0x4, fixed_abs, tag = 'smem constant byte address 0x4 - core index']
  #allocation1 [shape = 'u32[144,128]{1,0:T(1,128)}', space=vmem, size = 0x12000, scoped, tag = 'internal scratch']
  #allocation2 [shape = 'f32[1]{0:T(128)S(6)}', space=smem, size = 0x200, scoped, tag = 'scoped memory for criss_cross_attention.3']
  %s0 = inlined_call_operand.hbm [shape: bf16[2,8,8,2], index: 0, kind: input, shape index: {}]
  %s1 = inlined_call_operand.hbm [shape: bf16[2,8,8,2], index: 1, kind: input, shape index: {}, may-alias: {1,3}]
  %s2 = inlined_call_operand.hbm [shape: bf16[2,8,8,16], index: 2, kind: input, shape index: {}, may-alias: {2,4}]
  %s3 = inlined_call_operand.hbm [shape: bf16[2,8,8,2], index: 3, kind: input, shape index: {}, may-alias: {1,3}]
  %s4 = inlined_call_operand.hbm [shape: bf16[2,8,8,16], index: 4, kind: input, shape index: {}, may-alias: {2,4}]
  %s5 = inlined_call_operand.<no memory space> [shape: f32[1], index: 5, kind: input, shape index: {}]
  %s6 = inlined_call_operand.hbm [shape: f32[2,8,8,16], index: 6, kind: output, shape index: {}]
  %s7 = sld [smem:[#allocation0]]
  $region77: #{criss_cross_attention.3} parent=0
    _
  %s9 = ssub.s32 1, %s7
  %s10 = scalar_select 0, %s9, %s7
  %11 = sst [smem:[#allocation2]] %s5
  $region1: #{criss_cross_attention.3} parent=0
    #allocation3 [shape = 'u8[32768]{0}', space=vmem, size = 0x8000, scoped, tag = 'input window, operand 0']
    #allocation4 [shape = 's32[2]{0}', space=sflag, size = 0x8, scoped, tag = 'scoped memory for criss_cross_attention.3']
    #allocation5 [shape = 's32[2]{0}', space=sflag, size = 0x8, scoped, tag = 'scoped memory for criss_cross_attention.3']
    #allocation6 [shape = 'u8[32768]{0}', space=vmem, size = 0x8000, scoped, tag = 'input window, operand 1']
    #allocation7 [shape = 's32[2]{0}', space=sflag, size = 0x8, scoped, tag = 'scoped memory for criss_cross_attention.3']
    #allocation8 [shape = 'u8[32768]{0}', space=vmem, size = 0x8000, scoped, tag = 'input window, operand 2']
    #allocation9 [shape = 'u8[32768]{0}', space=vmem, size = 0x8000, scoped, tag = 'input window, operand 3']
    #allocation10 [shape = 's32[2]{0}', space=sflag, size = 0x8, scoped, tag = 'scoped memory for criss_cross_attention.3']
    #allocation11 [shape = 'u8[32768]{0}', space=vmem, size = 0x8000, scoped, tag = 'input window, operand 4']
    #allocation12 [shape = 'u8[65536]{0}', space=vmem, size = 0x10000, scoped, tag = 'output window, operand 0']
    %12 = vsyncpa [#allocation4], 0
    %s13 = scalar_lea.sflag [#allocation4], 1
    %14 = vsyncpa %s13, 0
    %15 = vsyncpa [#allocation7], 0
    %s16 = scalar_lea.sflag [#allocation7], 1
    %17 = vsyncpa %s16, 0
    %18 = vsyncpa [#allocation10], 0
    %s19 = scalar_lea.sflag [#allocation10], 1
    %20 = vsyncpa %s19, 0
    %21 = vsyncpa [#allocation5], 0
    %s22 = scalar_lea.sflag [#allocation5], 1
    %23 = vsyncpa %s22, 0
    loop: start=0, step=1, limit=4
    $region2: #{criss_cross_attention.3} parent=1 // loop_pre_header
      _
    $region3: #{criss_cross_attention.3} parent=1 // loop_header
      %s25 = sphi 0, %s29
      %p26 = scmp.ge.s32.totalorder %s25, 4
      %s32 = sphi 0, %s44
      %s33 = sphi 0, %s40
      %s34 = sphi 0, %s32
      %s35 = sphi 0, %s33
      %s36 = sphi 0, %s34
      %s37 = sphi 0, %s35
      %s49 = sphi 0, %s51
      %s52 = sphi 0, %s49
      %s53 = sphi 0, %s52
      %s69 = sphi 0, %s53
      %s77 = sphi 0, %s79
      %s80 = sphi 0, %s77
      %s81 = sphi 0, %s80
      %s97 = sphi 0, %s81
      %s105 = sphi 0, %s107
      %s108 = sphi 0, %s105
      %s109 = sphi 0, %s108
      %s125 = sphi 0, %s109
      %s131 = sphi 0, %s133
      %s134 = sphi 0, %s131
      %s135 = sphi 0, %s134
      %s151 = sphi 0, %s135
      %s157 = sphi 0, %s159
      %s160 = sphi 0, %s157
      %s161 = sphi 0, %s160
      %s177 = sphi 0, %s161
      %s181 = sphi 0, %s181
      %s183 = sphi 0, %s181
      %s184 = sphi 0, %s183
      %s198 = sphi 0, %s184
      %s206 = sphi 0, %s208
      %s209 = sphi 0, %s206
      %s210 = sphi 0, %s209
      %s226 = sphi 0, %s210
    $region4: #{criss_cross_attention.3} parent=1 // loop_header_branch
      %28 = sbr.rel (%p26) target = $region8
    $region5: #{criss_cross_attention.3} parent=1 // loop_body
      %s30 = ssub.s32 %s25, 1
      %s31 = ssub.s32 %s25, 2
      %s38 = sadd.s32 1, %s33
      %p39 = scmp.ge.s32.totalorder %s38, 1
      %s40 = scalar_select %p39, 0, %s38
      %s41 = sadd.s32 1, %s32
      %s42 = scalar_select %p39, %s41, %s32
      %p43 = scmp.ge.s32.totalorder %s42, 2
      %s44 = scalar_select %p43, 0, %s42
      %s45 = ssub.s32 %s32, %s44
      %s46 = ssub.s32 %s33, %s40
      %s47 = sor.u32 %s45, %s46
      %p48 = scmp.eq.s32.totalorder %s47, 0
      %s50 = sadd.s32 %s49, 1
      %s51 = scalar_select %p48, %s49, %s50
      %p54 = pneg %p48
      %p55 = scmp.eq.s32.totalorder %s25, 1
      %p56 = por %p54, %p55
      %p57 = scmp.ne.s32.totalorder %s49, %s52
      %p58 = scmp.eq.s32.totalorder %s25, 0
      %p59 = por %p57, %p58
      %p60 = scmp.ne.s32.totalorder %s49, %s52
      %p61 = scmp.eq.s32.totalorder %s30, 1
      %p62 = por %p60, %p61
      %p63 = scmp.ne.s32.totalorder %s52, %s53
      %p64 = scmp.eq.s32.totalorder %s30, 0
      %p65 = por %p63, %p64
      %p66 = scmp.ne.s32.totalorder %s52, %s53
      %p67 = scmp.eq.s32.totalorder %s31, 1
      %p68 = por %p66, %p67
      %p70 = scmp.ne.s32.totalorder %s53, %s69
      %p71 = scmp.eq.s32.totalorder %s31, 0
      %p72 = por %p70, %p71
      %s73 = ssub.s32 %s32, %s44
      %s74 = ssub.s32 %s33, %s40
      %s75 = sor.u32 %s73, %s74
      %p76 = scmp.eq.s32.totalorder %s75, 0
      %s78 = sadd.s32 %s77, 1
      %s79 = scalar_select %p76, %s77, %s78
      %p82 = pneg %p76
      %p83 = scmp.eq.s32.totalorder %s25, 1
      %p84 = por %p82, %p83
      %p85 = scmp.ne.s32.totalorder %s77, %s80
      %p86 = scmp.eq.s32.totalorder %s25, 0
      %p87 = por %p85, %p86
      %p88 = scmp.ne.s32.totalorder %s77, %s80
      %p89 = scmp.eq.s32.totalorder %s30, 1
      %p90 = por %p88, %p89
      %p91 = scmp.ne.s32.totalorder %s80, %s81
      %p92 = scmp.eq.s32.totalorder %s30, 0
      %p93 = por %p91, %p92
      %p94 = scmp.ne.s32.totalorder %s80, %s81
      %p95 = scmp.eq.s32.totalorder %s31, 1
      %p96 = por %p94, %p95
      %p98 = scmp.ne.s32.totalorder %s81, %s97
      %p99 = scmp.eq.s32.totalorder %s31, 0
      %p100 = por %p98, %p99
      %s101 = ssub.s32 %s32, %s44
      %s102 = ssub.s32 %s33, %s40
      %s103 = sor.u32 %s101, %s102
      %p104 = scmp.eq.s32.totalorder %s103, 0
      %s106 = sadd.s32 %s105, 1
      %s107 = scalar_select %p104, %s105, %s106
      %p110 = pneg %p104
      %p111 = scmp.eq.s32.totalorder %s25, 1
      %p112 = por %p110, %p111
      %p113 = scmp.ne.s32.totalorder %s105, %s108
      %p114 = scmp.eq.s32.totalorder %s25, 0
      %p115 = por %p113, %p114
      %p116 = scmp.ne.s32.totalorder %s105, %s108
      %p117 = scmp.eq.s32.totalorder %s30, 1
      %p118 = por %p116, %p117
      %p119 = scmp.ne.s32.totalorder %s108, %s109
      %p120 = scmp.eq.s32.totalorder %s30, 0
      %p121 = por %p119, %p120
      %p122 = scmp.ne.s32.totalorder %s108, %s109
      %p123 = scmp.eq.s32.totalorder %s31, 1
      %p124 = por %p122, %p123
      %p126 = scmp.ne.s32.totalorder %s109, %s125
      %p127 = scmp.eq.s32.totalorder %s31, 0
      %p128 = por %p126, %p127
      %s129 = ssub.s32 %s32, %s44
      %p130 = scmp.eq.s32.totalorder %s129, 0
      %s132 = sadd.s32 %s131, 1
      %s133 = scalar_select %p130, %s131, %s132
      %p136 = pneg %p130
      %p137 = scmp.eq.s32.totalorder %s25, 1
      %p138 = por %p136, %p137
      %p139 = scmp.ne.s32.totalorder %s131, %s134
      %p140 = scmp.eq.s32.totalorder %s25, 0
      %p141 = por %p139, %p140
      %p142 = scmp.ne.s32.totalorder %s131, %s134
      %p143 = scmp.eq.s32.totalorder %s30, 1
      %p144 = por %p142, %p143
      %p145 = scmp.ne.s32.totalorder %s134, %s135
      %p146 = scmp.eq.s32.totalorder %s30, 0
      %p147 = por %p145, %p146
      %p148 = scmp.ne.s32.totalorder %s134, %s135
      %p149 = scmp.eq.s32.totalorder %s31, 1
      %p150 = por %p148, %p149
      %p152 = scmp.ne.s32.totalorder %s135, %s151
      %p153 = scmp.eq.s32.totalorder %s31, 0
      %p154 = por %p152, %p153
      %s155 = ssub.s32 %s32, %s44
      %p156 = scmp.eq.s32.totalorder %s155, 0
      %s158 = sadd.s32 %s157, 1
      %s159 = scalar_select %p156, %s157, %s158
      %p162 = pneg %p156
      %p163 = scmp.eq.s32.totalorder %s25, 1
      %p164 = por %p162, %p163
      %p165 = scmp.ne.s32.totalorder %s157, %s160
      %p166 = scmp.eq.s32.totalorder %s25, 0
      %p167 = por %p165, %p166
      %p168 = scmp.ne.s32.totalorder %s157, %s160
      %p169 = scmp.eq.s32.totalorder %s30, 1
      %p170 = por %p168, %p169
      %p171 = scmp.ne.s32.totalorder %s160, %s161
      %p172 = scmp.eq.s32.totalorder %s30, 0
      %p173 = por %p171, %p172
      %p174 = scmp.ne.s32.totalorder %s160, %s161
      %p175 = scmp.eq.s32.totalorder %s31, 1
      %p176 = por %p174, %p175
      %p178 = scmp.ne.s32.totalorder %s161, %s177
      %p179 = scmp.eq.s32.totalorder %s31, 0
      %p180 = por %p178, %p179
      %s182 = sadd.s32 %s181, 1
      %p185 = scmp.eq.s32.totalorder %s25, 1
      %p186 = scmp.ne.s32.totalorder %s181, %s183
      %p187 = scmp.eq.s32.totalorder %s25, 0
      %p188 = por %p186, %p187
      %p189 = scmp.ne.s32.totalorder %s181, %s183
      %p190 = scmp.eq.s32.totalorder %s30, 1
      %p191 = por %p189, %p190
      %p192 = scmp.ne.s32.totalorder %s183, %s184
      %p193 = scmp.eq.s32.totalorder %s30, 0
      %p194 = por %p192, %p193
      %p195 = scmp.ne.s32.totalorder %s183, %s184
      %p196 = scmp.eq.s32.totalorder %s31, 1
      %p197 = por %p195, %p196
      %p199 = scmp.ne.s32.totalorder %s184, %s198
      %p200 = scmp.eq.s32.totalorder %s31, 0
      %p201 = por %p199, %p200
      %s202 = ssub.s32 %s32, %s44
      %s203 = ssub.s32 %s33, %s40
      %s204 = sor.u32 %s202, %s203
      %p205 = scmp.eq.s32.totalorder %s204, 0
      %s207 = sadd.s32 %s206, 1
      %s208 = scalar_select %p205, %s206, %s207
      %p211 = pneg %p205
      %p212 = scmp.eq.s32.totalorder %s25, 1
      %p213 = por %p211, %p212
      %p214 = scmp.ne.s32.totalorder %s206, %s209
      %p215 = scmp.eq.s32.totalorder %s25, 0
      %p216 = por %p214, %p215
      %p217 = scmp.ne.s32.totalorder %s206, %s209
      %p218 = scmp.eq.s32.totalorder %s30, 1
      %p219 = por %p217, %p218
      %p220 = scmp.ne.s32.totalorder %s209, %s210
      %p221 = scmp.eq.s32.totalorder %s30, 0
      %p222 = por %p220, %p221
      %p223 = scmp.ne.s32.totalorder %s209, %s210
      %p224 = scmp.eq.s32.totalorder %s31, 1
      %p225 = por %p223, %p224
      %p227 = scmp.ne.s32.totalorder %s210, %s226
      %p228 = scmp.eq.s32.totalorder %s31, 0
      %p229 = por %p227, %p228
      %p230 = scmp.le.s32.totalorder 1, %s25
      %p231 = scmp.lt.s32.totalorder %s25, 3
      %p232 = pnand %p230, %p231
      %p233 = pneg %p232
      // Predicated region
      $region9: #{criss_cross_attention.3} parent=5 // pred_check
        _
      $region10: #{criss_cross_attention.3} parent=5 // pred_check_branch
        %235 = sbr.rel (%p232) target = $region12
      $region11: #{criss_cross_attention.3} parent=5 // pred_region
        %s236 = ssub.s32 %s25, 1
        // Predicated region
        $region13: #{criss_cross_attention.3} parent=11 // pred_check
          %p237 = pneg %p194
        $region14: #{criss_cross_attention.3} parent=11 // pred_check_branch
          %239 = sbr.rel (%p237) target = $region16
        $region15: #{criss_cross_attention.3} parent=11 // pred_region
          _
        $region16: #{criss_cross_attention.3} parent=11 // pred_fallthru
          _
      $region12: #{criss_cross_attention.3} parent=5 // pred_fallthru
        _
      %p240 = scmp.lt.s32.totalorder %s25, 2
      // Predicated region
      $region17: #{criss_cross_attention.3} parent=5 // pred_check
        %p241 = pneg %p240
      $region18: #{criss_cross_attention.3} parent=5 // pred_check_branch
        %243 = sbr.rel (%p241) target = $region20
      $region19: #{criss_cross_attention.3} parent=5 // pred_region
        // Predicated region
        $region21: #{criss_cross_attention.3} parent=19 // pred_check
          %p244 = pneg %p59
        $region22: #{criss_cross_attention.3} parent=19 // pred_check_branch
          %246 = sbr.rel (%p244) target = $region24
        $region23: #{criss_cross_attention.3} parent=19 // pred_region
          %s247 = sand.u32 %s49, 1
          %s248 = scalar_lea.sflag [#allocation4], %s247
          %s249 = sand.u32 %s49, 1
          %s250 = smul.addr %s249, 32
          %s251 = scalar_lea.vmem [#allocation3], %s250
          %s253 = ssub.s32 512, 512
          %254 = vsyncadd %s248, %s253
          %s255 = smul.addr %s32, 8
          %s256 = sadd.s32 %s33, %s255
          %s257 = smul.addr %s256, 64
          %s258 = scalar_lea.hbm %s0, %s257
          %s259 = sshll.u32 %s251, 4
          %s260 = int_to_ptr.vmem [resolvable:$true] %s259
          %265 = dma.hbm_to_vmem [thread:$0]  %s258, 512, %s260, %s248, 64, 64, 4
        $region24: #{criss_cross_attention.3} parent=19 // pred_fallthru
          _
        // Predicated region
        $region25: #{criss_cross_attention.3} parent=19 // pred_check
          %p266 = pneg %p87
        $region26: #{criss_cross_attention.3} parent=19 // pred_check_branch
          %268 = sbr.rel (%p266) target = $region28
        $region27: #{criss_cross_attention.3} parent=19 // pred_region
          %s269 = sand.u32 %s25, 1
          %s270 = scalar_lea.sflag [#allocation7], %s269
          %s271 = sand.u32 %s77, 1
          %s272 = smul.addr %s271, 32
          %s273 = scalar_lea.vmem [#allocation6], %s272
          %s275 = ssub.s32 512, 512
          %276 = vsyncadd %s270, %s275
          %s277 = smul.addr %s32, 8
          %s278 = sadd.s32 %s33, %s277
          %s279 = smul.addr %s278, 64
          %s280 = scalar_lea.hbm %s1, %s279
          %s281 = sshll.u32 %s273, 4
          %s282 = int_to_ptr.vmem [resolvable:$true] %s281
          %287 = dma.hbm_to_vmem [thread:$0]  %s280, 512, %s282, %s270, 64, 64, 4
        $region28: #{criss_cross_attention.3} parent=19 // pred_fallthru
          _
        // Predicated region
        $region29: #{criss_cross_attention.3} parent=19 // pred_check
          %p288 = pneg %p115
        $region30: #{criss_cross_attention.3} parent=19 // pred_check_branch
          %290 = sbr.rel (%p288) target = $region32
        $region31: #{criss_cross_attention.3} parent=19 // pred_region
          %s291 = sand.u32 %s25, 1
          %s292 = scalar_lea.sflag [#allocation7], %s291
          %s293 = sand.u32 %s105, 1
          %s294 = smul.addr %s293, 32
          %s295 = scalar_lea.vmem [#allocation8], %s294
          %s297 = ssub.s32 512, 512
          %298 = vsyncadd %s292, %s297
          %s299 = smul.addr %s32, 8
          %s300 = sadd.s32 %s33, %s299
          %s301 = smul.addr %s300, 64
          %s302 = scalar_lea.hbm %s2, %s301
          %s303 = sshll.u32 %s295, 4
          %s304 = int_to_ptr.vmem [resolvable:$true] %s303
          %309 = dma.hbm_to_vmem [thread:$0]  %s302, 512, %s304, %s292, 64, 64, 4
        $region32: #{criss_cross_attention.3} parent=19 // pred_fallthru
          _
        // Predicated region
        $region33: #{criss_cross_attention.3} parent=19 // pred_check
          %p310 = pneg %p141
        $region34: #{criss_cross_attention.3} parent=19 // pred_check_branch
          %312 = sbr.rel (%p310) target = $region36
        $region35: #{criss_cross_attention.3} parent=19 // pred_region
          %s313 = sand.u32 %s25, 1
          %s314 = scalar_lea.sflag [#allocation10], %s313
          %s315 = sand.u32 %s131, 1
          %s316 = smul.addr %s315, 32
          %s317 = scalar_lea.vmem [#allocation9], %s316
          %s319 = ssub.s32 512, 512
          %320 = vsyncadd %s314, %s319
          %s321 = smul.addr %s32, 8
          %s322 = smul.addr %s321, 64
          %s323 = scalar_lea.hbm %s3, %s322
          %s324 = sshll.u32 %s317, 4
          %s325 = int_to_ptr.vmem [resolvable:$true] %s324
          %330 = dma.hbm_to_vmem [thread:$0]  %s323, 512, %s325, %s314, 64, 64, 4
        $region36: #{criss_cross_attention.3} parent=19 // pred_fallthru
          _
        // Predicated region
        $region37: #{criss_cross_attention.3} parent=19 // pred_check
          %p331 = pneg %p167
        $region38: #{criss_cross_attention.3} parent=19 // pred_check_branch
          %333 = sbr.rel (%p331) target = $region40
        $region39: #{criss_cross_attention.3} parent=19 // pred_region
          %s334 = sand.u32 %s25, 1
          %s335 = scalar_lea.sflag [#allocation10], %s334
          %s336 = sand.u32 %s157, 1
          %s337 = smul.addr %s336, 32
          %s338 = scalar_lea.vmem [#allocation11], %s337
          %s340 = ssub.s32 512, 512
          %341 = vsyncadd %s335, %s340
          %s342 = smul.addr %s32, 8
          %s343 = smul.addr %s342, 64
          %s344 = scalar_lea.hbm %s4, %s343
          %s345 = sshll.u32 %s338, 4
          %s346 = int_to_ptr.vmem [resolvable:$true] %s345
          %351 = dma.hbm_to_vmem [thread:$0]  %s344, 512, %s346, %s335, 64, 64, 4
        $region40: #{criss_cross_attention.3} parent=19 // pred_fallthru
          _
      $region20: #{criss_cross_attention.3} parent=5 // pred_fallthru
        _
      %p352 = scmp.le.s32.totalorder 1, %s25
      %p353 = scmp.lt.s32.totalorder %s25, 3
      %p354 = pnand %p352, %p353
      %p355 = pneg %p354
      // Predicated region
      $region41: #{criss_cross_attention.3} parent=5 // pred_check
        _
      $region42: #{criss_cross_attention.3} parent=5 // pred_check_branch
        %357 = sbr.rel (%p354) target = $region44
      $region43: #{criss_cross_attention.3} parent=5 // pred_region
        %s358 = ssub.s32 %s25, 1
        %s359 = sand.u32 %s52, 1
        %s360 = scalar_lea.sflag [#allocation4], %s359
        %s361 = sand.u32 %s52, 1
        %s362 = smul.addr %s361, 32
        %s363 = scalar_lea.vmem [#allocation3], %s362
        // Predicated region
        $region45: #{criss_cross_attention.3} parent=43 // pred_check
          %p364 = pneg %p65
        $region46: #{criss_cross_attention.3} parent=43 // pred_check_branch
          %366 = sbr.rel (%p364) target = $region48
        $region47: #{criss_cross_attention.3} parent=43 // pred_region
          %367 = dma.done %s360, 512
        $region48: #{criss_cross_attention.3} parent=43 // pred_fallthru
          _
        %s368 = sand.u32 %s30, 1
        %s369 = scalar_lea.sflag [#allocation7], %s368
        %s370 = sand.u32 %s80, 1
        %s371 = smul.addr %s370, 32
        %s372 = scalar_lea.vmem [#allocation6], %s371
        // Predicated region
        $region49: #{criss_cross_attention.3} parent=43 // pred_check
          %p373 = pneg %p93
        $region50: #{criss_cross_attention.3} parent=43 // pred_check_branch
          %375 = sbr.rel (%p373) target = $region52
        $region51: #{criss_cross_attention.3} parent=43 // pred_region
          %376 = dma.done %s369, 512
        $region52: #{criss_cross_attention.3} parent=43 // pred_fallthru
          _
        %s377 = sand.u32 %s30, 1
        %s378 = scalar_lea.sflag [#allocation7], %s377
        %s379 = sand.u32 %s108, 1
        %s380 = smul.addr %s379, 32
        %s381 = scalar_lea.vmem [#allocation8], %s380
        // Predicated region
        $region53: #{criss_cross_attention.3} parent=43 // pred_check
          %p382 = pneg %p121
        $region54: #{criss_cross_attention.3} parent=43 // pred_check_branch
          %384 = sbr.rel (%p382) target = $region56
        $region55: #{criss_cross_attention.3} parent=43 // pred_region
          %385 = dma.done %s378, 512
        $region56: #{criss_cross_attention.3} parent=43 // pred_fallthru
          _
        %s386 = sand.u32 %s30, 1
        %s387 = scalar_lea.sflag [#allocation10], %s386
        %s388 = sand.u32 %s134, 1
        %s389 = smul.addr %s388, 32
        %s390 = scalar_lea.vmem [#allocation9], %s389
        // Predicated region
        $region57: #{criss_cross_attention.3} parent=43 // pred_check
          %p391 = pneg %p147
        $region58: #{criss_cross_attention.3} parent=43 // pred_check_branch
          %393 = sbr.rel (%p391) target = $region60
        $region59: #{criss_cross_attention.3} parent=43 // pred_region
          %394 = dma.done %s387, 512
        $region60: #{criss_cross_attention.3} parent=43 // pred_fallthru
          _
        %s395 = sand.u32 %s30, 1
        %s396 = scalar_lea.sflag [#allocation10], %s395
        %s397 = sand.u32 %s160, 1
        %s398 = smul.addr %s397, 32
        %s399 = scalar_lea.vmem [#allocation11], %s398
        // Predicated region
        $region61: #{criss_cross_attention.3} parent=43 // pred_check
          %p400 = pneg %p173
        $region62: #{criss_cross_attention.3} parent=43 // pred_check_branch
          %402 = sbr.rel (%p400) target = $region64
        $region63: #{criss_cross_attention.3} parent=43 // pred_region
          %403 = dma.done %s396, 512
        $region64: #{criss_cross_attention.3} parent=43 // pred_fallthru
          _
        %s404 = sand.u32 %s52, 1
        %s405 = scalar_lea.sflag [#allocation4], %s404
        %s406 = sand.u32 %s52, 1
        %s407 = smul.addr %s406, 32
        %s408 = scalar_lea.vmem [#allocation3], %s407
        %p409 = pneg %p65
        %p410 = pneg %p62
        %s411 = sand.u32 %s30, 1
        %s412 = scalar_lea.sflag [#allocation7], %s411
        %s413 = sand.u32 %s80, 1
        %s414 = smul.addr %s413, 32
        %s415 = scalar_lea.vmem [#allocation6], %s414
        %p416 = pneg %p93
        %p417 = pneg %p90
        %s418 = sand.u32 %s30, 1
        %s419 = scalar_lea.sflag [#allocation7], %s418
        %s420 = sand.u32 %s108, 1
        %s421 = smul.addr %s420, 32
        %s422 = scalar_lea.vmem [#allocation8], %s421
        %p423 = pneg %p121
        %p424 = pneg %p118
        %s425 = sand.u32 %s30, 1
        %s426 = scalar_lea.sflag [#allocation10], %s425
        %s427 = sand.u32 %s134, 1
        %s428 = smul.addr %s427, 32
        %s429 = scalar_lea.vmem [#allocation9], %s428
        %p430 = pneg %p147
        %p431 = pneg %p144
        %s432 = sand.u32 %s30, 1
        %s433 = scalar_lea.sflag [#allocation10], %s432
        %s434 = sand.u32 %s160, 1
        %s435 = smul.addr %s434, 32
        %s436 = scalar_lea.vmem [#allocation11], %s435
        %p437 = pneg %p173
        %p438 = pneg %p170
        %p439 = pneg %p194
        %p440 = pneg %p191
        %p441 = pneg %p222
        %p442 = pneg %p219
        %s443 = sand.u32 %s209, 1
        %s444 = scalar_lea.sflag [#allocation5], %s443
        %s445 = sand.u32 %s209, 1
        %s446 = smul.addr %s445, 64
        %s447 = scalar_lea.vmem [#allocation12], %s446
        %v449 = vld [vmem:[%s363] sm:$0xf]
        %v450 = vld [vmem:[%s363 + $0x4] sm:$0xf]
        %v451 = vld [vmem:[%s363 + $0x8] sm:$0xf]
        %v452 = vld [vmem:[%s363 + $0xc] sm:$0xf]
        %v453 = vld [vmem:[%s363 + $0x10] sm:$0xf]
        %v454 = vld [vmem:[%s363 + $0x14] sm:$0xf]
        %v455 = vld [vmem:[%s363 + $0x18] sm:$0xf]
        %v456 = vld [vmem:[%s363 + $0x1c] sm:$0xf]
        %v457 = vcombine.low %v449, %v453
        %v459 = vunpack.c.l.s4 1983009808
        %v460 = vunpack.c.0.s8 %v459
        %v461 = vlaneseq
        %v462 = vshrl.u32 %v461, 7
        %v463 = vsub.s32 %v460, %v462
        %v464 = vrot.slane %v457, %v463
        %v465 = vcombine.low %v451, %v455
        %v467 = vunpack.c.l.s4 1983009808
        %v468 = vunpack.c.0.s8 %v467
        %v469 = vlaneseq
        %v470 = vshrl.u32 %v469, 7
        %v471 = vsub.s32 %v468, %v470
        %v472 = vrot.slane %v465, %v471
        %v473 = vcombine.low %v464, %v472
        %v474 = vcombine.high %v464, %v472
        %v476 = vunpack.c.l.s4 1934713408
        %v477 = vunpack.c.0.s8 %v476
        %v478 = vlaneseq
        %v479 = vshrl.u32 %v478, 7
        %v480 = vsub.s32 %v477, %v479
        %v481 = vrot.slane %v473, %v480
        %v483 = vunpack.c.l.s4 1934713408
        %v484 = vunpack.c.0.s8 %v483
        %v485 = vlaneseq
        %v486 = vshrl.u32 %v485, 7
        %v487 = vsub.s32 %v484, %v486
        %v488 = vrot.slane %v474, %v487
        %v489 = vcombine.high %v481, 0
        %v490 = vcombine.high %v488, 0
        %v491 = vcombine.low %v450, %v454
        %v493 = vunpack.c.l.s4 1983009808
        %v494 = vunpack.c.0.s8 %v493
        %v495 = vlaneseq
        %v496 = vshrl.u32 %v495, 7
        %v497 = vsub.s32 %v494, %v496
        %v498 = vrot.slane %v491, %v497
        %v499 = vcombine.low %v452, %v456
        %v501 = vunpack.c.l.s4 1983009808
        %v502 = vunpack.c.0.s8 %v501
        %v503 = vlaneseq
        %v504 = vshrl.u32 %v503, 7
        %v505 = vsub.s32 %v502, %v504
        %v506 = vrot.slane %v499, %v505
        %v507 = vcombine.low %v498, %v506
        %v508 = vcombine.high %v498, %v506
        %v510 = vunpack.c.l.s4 1934713408
        %v511 = vunpack.c.0.s8 %v510
        %v512 = vlaneseq
        %v513 = vshrl.u32 %v512, 7
        %v514 = vsub.s32 %v511, %v513
        %v515 = vrot.slane %v507, %v514
        %v517 = vunpack.c.l.s4 1934713408
        %v518 = vunpack.c.0.s8 %v517
        %v519 = vlaneseq
        %v520 = vshrl.u32 %v519, 7
        %v521 = vsub.s32 %v518, %v520
        %v522 = vrot.slane %v508, %v521
        %v523 = vcombine.high %v515, 0
        %v524 = vcombine.high %v522, 0
        %v527 = vpack.i.b16 %v515, %v481
        %v528 = vshrl.u32 %v481, 16
        %v529 = vshrl.u32 %v515, 16
        %v530 = vpack.i.b16 %v529, %v528
        %v533 = vpack.i.b16 %v523, %v489
        %v534 = vshrl.u32 %v489, 16
        %v535 = vshrl.u32 %v523, 16
        %v536 = vpack.i.b16 %v535, %v534
        %v539 = vpack.i.b16 %v522, %v488
        %v540 = vshrl.u32 %v488, 16
        %v541 = vshrl.u32 %v522, 16
        %v542 = vpack.i.b16 %v541, %v540
        %v545 = vpack.i.b16 %v524, %v490
        %v546 = vshrl.u32 %v490, 16
        %v547 = vshrl.u32 %v524, 16
        %v548 = vpack.i.b16 %v547, %v546
        %v549 = vld [vmem:[%s372] sm:$0xf]
        %v550 = vld [vmem:[%s372 + $0x4] sm:$0xf]
        %v551 = vld [vmem:[%s372 + $0x8] sm:$0xf]
        %v552 = vld [vmem:[%s372 + $0xc] sm:$0xf]
        %v553 = vld [vmem:[%s372 + $0x10] sm:$0xf]
        %v554 = vld [vmem:[%s372 + $0x14] sm:$0xf]
        %v555 = vld [vmem:[%s372 + $0x18] sm:$0xf]
        %v556 = vld [vmem:[%s372 + $0x1c] sm:$0xf]
        %v557 = vcombine.low %v549, %v553
        %v559 = vunpack.c.l.s4 1983009808
        %v560 = vunpack.c.0.s8 %v559
        %v561 = vlaneseq
        %v562 = vshrl.u32 %v561, 7
        %v563 = vsub.s32 %v560, %v562
        %v564 = vrot.slane %v557, %v563
        %v565 = vcombine.low %v551, %v555
        %v567 = vunpack.c.l.s4 1983009808
        %v568 = vunpack.c.0.s8 %v567
        %v569 = vlaneseq
        %v570 = vshrl.u32 %v569, 7
        %v571 = vsub.s32 %v568, %v570
        %v572 = vrot.slane %v565, %v571
        %v573 = vcombine.low %v564, %v572
        %v574 = vcombine.high %v564, %v572
        %v576 = vunpack.c.l.s4 1934713408
        %v577 = vunpack.c.0.s8 %v576
        %v578 = vlaneseq
        %v579 = vshrl.u32 %v578, 7
        %v580 = vsub.s32 %v577, %v579
        %v581 = vrot.slane %v573, %v580
        %v583 = vunpack.c.l.s4 1934713408
        %v584 = vunpack.c.0.s8 %v583
        %v585 = vlaneseq
        %v586 = vshrl.u32 %v585, 7
        %v587 = vsub.s32 %v584, %v586
        %v588 = vrot.slane %v574, %v587
        %v589 = vcombine.high %v581, 0
        %v590 = vcombine.high %v588, 0
        %v591 = vcombine.low %v550, %v554
        %v593 = vunpack.c.l.s4 1983009808
        %v594 = vunpack.c.0.s8 %v593
        %v595 = vlaneseq
        %v596 = vshrl.u32 %v595, 7
        %v597 = vsub.s32 %v594, %v596
        %v598 = vrot.slane %v591, %v597
        %v599 = vcombine.low %v552, %v556
        %v601 = vunpack.c.l.s4 1983009808
        %v602 = vunpack.c.0.s8 %v601
        %v603 = vlaneseq
        %v604 = vshrl.u32 %v603, 7
        %v605 = vsub.s32 %v602, %v604
        %v606 = vrot.slane %v599, %v605
        %v607 = vcombine.low %v598, %v606
        %v608 = vcombine.high %v598, %v606
        %v610 = vunpack.c.l.s4 1934713408
        %v611 = vunpack.c.0.s8 %v610
        %v612 = vlaneseq
        %v613 = vshrl.u32 %v612, 7
        %v614 = vsub.s32 %v611, %v613
        %v615 = vrot.slane %v607, %v614
        %v617 = vunpack.c.l.s4 1934713408
        %v618 = vunpack.c.0.s8 %v617
        %v619 = vlaneseq
        %v620 = vshrl.u32 %v619, 7
        %v621 = vsub.s32 %v618, %v620
        %v622 = vrot.slane %v608, %v621
        %v623 = vcombine.high %v615, 0
        %v624 = vcombine.high %v622, 0
        %v627 = vpack.i.b16 %v615, %v581
        %v628 = vshrl.u32 %v581, 16
        %v629 = vshrl.u32 %v615, 16
        %v630 = vpack.i.b16 %v629, %v628
        %v633 = vpack.i.b16 %v623, %v589
        %v634 = vshrl.u32 %v589, 16
        %v635 = vshrl.u32 %v623, 16
        %v636 = vpack.i.b16 %v635, %v634
        %v639 = vpack.i.b16 %v622, %v588
        %v640 = vshrl.u32 %v588, 16
        %v641 = vshrl.u32 %v622, 16
        %v642 = vpack.i.b16 %v641, %v640
        %v645 = vpack.i.b16 %v624, %v590
        %v646 = vshrl.u32 %v590, 16
        %v647 = vshrl.u32 %v624, 16
        %v648 = vpack.i.b16 %v647, %v646
        %v649 = vld [vmem:[%s381] sm:$0xf]
        %v650 = vld [vmem:[%s381 + $0x4] sm:$0xf]
        %v651 = vld [vmem:[%s381 + $0x8] sm:$0xf]
        %v652 = vld [vmem:[%s381 + $0xc] sm:$0xf]
        %v653 = vld [vmem:[%s381 + $0x10] sm:$0xf]
        %v654 = vld [vmem:[%s381 + $0x14] sm:$0xf]
        %v655 = vld [vmem:[%s381 + $0x18] sm:$0xf]
        %v656 = vld [vmem:[%s381 + $0x1c] sm:$0xf]
        %v657 = vcombine.low %v649, %v653
        %v659 = vunpack.c.l.s4 1983009808
        %v660 = vunpack.c.0.s8 %v659
        %v661 = vlaneseq
        %v662 = vshrl.u32 %v661, 7
        %v663 = vsub.s32 %v660, %v662
        %v664 = vrot.slane %v657, %v663
        %v665 = vcombine.low %v651, %v655
        %v667 = vunpack.c.l.s4 1983009808
        %v668 = vunpack.c.0.s8 %v667
        %v669 = vlaneseq
        %v670 = vshrl.u32 %v669, 7
        %v671 = vsub.s32 %v668, %v670
        %v672 = vrot.slane %v665, %v671
        %v673 = vcombine.low %v664, %v672
        %v674 = vcombine.high %v664, %v672
        %v676 = vunpack.c.l.s4 1934713408
        %v677 = vunpack.c.0.s8 %v676
        %v678 = vlaneseq
        %v679 = vshrl.u32 %v678, 7
        %v680 = vsub.s32 %v677, %v679
        %v681 = vrot.slane %v673, %v680
        %v683 = vunpack.c.l.s4 1934713408
        %v684 = vunpack.c.0.s8 %v683
        %v685 = vlaneseq
        %v686 = vshrl.u32 %v685, 7
        %v687 = vsub.s32 %v684, %v686
        %v688 = vrot.slane %v674, %v687
        %v689 = vcombine.high %v681, 0
        %v690 = vcombine.high %v688, 0
        %v691 = vcombine.low %v650, %v654
        %v693 = vunpack.c.l.s4 1983009808
        %v694 = vunpack.c.0.s8 %v693
        %v695 = vlaneseq
        %v696 = vshrl.u32 %v695, 7
        %v697 = vsub.s32 %v694, %v696
        %v698 = vrot.slane %v691, %v697
        %v699 = vcombine.low %v652, %v656
        %v701 = vunpack.c.l.s4 1983009808
        %v702 = vunpack.c.0.s8 %v701
        %v703 = vlaneseq
        %v704 = vshrl.u32 %v703, 7
        %v705 = vsub.s32 %v702, %v704
        %v706 = vrot.slane %v699, %v705
        %v707 = vcombine.low %v698, %v706
        %v708 = vcombine.high %v698, %v706
        %v710 = vunpack.c.l.s4 1934713408
        %v711 = vunpack.c.0.s8 %v710
        %v712 = vlaneseq
        %v713 = vshrl.u32 %v712, 7
        %v714 = vsub.s32 %v711, %v713
        %v715 = vrot.slane %v707, %v714
        %v717 = vunpack.c.l.s4 1934713408
        %v718 = vunpack.c.0.s8 %v717
        %v719 = vlaneseq
        %v720 = vshrl.u32 %v719, 7
        %v721 = vsub.s32 %v718, %v720
        %v722 = vrot.slane %v708, %v721
        %v723 = vcombine.high %v715, 0
        %v724 = vcombine.high %v722, 0
        %v727 = vpack.i.b16 %v715, %v681
        %v728 = vshrl.u32 %v681, 16
        %v729 = vshrl.u32 %v715, 16
        %v730 = vpack.i.b16 %v729, %v728
        %v733 = vpack.i.b16 %v723, %v689
        %v734 = vshrl.u32 %v689, 16
        %v735 = vshrl.u32 %v723, 16
        %v736 = vpack.i.b16 %v735, %v734
        %v739 = vpack.i.b16 %v722, %v688
        %v740 = vshrl.u32 %v688, 16
        %v741 = vshrl.u32 %v722, 16
        %v742 = vpack.i.b16 %v741, %v740
        %v745 = vpack.i.b16 %v724, %v690
        %v746 = vshrl.u32 %v690, 16
        %v747 = vshrl.u32 %v724, 16
        %v748 = vpack.i.b16 %v747, %v746
        %vm749 = vcmask 15360
        %v751 = vsel %vm749, %v527, 0
        %v754 = vsel %vm749, %v627, 0
        %756 = vmatprep.subr.bf16.mxu0 0
        %757 = vmatpush1.bf16.xpose.msra.mxu0 %v754
        %758 = vmatprep.subr.bf16.mxu0 0
        %759 = vmatpush1.bf16.xpose.msra.mxu0 0
        %760 = vmatprep.subr.bf16.mxu0 0
        %761 = vmatpush1.bf16.xpose.msra.mxu0 0
        %762 = vmatprep.subr.bf16.mxu0 0
        %763 = vmatpush1.bf16.xpose.msra.mxu0 0
        %764 = vmatprep.subr.bf16.mxu0 0
        %765 = vmatpush1.bf16.xpose.msra.mxu0 0
        %766 = vmatprep.subr.bf16.mxu0 0
        %767 = vmatpush1.bf16.xpose.msra.mxu0 0
        %768 = vmatprep.subr.bf16.mxu0 0
        %769 = vmatpush1.bf16.xpose.msra.mxu0 0
        %770 = vmatprep.subr.bf16.mxu0 0
        %771 = vmatpush1.bf16.xpose.msra.mxu0 0
        %772 = vmatprep.subr.bf16.mxu0 0
        %773 = vmatpush1.bf16.xpose.msra.mxu0 0
        %774 = vmatprep.subr.bf16.mxu0 0
        %775 = vmatpush1.bf16.xpose.msra.mxu0 0
        %776 = vmatprep.subr.bf16.mxu0 0
        %777 = vmatpush1.bf16.xpose.msra.mxu0 0
        %778 = vmatprep.subr.bf16.mxu0 0
        %779 = vmatpush1.bf16.xpose.msra.mxu0 0
        %780 = vmatprep.subr.bf16.mxu0 0
        %781 = vmatpush1.bf16.xpose.msra.mxu0 0
        %782 = vmatprep.subr.bf16.mxu0 0
        %783 = vmatpush1.bf16.xpose.msra.mxu0 0
        %784 = vmatprep.subr.bf16.mxu0 0
        %785 = vmatpush1.bf16.xpose.msra.mxu0 0
        %786 = vmatprep.subr.bf16.mxu0 0
        %787 = vmatpush1.bf16.xpose.msra.mxu0 0
        %788 = vmatprep.mubr.bf16.mxu0 0
        %789 = vmatmul.mubr.bf16.gmra.mrb[0].mxu0 %v751
        %v790 = vpop.f32.mrb[0].mxu0
        %v791 = vadd.f32 0.0, %v790
        %v792 = vpop.f32.mrb[0].mxu0
        %v793 = vpop.f32.mrb[0].mxu0
        %v794 = vpop.f32.mrb[0].mxu0
        %795 = vdwg.mxu0
        %v797 = vsel %vm749, %v530, 0
        %v800 = vsel %vm749, %v630, 0
        %802 = vmatprep.subr.bf16.mxu0 0
        %803 = vmatpush1.bf16.xpose.msra.mxu0 %v800
        %804 = vmatprep.subr.bf16.mxu0 0
        %805 = vmatpush1.bf16.xpose.msra.mxu0 0
        %806 = vmatprep.subr.bf16.mxu0 0
        %807 = vmatpush1.bf16.xpose.msra.mxu0 0
        %808 = vmatprep.subr.bf16.mxu0 0
        %809 = vmatpush1.bf16.xpose.msra.mxu0 0
        %810 = vmatprep.subr.bf16.mxu0 0
        %811 = vmatpush1.bf16.xpose.msra.mxu0 0
        %812 = vmatprep.subr.bf16.mxu0 0
        %813 = vmatpush1.bf16.xpose.msra.mxu0 0
        %814 = vmatprep.subr.bf16.mxu0 0
        %815 = vmatpush1.bf16.xpose.msra.mxu0 0
        %816 = vmatprep.subr.bf16.mxu0 0
        %817 = vmatpush1.bf16.xpose.msra.mxu0 0
        %818 = vmatprep.subr.bf16.mxu0 0
        %819 = vmatpush1.bf16.xpose.msra.mxu0 0
        %820 = vmatprep.subr.bf16.mxu0 0
        %821 = vmatpush1.bf16.xpose.msra.mxu0 0
        %822 = vmatprep.subr.bf16.mxu0 0
        %823 = vmatpush1.bf16.xpose.msra.mxu0 0
        %824 = vmatprep.subr.bf16.mxu0 0
        %825 = vmatpush1.bf16.xpose.msra.mxu0 0
        %826 = vmatprep.subr.bf16.mxu0 0
        %827 = vmatpush1.bf16.xpose.msra.mxu0 0
        %828 = vmatprep.subr.bf16.mxu0 0
        %829 = vmatpush1.bf16.xpose.msra.mxu0 0
        %830 = vmatprep.subr.bf16.mxu0 0
        %831 = vmatpush1.bf16.xpose.msra.mxu0 0
        %832 = vmatprep.subr.bf16.mxu0 0
        %833 = vmatpush1.bf16.xpose.msra.mxu0 0
        %834 = vmatprep.mubr.bf16.mxu0 0
        %835 = vmatmul.mubr.bf16.gmra.mrb[0].mxu0 %v797
        %v836 = vpop.f32.mrb[0].mxu0
        %v837 = vadd.f32 0.0, %v836
        %v838 = vpop.f32.mrb[0].mxu0
        %v839 = vpop.f32.mrb[0].mxu0
        %v840 = vpop.f32.mrb[0].mxu0
        %841 = vdwg.mxu0
        %v843 = vsel %vm749, %v533, 0
        %v846 = vsel %vm749, %v633, 0
        %848 = vmatprep.subr.bf16.mxu0 0
        %849 = vmatpush1.bf16.xpose.msra.mxu0 %v846
        %850 = vmatprep.subr.bf16.mxu0 0
        %851 = vmatpush1.bf16.xpose.msra.mxu0 0
        %852 = vmatprep.subr.bf16.mxu0 0
        %853 = vmatpush1.bf16.xpose.msra.mxu0 0
        %854 = vmatprep.subr.bf16.mxu0 0
        %855 = vmatpush1.bf16.xpose.msra.mxu0 0
        %856 = vmatprep.subr.bf16.mxu0 0
        %857 = vmatpush1.bf16.xpose.msra.mxu0 0
        %858 = vmatprep.subr.bf16.mxu0 0
        %859 = vmatpush1.bf16.xpose.msra.mxu0 0
        %860 = vmatprep.subr.bf16.mxu0 0
        %861 = vmatpush1.bf16.xpose.msra.mxu0 0
        %862 = vmatprep.subr.bf16.mxu0 0
        %863 = vmatpush1.bf16.xpose.msra.mxu0 0
        %864 = vmatprep.subr.bf16.mxu0 0
        %865 = vmatpush1.bf16.xpose.msra.mxu0 0
        %866 = vmatprep.subr.bf16.mxu0 0
        %867 = vmatpush1.bf16.xpose.msra.mxu0 0
        %868 = vmatprep.subr.bf16.mxu0 0
        %869 = vmatpush1.bf16.xpose.msra.mxu0 0
        %870 = vmatprep.subr.bf16.mxu0 0
        %871 = vmatpush1.bf16.xpose.msra.mxu0 0
        %872 = vmatprep.subr.bf16.mxu0 0
        %873 = vmatpush1.bf16.xpose.msra.mxu0 0
        %874 = vmatprep.subr.bf16.mxu0 0
        %875 = vmatpush1.bf16.xpose.msra.mxu0 0
        %876 = vmatprep.subr.bf16.mxu0 0
        %877 = vmatpush1.bf16.xpose.msra.mxu0 0
        %878 = vmatprep.subr.bf16.mxu0 0
        %879 = vmatpush1.bf16.xpose.msra.mxu0 0
        %880 = vmatprep.mubr.bf16.mxu0 0
        %881 = vmatmul.mubr.bf16.gmra.mrb[0].mxu0 %v843
        %v882 = vpop.f32.mrb[0].mxu0
        %v883 = vadd.f32 0.0, %v882
        %v884 = vpop.f32.mrb[0].mxu0
        %v885 = vpop.f32.mrb[0].mxu0
        %v886 = vpop.f32.mrb[0].mxu0
        %887 = vdwg.mxu0
        %v889 = vsel %vm749, %v536, 0
        %v892 = vsel %vm749, %v636, 0
        %894 = vmatprep.subr.bf16.mxu0 0
        %895 = vmatpush1.bf16.xpose.msra.mxu0 %v892
        %896 = vmatprep.subr.bf16.mxu0 0
        %897 = vmatpush1.bf16.xpose.msra.mxu0 0
        %898 = vmatprep.subr.bf16.mxu0 0
        %899 = vmatpush1.bf16.xpose.msra.mxu0 0
        %900 = vmatprep.subr.bf16.mxu0 0
        %901 = vmatpush1.bf16.xpose.msra.mxu0 0
        %902 = vmatprep.subr.bf16.mxu0 0
        %903 = vmatpush1.bf16.xpose.msra.mxu0 0
        %904 = vmatprep.subr.bf16.mxu0 0
        %905 = vmatpush1.bf16.xpose.msra.mxu0 0
        %906 = vmatprep.subr.bf16.mxu0 0
        %907 = vmatpush1.bf16.xpose.msra.mxu0 0
        %908 = vmatprep.subr.bf16.mxu0 0
        %909 = vmatpush1.bf16.xpose.msra.mxu0 0
        %910 = vmatprep.subr.bf16.mxu0 0
        %911 = vmatpush1.bf16.xpose.msra.mxu0 0
        %912 = vmatprep.subr.bf16.mxu0 0
        %913 = vmatpush1.bf16.xpose.msra.mxu0 0
        %914 = vmatprep.subr.bf16.mxu0 0
        %915 = vmatpush1.bf16.xpose.msra.mxu0 0
        %916 = vmatprep.subr.bf16.mxu0 0
        %917 = vmatpush1.bf16.xpose.msra.mxu0 0
        %918 = vmatprep.subr.bf16.mxu0 0
        %919 = vmatpush1.bf16.xpose.msra.mxu0 0
        %920 = vmatprep.subr.bf16.mxu0 0
        %921 = vmatpush1.bf16.xpose.msra.mxu0 0
        %922 = vmatprep.subr.bf16.mxu0 0
        %923 = vmatpush1.bf16.xpose.msra.mxu0 0
        %924 = vmatprep.subr.bf16.mxu0 0
        %925 = vmatpush1.bf16.xpose.msra.mxu0 0
        %926 = vmatprep.mubr.bf16.mxu0 0
        %927 = vmatmul.mubr.bf16.gmra.mrb[0].mxu0 %v889
        %v928 = vpop.f32.mrb[0].mxu0
        %v929 = vadd.f32 0.0, %v928
        %v930 = vpop.f32.mrb[0].mxu0
        %v931 = vpop.f32.mrb[0].mxu0
        %v932 = vpop.f32.mrb[0].mxu0
        %933 = vdwg.mxu0
        %v935 = vsel %vm749, %v539, 0
        %v938 = vsel %vm749, %v639, 0
        %940 = vmatprep.subr.bf16.mxu0 0
        %941 = vmatpush1.bf16.xpose.msra.mxu0 %v938
        %942 = vmatprep.subr.bf16.mxu0 0
        %943 = vmatpush1.bf16.xpose.msra.mxu0 0
        %944 = vmatprep.subr.bf16.mxu0 0
        %945 = vmatpush1.bf16.xpose.msra.mxu0 0
        %946 = vmatprep.subr.bf16.mxu0 0
        %947 = vmatpush1.bf16.xpose.msra.mxu0 0
        %948 = vmatprep.subr.bf16.mxu0 0
        %949 = vmatpush1.bf16.xpose.msra.mxu0 0
        %950 = vmatprep.subr.bf16.mxu0 0
        %951 = vmatpush1.bf16.xpose.msra.mxu0 0
        %952 = vmatprep.subr.bf16.mxu0 0
        %953 = vmatpush1.bf16.xpose.msra.mxu0 0
        %954 = vmatprep.subr.bf16.mxu0 0
        %955 = vmatpush1.bf16.xpose.msra.mxu0 0
        %956 = vmatprep.subr.bf16.mxu0 0
        %957 = vmatpush1.bf16.xpose.msra.mxu0 0
        %958 = vmatprep.subr.bf16.mxu0 0
        %959 = vmatpush1.bf16.xpose.msra.mxu0 0
        %960 = vmatprep.subr.bf16.mxu0 0
        %961 = vmatpush1.bf16.xpose.msra.mxu0 0
        %962 = vmatprep.subr.bf16.mxu0 0
        %963 = vmatpush1.bf16.xpose.msra.mxu0 0
        %964 = vmatprep.subr.bf16.mxu0 0
        %965 = vmatpush1.bf16.xpose.msra.mxu0 0
        %966 = vmatprep.subr.bf16.mxu0 0
        %967 = vmatpush1.bf16.xpose.msra.mxu0 0
        %968 = vmatprep.subr.bf16.mxu0 0
        %969 = vmatpush1.bf16.xpose.msra.mxu0 0
        %970 = vmatprep.subr.bf16.mxu0 0
        %971 = vmatpush1.bf16.xpose.msra.mxu0 0
        %972 = vmatprep.mubr.bf16.mxu0 0
        %973 = vmatmul.mubr.bf16.gmra.mrb[0].mxu0 %v935
        %v974 = vpop.f32.mrb[0].mxu0
        %v975 = vadd.f32 0.0, %v974
        %v976 = vpop.f32.mrb[0].mxu0
        %v977 = vpop.f32.mrb[0].mxu0
        %v978 = vpop.f32.mrb[0].mxu0
        %979 = vdwg.mxu0
        %v981 = vsel %vm749, %v542, 0
        %v984 = vsel %vm749, %v642, 0
        %986 = vmatprep.subr.bf16.mxu0 0
        %987 = vmatpush1.bf16.xpose.msra.mxu0 %v984
        %988 = vmatprep.subr.bf16.mxu0 0
        %989 = vmatpush1.bf16.xpose.msra.mxu0 0
        %990 = vmatprep.subr.bf16.mxu0 0
        %991 = vmatpush1.bf16.xpose.msra.mxu0 0
        %992 = vmatprep.subr.bf16.mxu0 0
        %993 = vmatpush1.bf16.xpose.msra.mxu0 0
        %994 = vmatprep.subr.bf16.mxu0 0
        %995 = vmatpush1.bf16.xpose.msra.mxu0 0
        %996 = vmatprep.subr.bf16.mxu0 0
        %997 = vmatpush1.bf16.xpose.msra.mxu0 0
        %998 = vmatprep.subr.bf16.mxu0 0
        %999 = vmatpush1.bf16.xpose.msra.mxu0 0
        %1000 = vmatprep.subr.bf16.mxu0 0
        %1001 = vmatpush1.bf16.xpose.msra.mxu0 0
        %1002 = vmatprep.subr.bf16.mxu0 0
        %1003 = vmatpush1.bf16.xpose.msra.mxu0 0
        %1004 = vmatprep.subr.bf16.mxu0 0
        %1005 = vmatpush1.bf16.xpose.msra.mxu0 0
        %1006 = vmatprep.subr.bf16.mxu0 0
        %1007 = vmatpush1.bf16.xpose.msra.mxu0 0
        %1008 = vmatprep.subr.bf16.mxu0 0
        %1009 = vmatpush1.bf16.xpose.msra.mxu0 0
        %1010 = vmatprep.subr.bf16.mxu0 0
        %1011 = vmatpush1.bf16.xpose.msra.mxu0 0
        %1012 = vmatprep.subr.bf16.mxu0 0
        %1013 = vmatpush1.bf16.xpose.msra.mxu0 0
        %1014 = vmatprep.subr.bf16.mxu0 0
        %1015 = vmatpush1.bf16.xpose.msra.mxu0 0
        %1016 = vmatprep.subr.bf16.mxu0 0
        %1017 = vmatpush1.bf16.xpose.msra.mxu0 0
        %1018 = vmatprep.mubr.bf16.mxu0 0
        %1019 = vmatmul.mubr.bf16.gmra.mrb[0].mxu0 %v981
        %v1020 = vpop.f32.mrb[0].mxu0
        %v1021 = vadd.f32 0.0, %v1020
        %v1022 = vpop.f32.mrb[0].mxu0
        %v1023 = vpop.f32.mrb[0].mxu0
        %v1024 = vpop.f32.mrb[0].mxu0
        %1025 = vdwg.mxu0
        %v1027 = vsel %vm749, %v545, 0
        %v1030 = vsel %vm749, %v645, 0
        %1032 = vmatprep.subr.bf16.mxu0 0
        %1033 = vmatpush1.bf16.xpose.msra.mxu0 %v1030
        %1034 = vmatprep.subr.bf16.mxu0 0
        %1035 = vmatpush1.bf16.xpose.msra.mxu0 0
        %1036 = vmatprep.subr.bf16.mxu0 0
        %1037 = vmatpush1.bf16.xpose.msra.mxu0 0
        %1038 = vmatprep.subr.bf16.mxu0 0
        %1039 = vmatpush1.bf16.xpose.msra.mxu0 0
        %1040 = vmatprep.subr.bf16.mxu0 0
        %1041 = vmatpush1.bf16.xpose.msra.mxu0 0
        %1042 = vmatprep.subr.bf16.mxu0 0
        %1043 = vmatpush1.bf16.xpose.msra.mxu0 0
        %1044 = vmatprep.subr.bf16.mxu0 0
        %1045 = vmatpush1.bf16.xpose.msra.mxu0 0
        %1046 = vmatprep.subr.bf16.mxu0 0
        %1047 = vmatpush1.bf16.xpose.msra.mxu0 0
        %1048 = vmatprep.subr.bf16.mxu0 0
        %1049 = vmatpush1.bf16.xpose.msra.mxu0 0
        %1050 = vmatprep.subr.bf16.mxu0 0
        %1051 = vmatpush1.bf16.xpose.msra.mxu0 0
        %1052 = vmatprep.subr.bf16.mxu0 0
        %1053 = vmatpush1.bf16.xpose.msra.mxu0 0
        %1054 = vmatprep.subr.bf16.mxu0 0
        %1055 = vmatpush1.bf16.xpose.msra.mxu0 0
        %1056 = vmatprep.subr.bf16.mxu0 0
        %1057 = vmatpush1.bf16.xpose.msra.mxu0 0
        %1058 = vmatprep.subr.bf16.mxu0 0
        %1059 = vmatpush1.bf16.xpose.msra.mxu0 0
        %1060 = vmatprep.subr.bf16.mxu0 0
        %1061 = vmatpush1.bf16.xpose.msra.mxu0 0
        %1062 = vmatprep.subr.bf16.mxu0 0
        %1063 = vmatpush1.bf16.xpose.msra.mxu0 0
        %1064 = vmatprep.mubr.bf16.mxu0 0
        %1065 = vmatmul.mubr.bf16.gmra.mrb[0].mxu0 %v1027
        %v1066 = vpop.f32.mrb[0].mxu0
        %v1067 = vadd.f32 0.0, %v1066
        %v1068 = vpop.f32.mrb[0].mxu0
        %v1069 = vpop.f32.mrb[0].mxu0
        %v1070 = vpop.f32.mrb[0].mxu0
        %1071 = vdwg.mxu0
        %v1073 = vsel %vm749, %v548, 0
        %v1076 = vsel %vm749, %v648, 0
        %1078 = vmatprep.subr.bf16.mxu0 0
        %1079 = vmatpush1.bf16.xpose.msra.mxu0 %v1076
        %1080 = vmatprep.subr.bf16.mxu0 0
        %1081 = vmatpush1.bf16.xpose.msra.mxu0 0
        %1082 = vmatprep.subr.bf16.mxu0 0
        %1083 = vmatpush1.bf16.xpose.msra.mxu0 0
        %1084 = vmatprep.subr.bf16.mxu0 0
        %1085 = vmatpush1.bf16.xpose.msra.mxu0 0
        %1086 = vmatprep.subr.bf16.mxu0 0
        %1087 = vmatpush1.bf16.xpose.msra.mxu0 0
        %1088 = vmatprep.subr.bf16.mxu0 0
        %1089 = vmatpush1.bf16.xpose.msra.mxu0 0
        %1090 = vmatprep.subr.bf16.mxu0 0
        %1091 = vmatpush1.bf16.xpose.msra.mxu0 0
        %1092 = vmatprep.subr.bf16.mxu0 0
        %1093 = vmatpush1.bf16.xpose.msra.mxu0 0
        %1094 = vmatprep.subr.bf16.mxu0 0
        %1095 = vmatpush1.bf16.xpose.msra.mxu0 0
        %1096 = vmatprep.subr.bf16.mxu0 0
        %1097 = vmatpush1.bf16.xpose.msra.mxu0 0
        %1098 = vmatprep.subr.bf16.mxu0 0
        %1099 = vmatpush1.bf16.xpose.msra.mxu0 0
        %1100 = vmatprep.subr.bf16.mxu0 0
        %1101 = vmatpush1.bf16.xpose.msra.mxu0 0
        %1102 = vmatprep.subr.bf16.mxu0 0
        %1103 = vmatpush1.bf16.xpose.msra.mxu0 0
        %1104 = vmatprep.subr.bf16.mxu0 0
        %1105 = vmatpush1.bf16.xpose.msra.mxu0 0
        %1106 = vmatprep.subr.bf16.mxu0 0
        %1107 = vmatpush1.bf16.xpose.msra.mxu0 0
        %1108 = vmatprep.subr.bf16.mxu0 0
        %1109 = vmatpush1.bf16.xpose.msra.mxu0 0
        %1110 = vmatprep.mubr.bf16.mxu0 0
        %1111 = vmatmul.mubr.bf16.gmra.mrb[0].mxu0 %v1073
        %v1112 = vpop.f32.mrb[0].mxu0
        %v1113 = vadd.f32 0.0, %v1112
        %v1114 = vpop.f32.mrb[0].mxu0
        %v1115 = vpop.f32.mrb[0].mxu0
        %v1116 = vpop.f32.mrb[0].mxu0
        %1117 = vdwg.mxu0
        %v1118 = vlaneseq
        %v1119 = vshrl.u32 %v1118, 7
        %v1120 = vlaneseq
        %v1121 = vand.u32 %v1120, 127
        %vm1122 = vcmp.eq.s32.totalorder %v1119, %v1121
        %v1123 = vsel %vm1122, 1, 0
        %vm1124 = vcmp.eq.s32.totalorder %v1123, 1
        %v1125 = vsel %vm1124, -1e+30, %v791
        %v1126 = vsel %vm1124, -1e+30, %v837
        %v1127 = vsel %vm1124, -1e+30, %v883
        %v1128 = vsel %vm1124, -1e+30, %v929
        %v1129 = vsel %vm1124, -1e+30, %v975
        %v1130 = vsel %vm1124, -1e+30, %v1021
        %v1131 = vsel %vm1124, -1e+30, %v1067
        %v1132 = vsel %vm1124, -1e+30, %v1113
        %vm1133 = vcmask 64512
        %v1134 = vsel %vm1133, %v1125, -inf
        %1135 = vmax.xlane.f32.xlu0 %v1134
        %v1136 = vpop.xlane.xlu0 %1135
        %v1137 = vsel %vm1133, %v1126, -inf
        %1138 = vmax.xlane.f32.xlu0 %v1137
        %v1139 = vpop.xlane.xlu0 %1138
        %v1140 = vsel %vm1133, %v1127, -inf
        %1141 = vmax.xlane.f32.xlu0 %v1140
        %v1142 = vpop.xlane.xlu0 %1141
        %v1143 = vsel %vm1133, %v1128, -inf
        %1144 = vmax.xlane.f32.xlu0 %v1143
        %v1145 = vpop.xlane.xlu0 %1144
        %v1146 = vsel %vm1133, %v1129, -inf
        %1147 = vmax.xlane.f32.xlu0 %v1146
        %v1148 = vpop.xlane.xlu0 %1147
        %v1149 = vsel %vm1133, %v1130, -inf
        %1150 = vmax.xlane.f32.xlu0 %v1149
        %v1151 = vpop.xlane.xlu0 %1150
        %v1152 = vsel %vm1133, %v1131, -inf
        %1153 = vmax.xlane.f32.xlu0 %v1152
        %v1154 = vpop.xlane.xlu0 %1153
        %v1155 = vsel %vm1133, %v1132, -inf
        %1156 = vmax.xlane.f32.xlu0 %v1155
        %v1157 = vpop.xlane.xlu0 %1156
        %v1158 = vsub.f32 %v1125, %v1136
        %v1159 = vsub.f32 %v1126, %v1139
        %v1160 = vsub.f32 %v1127, %v1142
        %v1161 = vsub.f32 %v1128, %v1145
        %v1162 = vsub.f32 %v1129, %v1148
        %v1163 = vsub.f32 %v1130, %v1151
        %v1164 = vsub.f32 %v1131, %v1154
        %v1165 = vsub.f32 %v1132, %v1157
        %v1166 = vmul.f32 %v1158, 1.442695
        %v1167 = vpow.pop %v1166
        %v1168 = vmul.f32 %v1159, 1.442695
        %v1169 = vpow.pop %v1168
        %v1170 = vmul.f32 %v1160, 1.442695
        %v1171 = vpow.pop %v1170
        %v1172 = vmul.f32 %v1161, 1.442695
        %v1173 = vpow.pop %v1172
        %v1174 = vmul.f32 %v1162, 1.442695
        %v1175 = vpow.pop %v1174
        %v1176 = vmul.f32 %v1163, 1.442695
        %v1177 = vpow.pop %v1176
        %v1178 = vmul.f32 %v1164, 1.442695
        %v1179 = vpow.pop %v1178
        %v1180 = vmul.f32 %v1165, 1.442695
        %v1181 = vpow.pop %v1180
        %v1182 = vsel %vm1133, %v1167, 0.0
        %1183 = vadd.xlane.f32.xlu0 %v1182
        %v1184 = vpop.xlane.xlu0 %1183
        %v1185 = vsel %vm1133, %v1169, 0.0
        %1186 = vadd.xlane.f32.xlu0 %v1185
        %v1187 = vpop.xlane.xlu0 %1186
        %v1188 = vsel %vm1133, %v1171, 0.0
        %1189 = vadd.xlane.f32.xlu0 %v1188
        %v1190 = vpop.xlane.xlu0 %1189
        %v1191 = vsel %vm1133, %v1173, 0.0
        %1192 = vadd.xlane.f32.xlu0 %v1191
        %v1193 = vpop.xlane.xlu0 %1192
        %v1194 = vsel %vm1133, %v1175, 0.0
        %1195 = vadd.xlane.f32.xlu0 %v1194
        %v1196 = vpop.xlane.xlu0 %1195
        %v1197 = vsel %vm1133, %v1177, 0.0
        %1198 = vadd.xlane.f32.xlu0 %v1197
        %v1199 = vpop.xlane.xlu0 %1198
        %v1200 = vsel %vm1133, %v1179, 0.0
        %1201 = vadd.xlane.f32.xlu0 %v1200
        %v1202 = vpop.xlane.xlu0 %1201
        %v1203 = vsel %vm1133, %v1181, 0.0
        %1204 = vadd.xlane.f32.xlu0 %v1203
        %v1205 = vpop.xlane.xlu0 %1204
        %v1206 = vpack.c.bf16 %v1167, %v1167
        %v1207 = vpack.c.bf16 %v1169, %v1169
        %v1208 = vpack.c.bf16 %v1171, %v1171
        %v1209 = vpack.c.bf16 %v1173, %v1173
        %v1210 = vpack.c.bf16 %v1175, %v1175
        %v1211 = vpack.c.bf16 %v1177, %v1177
        %v1212 = vpack.c.bf16 %v1179, %v1179
        %v1213 = vpack.c.bf16 %v1181, %v1181
        %v1215 = vsel %vm1133, %v1206, 0
        %vm1217 = vcmask 1043456
        %v1219 = vsel %vm1217, %v727, 0
        %1221 = vmatprep.subr.bf16.mxu0 0
        %1222 = vmatpush1.bf16.msra.mxu0 %v1219
        %1223 = vmatprep.subr.bf16.mxu0 0
        %1224 = vmatpush1.bf16.msra.mxu0 0
        %1225 = vmatprep.subr.bf16.mxu0 0
        %1226 = vmatpush1.bf16.msra.mxu0 0
        %1227 = vmatprep.subr.bf16.mxu0 0
        %1228 = vmatpush1.bf16.msra.mxu0 0
        %1229 = vmatprep.subr.bf16.mxu0 0
        %1230 = vmatpush1.bf16.msra.mxu0 0
        %1231 = vmatprep.subr.bf16.mxu0 0
        %1232 = vmatpush1.bf16.msra.mxu0 0
        %1233 = vmatprep.subr.bf16.mxu0 0
        %1234 = vmatpush1.bf16.msra.mxu0 0
        %1235 = vmatprep.subr.bf16.mxu0 0
        %1236 = vmatpush1.bf16.msra.mxu0 0
        %1237 = vmatprep.subr.bf16.mxu0 0
        %1238 = vmatpush1.bf16.msra.mxu0 0
        %1239 = vmatprep.subr.bf16.mxu0 0
        %1240 = vmatpush1.bf16.msra.mxu0 0
        %1241 = vmatprep.subr.bf16.mxu0 0
        %1242 = vmatpush1.bf16.msra.mxu0 0
        %1243 = vmatprep.subr.bf16.mxu0 0
        %1244 = vmatpush1.bf16.msra.mxu0 0
        %1245 = vmatprep.subr.bf16.mxu0 0
        %1246 = vmatpush1.bf16.msra.mxu0 0
        %1247 = vmatprep.subr.bf16.mxu0 0
        %1248 = vmatpush1.bf16.msra.mxu0 0
        %1249 = vmatprep.subr.bf16.mxu0 0
        %1250 = vmatpush1.bf16.msra.mxu0 0
        %1251 = vmatprep.subr.bf16.mxu0 0
        %1252 = vmatpush1.bf16.msra.mxu0 0
        %1253 = vmatprep.mubr.bf16.mxu0 0
        %1254 = vmatmul.mubr.bf16.gmra.mrb[0].mxu0 %v1215
        %v1255 = vpop.f32.mrb[0].mxu0
        %v1256 = vadd.f32 0.0, %v1255
        %v1257 = vpop.f32.mrb[0].mxu0
        %v1258 = vpop.f32.mrb[0].mxu0
        %v1259 = vpop.f32.mrb[0].mxu0
        %1260 = vdwg.mxu0
        %v1262 = vsel %vm1133, %v1207, 0
        %v1265 = vsel %vm1217, %v730, 0
        %1267 = vmatprep.subr.bf16.mxu0 0
        %1268 = vmatpush1.bf16.msra.mxu0 %v1265
        %1269 = vmatprep.subr.bf16.mxu0 0
        %1270 = vmatpush1.bf16.msra.mxu0 0
        %1271 = vmatprep.subr.bf16.mxu0 0
        %1272 = vmatpush1.bf16.msra.mxu0 0
        %1273 = vmatprep.subr.bf16.mxu0 0
        %1274 = vmatpush1.bf16.msra.mxu0 0
        %1275 = vmatprep.subr.bf16.mxu0 0
        %1276 = vmatpush1.bf16.msra.mxu0 0
        %1277 = vmatprep.subr.bf16.mxu0 0
        %1278 = vmatpush1.bf16.msra.mxu0 0
        %1279 = vmatprep.subr.bf16.mxu0 0
        %1280 = vmatpush1.bf16.msra.mxu0 0
        %1281 = vmatprep.subr.bf16.mxu0 0
        %1282 = vmatpush1.bf16.msra.mxu0 0
        %1283 = vmatprep.subr.bf16.mxu0 0
        %1284 = vmatpush1.bf16.msra.mxu0 0
        %1285 = vmatprep.subr.bf16.mxu0 0
        %1286 = vmatpush1.bf16.msra.mxu0 0
        %1287 = vmatprep.subr.bf16.mxu0 0
        %1288 = vmatpush1.bf16.msra.mxu0 0
        %1289 = vmatprep.subr.bf16.mxu0 0
        %1290 = vmatpush1.bf16.msra.mxu0 0
        %1291 = vmatprep.subr.bf16.mxu0 0
        %1292 = vmatpush1.bf16.msra.mxu0 0
        %1293 = vmatprep.subr.bf16.mxu0 0
        %1294 = vmatpush1.bf16.msra.mxu0 0
        %1295 = vmatprep.subr.bf16.mxu0 0
        %1296 = vmatpush1.bf16.msra.mxu0 0
        %1297 = vmatprep.subr.bf16.mxu0 0
        %1298 = vmatpush1.bf16.msra.mxu0 0
        %1299 = vmatprep.mubr.bf16.mxu0 0
        %1300 = vmatmul.mubr.bf16.gmra.mrb[0].mxu0 %v1262
        %v1301 = vpop.f32.mrb[0].mxu0
        %v1302 = vadd.f32 0.0, %v1301
        %v1303 = vpop.f32.mrb[0].mxu0
        %v1304 = vpop.f32.mrb[0].mxu0
        %v1305 = vpop.f32.mrb[0].mxu0
        %1306 = vdwg.mxu0
        %v1308 = vsel %vm1133, %v1208, 0
        %v1311 = vsel %vm1217, %v733, 0
        %1313 = vmatprep.subr.bf16.mxu0 0
        %1314 = vmatpush1.bf16.msra.mxu0 %v1311
        %1315 = vmatprep.subr.bf16.mxu0 0
        %1316 = vmatpush1.bf16.msra.mxu0 0
        %1317 = vmatprep.subr.bf16.mxu0 0
        %1318 = vmatpush1.bf16.msra.mxu0 0
        %1319 = vmatprep.subr.bf16.mxu0 0
        %1320 = vmatpush1.bf16.msra.mxu0 0
        %1321 = vmatprep.subr.bf16.mxu0 0
        %1322 = vmatpush1.bf16.msra.mxu0 0
        %1323 = vmatprep.subr.bf16.mxu0 0
        %1324 = vmatpush1.bf16.msra.mxu0 0
        %1325 = vmatprep.subr.bf16.mxu0 0
        %1326 = vmatpush1.bf16.msra.mxu0 0
        %1327 = vmatprep.subr.bf16.mxu0 0
        %1328 = vmatpush1.bf16.msra.mxu0 0
        %1329 = vmatprep.subr.bf16.mxu0 0
        %1330 = vmatpush1.bf16.msra.mxu0 0
        %1331 = vmatprep.subr.bf16.mxu0 0
        %1332 = vmatpush1.bf16.msra.mxu0 0
        %1333 = vmatprep.subr.bf16.mxu0 0
        %1334 = vmatpush1.bf16.msra.mxu0 0
        %1335 = vmatprep.subr.bf16.mxu0 0
        %1336 = vmatpush1.bf16.msra.mxu0 0
        %1337 = vmatprep.subr.bf16.mxu0 0
        %1338 = vmatpush1.bf16.msra.mxu0 0
        %1339 = vmatprep.subr.bf16.mxu0 0
        %1340 = vmatpush1.bf16.msra.mxu0 0
        %1341 = vmatprep.subr.bf16.mxu0 0
        %1342 = vmatpush1.bf16.msra.mxu0 0
        %1343 = vmatprep.subr.bf16.mxu0 0
        %1344 = vmatpush1.bf16.msra.mxu0 0
        %1345 = vmatprep.mubr.bf16.mxu0 0
        %1346 = vmatmul.mubr.bf16.gmra.mrb[0].mxu0 %v1308
        %v1347 = vpop.f32.mrb[0].mxu0
        %v1348 = vadd.f32 0.0, %v1347
        %v1349 = vpop.f32.mrb[0].mxu0
        %v1350 = vpop.f32.mrb[0].mxu0
        %v1351 = vpop.f32.mrb[0].mxu0
        %1352 = vdwg.mxu0
        %v1354 = vsel %vm1133, %v1209, 0
        %v1357 = vsel %vm1217, %v736, 0
        %1359 = vmatprep.subr.bf16.mxu0 0
        %1360 = vmatpush1.bf16.msra.mxu0 %v1357
        %1361 = vmatprep.subr.bf16.mxu0 0
        %1362 = vmatpush1.bf16.msra.mxu0 0
        %1363 = vmatprep.subr.bf16.mxu0 0
        %1364 = vmatpush1.bf16.msra.mxu0 0
        %1365 = vmatprep.subr.bf16.mxu0 0
        %1366 = vmatpush1.bf16.msra.mxu0 0
        %1367 = vmatprep.subr.bf16.mxu0 0
        %1368 = vmatpush1.bf16.msra.mxu0 0
        %1369 = vmatprep.subr.bf16.mxu0 0
        %1370 = vmatpush1.bf16.msra.mxu0 0
        %1371 = vmatprep.subr.bf16.mxu0 0
        %1372 = vmatpush1.bf16.msra.mxu0 0
        %1373 = vmatprep.subr.bf16.mxu0 0
        %1374 = vmatpush1.bf16.msra.mxu0 0
        %1375 = vmatprep.subr.bf16.mxu0 0
        %1376 = vmatpush1.bf16.msra.mxu0 0
        %1377 = vmatprep.subr.bf16.mxu0 0
        %1378 = vmatpush1.bf16.msra.mxu0 0
        %1379 = vmatprep.subr.bf16.mxu0 0
        %1380 = vmatpush1.bf16.msra.mxu0 0
        %1381 = vmatprep.subr.bf16.mxu0 0
        %1382 = vmatpush1.bf16.msra.mxu0 0
        %1383 = vmatprep.subr.bf16.mxu0 0
        %1384 = vmatpush1.bf16.msra.mxu0 0
        %1385 = vmatprep.subr.bf16.mxu0 0
        %1386 = vmatpush1.bf16.msra.mxu0 0
        %1387 = vmatprep.subr.bf16.mxu0 0
        %1388 = vmatpush1.bf16.msra.mxu0 0
        %1389 = vmatprep.subr.bf16.mxu0 0
        %1390 = vmatpush1.bf16.msra.mxu0 0
        %1391 = vmatprep.mubr.bf16.mxu0 0
        %1392 = vmatmul.mubr.bf16.gmra.mrb[0].mxu0 %v1354
        %v1393 = vpop.f32.mrb[0].mxu0
        %v1394 = vadd.f32 0.0, %v1393
        %v1395 = vpop.f32.mrb[0].mxu0
        %v1396 = vpop.f32.mrb[0].mxu0
        %v1397 = vpop.f32.mrb[0].mxu0
        %1398 = vdwg.mxu0
        %v1400 = vsel %vm1133, %v1210, 0
        %v1403 = vsel %vm1217, %v739, 0
        %1405 = vmatprep.subr.bf16.mxu0 0
        %1406 = vmatpush1.bf16.msra.mxu0 %v1403
        %1407 = vmatprep.subr.bf16.mxu0 0
        %1408 = vmatpush1.bf16.msra.mxu0 0
        %1409 = vmatprep.subr.bf16.mxu0 0
        %1410 = vmatpush1.bf16.msra.mxu0 0
        %1411 = vmatprep.subr.bf16.mxu0 0
        %1412 = vmatpush1.bf16.msra.mxu0 0
        %1413 = vmatprep.subr.bf16.mxu0 0
        %1414 = vmatpush1.bf16.msra.mxu0 0
        %1415 = vmatprep.subr.bf16.mxu0 0
        %1416 = vmatpush1.bf16.msra.mxu0 0
        %1417 = vmatprep.subr.bf16.mxu0 0
        %1418 = vmatpush1.bf16.msra.mxu0 0
        %1419 = vmatprep.subr.bf16.mxu0 0
        %1420 = vmatpush1.bf16.msra.mxu0 0
        %1421 = vmatprep.subr.bf16.mxu0 0
        %1422 = vmatpush1.bf16.msra.mxu0 0
        %1423 = vmatprep.subr.bf16.mxu0 0
        %1424 = vmatpush1.bf16.msra.mxu0 0
        %1425 = vmatprep.subr.bf16.mxu0 0
        %1426 = vmatpush1.bf16.msra.mxu0 0
        %1427 = vmatprep.subr.bf16.mxu0 0
        %1428 = vmatpush1.bf16.msra.mxu0 0
        %1429 = vmatprep.subr.bf16.mxu0 0
        %1430 = vmatpush1.bf16.msra.mxu0 0
        %1431 = vmatprep.subr.bf16.mxu0 0
        %1432 = vmatpush1.bf16.msra.mxu0 0
        %1433 = vmatprep.subr.bf16.mxu0 0
        %1434 = vmatpush1.bf16.msra.mxu0 0
        %1435 = vmatprep.subr.bf16.mxu0 0
        %1436 = vmatpush1.bf16.msra.mxu0 0
        %1437 = vmatprep.mubr.bf16.mxu0 0
        %1438 = vmatmul.mubr.bf16.gmra.mrb[0].mxu0 %v1400
        %v1439 = vpop.f32.mrb[0].mxu0
        %v1440 = vadd.f32 0.0, %v1439
        %v1441 = vpop.f32.mrb[0].mxu0
        %v1442 = vpop.f32.mrb[0].mxu0
        %v1443 = vpop.f32.mrb[0].mxu0
        %1444 = vdwg.mxu0
        %v1446 = vsel %vm1133, %v1211, 0
        %v1449 = vsel %vm1217, %v742, 0
        %1451 = vmatprep.subr.bf16.mxu0 0
        %1452 = vmatpush1.bf16.msra.mxu0 %v1449
        %1453 = vmatprep.subr.bf16.mxu0 0
        %1454 = vmatpush1.bf16.msra.mxu0 0
        %1455 = vmatprep.subr.bf16.mxu0 0
        %1456 = vmatpush1.bf16.msra.mxu0 0
        %1457 = vmatprep.subr.bf16.mxu0 0
        %1458 = vmatpush1.bf16.msra.mxu0 0
        %1459 = vmatprep.subr.bf16.mxu0 0
        %1460 = vmatpush1.bf16.msra.mxu0 0
        %1461 = vmatprep.subr.bf16.mxu0 0
        %1462 = vmatpush1.bf16.msra.mxu0 0
        %1463 = vmatprep.subr.bf16.mxu0 0
        %1464 = vmatpush1.bf16.msra.mxu0 0
        %1465 = vmatprep.subr.bf16.mxu0 0
        %1466 = vmatpush1.bf16.msra.mxu0 0
        %1467 = vmatprep.subr.bf16.mxu0 0
        %1468 = vmatpush1.bf16.msra.mxu0 0
        %1469 = vmatprep.subr.bf16.mxu0 0
        %1470 = vmatpush1.bf16.msra.mxu0 0
        %1471 = vmatprep.subr.bf16.mxu0 0
        %1472 = vmatpush1.bf16.msra.mxu0 0
        %1473 = vmatprep.subr.bf16.mxu0 0
        %1474 = vmatpush1.bf16.msra.mxu0 0
        %1475 = vmatprep.subr.bf16.mxu0 0
        %1476 = vmatpush1.bf16.msra.mxu0 0
        %1477 = vmatprep.subr.bf16.mxu0 0
        %1478 = vmatpush1.bf16.msra.mxu0 0
        %1479 = vmatprep.subr.bf16.mxu0 0
        %1480 = vmatpush1.bf16.msra.mxu0 0
        %1481 = vmatprep.subr.bf16.mxu0 0
        %1482 = vmatpush1.bf16.msra.mxu0 0
        %1483 = vmatprep.mubr.bf16.mxu0 0
        %1484 = vmatmul.mubr.bf16.gmra.mrb[0].mxu0 %v1446
        %v1485 = vpop.f32.mrb[0].mxu0
        %v1486 = vadd.f32 0.0, %v1485
        %v1487 = vpop.f32.mrb[0].mxu0
        %v1488 = vpop.f32.mrb[0].mxu0
        %v1489 = vpop.f32.mrb[0].mxu0
        %1490 = vdwg.mxu0
        %v1492 = vsel %vm1133, %v1212, 0
        %v1495 = vsel %vm1217, %v745, 0
        %1497 = vmatprep.subr.bf16.mxu0 0
        %1498 = vmatpush1.bf16.msra.mxu0 %v1495
        %1499 = vmatprep.subr.bf16.mxu0 0
        %1500 = vmatpush1.bf16.msra.mxu0 0
        %1501 = vmatprep.subr.bf16.mxu0 0
        %1502 = vmatpush1.bf16.msra.mxu0 0
        %1503 = vmatprep.subr.bf16.mxu0 0
        %1504 = vmatpush1.bf16.msra.mxu0 0
        %1505 = vmatprep.subr.bf16.mxu0 0
        %1506 = vmatpush1.bf16.msra.mxu0 0
        %1507 = vmatprep.subr.bf16.mxu0 0
        %1508 = vmatpush1.bf16.msra.mxu0 0
        %1509 = vmatprep.subr.bf16.mxu0 0
        %1510 = vmatpush1.bf16.msra.mxu0 0
        %1511 = vmatprep.subr.bf16.mxu0 0
        %1512 = vmatpush1.bf16.msra.mxu0 0
        %1513 = vmatprep.subr.bf16.mxu0 0
        %1514 = vmatpush1.bf16.msra.mxu0 0
        %1515 = vmatprep.subr.bf16.mxu0 0
        %1516 = vmatpush1.bf16.msra.mxu0 0
        %1517 = vmatprep.subr.bf16.mxu0 0
        %1518 = vmatpush1.bf16.msra.mxu0 0
        %1519 = vmatprep.subr.bf16.mxu0 0
        %1520 = vmatpush1.bf16.msra.mxu0 0
        %1521 = vmatprep.subr.bf16.mxu0 0
        %1522 = vmatpush1.bf16.msra.mxu0 0
        %1523 = vmatprep.subr.bf16.mxu0 0
        %1524 = vmatpush1.bf16.msra.mxu0 0
        %1525 = vmatprep.subr.bf16.mxu0 0
        %1526 = vmatpush1.bf16.msra.mxu0 0
        %1527 = vmatprep.subr.bf16.mxu0 0
        %1528 = vmatpush1.bf16.msra.mxu0 0
        %1529 = vmatprep.mubr.bf16.mxu0 0
        %1530 = vmatmul.mubr.bf16.gmra.mrb[0].mxu0 %v1492
        %v1531 = vpop.f32.mrb[0].mxu0
        %v1532 = vadd.f32 0.0, %v1531
        %v1533 = vpop.f32.mrb[0].mxu0
        %v1534 = vpop.f32.mrb[0].mxu0
        %v1535 = vpop.f32.mrb[0].mxu0
        %1536 = vdwg.mxu0
        %v1538 = vsel %vm1133, %v1213, 0
        %v1541 = vsel %vm1217, %v748, 0
        %1543 = vmatprep.subr.bf16.mxu0 0
        %1544 = vmatpush1.bf16.msra.mxu0 %v1541
        %1545 = vmatprep.subr.bf16.mxu0 0
        %1546 = vmatpush1.bf16.msra.mxu0 0
        %1547 = vmatprep.subr.bf16.mxu0 0
        %1548 = vmatpush1.bf16.msra.mxu0 0
        %1549 = vmatprep.subr.bf16.mxu0 0
        %1550 = vmatpush1.bf16.msra.mxu0 0
        %1551 = vmatprep.subr.bf16.mxu0 0
        %1552 = vmatpush1.bf16.msra.mxu0 0
        %1553 = vmatprep.subr.bf16.mxu0 0
        %1554 = vmatpush1.bf16.msra.mxu0 0
        %1555 = vmatprep.subr.bf16.mxu0 0
        %1556 = vmatpush1.bf16.msra.mxu0 0
        %1557 = vmatprep.subr.bf16.mxu0 0
        %1558 = vmatpush1.bf16.msra.mxu0 0
        %1559 = vmatprep.subr.bf16.mxu0 0
        %1560 = vmatpush1.bf16.msra.mxu0 0
        %1561 = vmatprep.subr.bf16.mxu0 0
        %1562 = vmatpush1.bf16.msra.mxu0 0
        %1563 = vmatprep.subr.bf16.mxu0 0
        %1564 = vmatpush1.bf16.msra.mxu0 0
        %1565 = vmatprep.subr.bf16.mxu0 0
        %1566 = vmatpush1.bf16.msra.mxu0 0
        %1567 = vmatprep.subr.bf16.mxu0 0
        %1568 = vmatpush1.bf16.msra.mxu0 0
        %1569 = vmatprep.subr.bf16.mxu0 0
        %1570 = vmatpush1.bf16.msra.mxu0 0
        %1571 = vmatprep.subr.bf16.mxu0 0
        %1572 = vmatpush1.bf16.msra.mxu0 0
        %1573 = vmatprep.subr.bf16.mxu0 0
        %1574 = vmatpush1.bf16.msra.mxu0 0
        %1575 = vmatprep.mubr.bf16.mxu0 0
        %1576 = vmatmul.mubr.bf16.gmra.mrb[0].mxu0 %v1538
        %v1577 = vpop.f32.mrb[0].mxu0
        %v1578 = vadd.f32 0.0, %v1577
        %v1579 = vpop.f32.mrb[0].mxu0
        %v1580 = vpop.f32.mrb[0].mxu0
        %v1581 = vpop.f32.mrb[0].mxu0
        %1582 = vdwg.mxu0
        %v1583 = vcombine.low %v1256, %v1348
        %v1584 = vcombine.high %v1256, %v1348
        %v1586 = vunpack.c.l.s4 1983009808
        %v1587 = vunpack.c.0.s8 %v1586
        %v1588 = vlaneseq
        %v1589 = vshrl.u32 %v1588, 7
        %v1590 = vsub.s32 %v1587, %v1589
        %v1591 = vrot.slane %v1583, %v1590
        %v1593 = vunpack.c.l.s4 1983009808
        %v1594 = vunpack.c.0.s8 %v1593
        %v1595 = vlaneseq
        %v1596 = vshrl.u32 %v1595, 7
        %v1597 = vsub.s32 %v1594, %v1596
        %v1598 = vrot.slane %v1584, %v1597
        %v1599 = vcombine.low %v1302, %v1394
        %v1600 = vcombine.high %v1302, %v1394
        %v1602 = vunpack.c.l.s4 1983009808
        %v1603 = vunpack.c.0.s8 %v1602
        %v1604 = vlaneseq
        %v1605 = vshrl.u32 %v1604, 7
        %v1606 = vsub.s32 %v1603, %v1605
        %v1607 = vrot.slane %v1599, %v1606
        %v1609 = vunpack.c.l.s4 1983009808
        %v1610 = vunpack.c.0.s8 %v1609
        %v1611 = vlaneseq
        %v1612 = vshrl.u32 %v1611, 7
        %v1613 = vsub.s32 %v1610, %v1612
        %v1614 = vrot.slane %v1600, %v1613
        %v1615 = vcombine.low %v1440, %v1532
        %v1616 = vcombine.high %v1440, %v1532
        %v1618 = vunpack.c.l.s4 1983009808
        %v1619 = vunpack.c.0.s8 %v1618
        %v1620 = vlaneseq
        %v1621 = vshrl.u32 %v1620, 7
        %v1622 = vsub.s32 %v1619, %v1621
        %v1623 = vrot.slane %v1615, %v1622
        %v1625 = vunpack.c.l.s4 1983009808
        %v1626 = vunpack.c.0.s8 %v1625
        %v1627 = vlaneseq
        %v1628 = vshrl.u32 %v1627, 7
        %v1629 = vsub.s32 %v1626, %v1628
        %v1630 = vrot.slane %v1616, %v1629
        %v1631 = vcombine.low %v1486, %v1578
        %v1632 = vcombine.high %v1486, %v1578
        %v1634 = vunpack.c.l.s4 1983009808
        %v1635 = vunpack.c.0.s8 %v1634
        %v1636 = vlaneseq
        %v1637 = vshrl.u32 %v1636, 7
        %v1638 = vsub.s32 %v1635, %v1637
        %v1639 = vrot.slane %v1631, %v1638
        %v1641 = vunpack.c.l.s4 1983009808
        %v1642 = vunpack.c.0.s8 %v1641
        %v1643 = vlaneseq
        %v1644 = vshrl.u32 %v1643, 7
        %v1645 = vsub.s32 %v1642, %v1644
        %v1646 = vrot.slane %v1632, %v1645
        %v1647 = vcombine.low %v1591, %v1607
        %v1648 = vcombine.high %v1591, %v1607
        %v1650 = vunpack.c.l.s4 1934713408
        %v1651 = vunpack.c.0.s8 %v1650
        %v1652 = vlaneseq
        %v1653 = vshrl.u32 %v1652, 7
        %v1654 = vsub.s32 %v1651, %v1653
        %v1655 = vrot.slane %v1647, %v1654
        %v1657 = vunpack.c.l.s4 1934713408
        %v1658 = vunpack.c.0.s8 %v1657
        %v1659 = vlaneseq
        %v1660 = vshrl.u32 %v1659, 7
        %v1661 = vsub.s32 %v1658, %v1660
        %v1662 = vrot.slane %v1648, %v1661
        %v1663 = vcombine.low %v1598, %v1614
        %v1664 = vcombine.high %v1598, %v1614
        %v1666 = vunpack.c.l.s4 1934713408
        %v1667 = vunpack.c.0.s8 %v1666
        %v1668 = vlaneseq
        %v1669 = vshrl.u32 %v1668, 7
        %v1670 = vsub.s32 %v1667, %v1669
        %v1671 = vrot.slane %v1663, %v1670
        %v1673 = vunpack.c.l.s4 1934713408
        %v1674 = vunpack.c.0.s8 %v1673
        %v1675 = vlaneseq
        %v1676 = vshrl.u32 %v1675, 7
        %v1677 = vsub.s32 %v1674, %v1676
        %v1678 = vrot.slane %v1664, %v1677
        %v1679 = vcombine.low %v1623, %v1639
        %v1680 = vcombine.high %v1623, %v1639
        %v1682 = vunpack.c.l.s4 1934713408
        %v1683 = vunpack.c.0.s8 %v1682
        %v1684 = vlaneseq
        %v1685 = vshrl.u32 %v1684, 7
        %v1686 = vsub.s32 %v1683, %v1685
        %v1687 = vrot.slane %v1679, %v1686
        %v1689 = vunpack.c.l.s4 1934713408
        %v1690 = vunpack.c.0.s8 %v1689
        %v1691 = vlaneseq
        %v1692 = vshrl.u32 %v1691, 7
        %v1693 = vsub.s32 %v1690, %v1692
        %v1694 = vrot.slane %v1680, %v1693
        %v1695 = vcombine.low %v1630, %v1646
        %v1696 = vcombine.high %v1630, %v1646
        %v1698 = vunpack.c.l.s4 1934713408
        %v1699 = vunpack.c.0.s8 %v1698
        %v1700 = vlaneseq
        %v1701 = vshrl.u32 %v1700, 7
        %v1702 = vsub.s32 %v1699, %v1701
        %v1703 = vrot.slane %v1695, %v1702
        %v1705 = vunpack.c.l.s4 1934713408
        %v1706 = vunpack.c.0.s8 %v1705
        %v1707 = vlaneseq
        %v1708 = vshrl.u32 %v1707, 7
        %v1709 = vsub.s32 %v1706, %v1708
        %v1710 = vrot.slane %v1696, %v1709
        %v1711 = vcombine.low %v1655, %v1687
        %v1712 = vcombine.high %v1655, %v1687
        %v1713 = vcombine.low %v1662, %v1694
        %v1714 = vcombine.high %v1662, %v1694
        %v1715 = vcombine.low %v1671, %v1703
        %v1716 = vcombine.high %v1671, %v1703
        %v1717 = vcombine.low %v1678, %v1710
        %v1718 = vcombine.high %v1678, %v1710
        %vm1719 = vcmask 7168
        %v1720 = vsel %vm1719, %v1136, %v1184
        %v1721 = vsel %vm1719, %v1139, %v1187
        %v1722 = vsel %vm1719, %v1142, %v1190
        %v1723 = vsel %vm1719, %v1145, %v1193
        %v1724 = vsel %vm1719, %v1148, %v1196
        %v1725 = vsel %vm1719, %v1151, %v1199
        %v1726 = vsel %vm1719, %v1154, %v1202
        %v1727 = vsel %vm1719, %v1157, %v1205
        %v1728 = vcombine.low %v1720, %v1722
        %v1729 = vcombine.high %v1720, %v1722
        %v1731 = vunpack.c.l.s4 1983009808
        %v1732 = vunpack.c.0.s8 %v1731
        %v1733 = vlaneseq
        %v1734 = vshrl.u32 %v1733, 7
        %v1735 = vsub.s32 %v1732, %v1734
        %v1736 = vrot.slane %v1728, %v1735
        %v1738 = vunpack.c.l.s4 1983009808
        %v1739 = vunpack.c.0.s8 %v1738
        %v1740 = vlaneseq
        %v1741 = vshrl.u32 %v1740, 7
        %v1742 = vsub.s32 %v1739, %v1741
        %v1743 = vrot.slane %v1729, %v1742
        %v1744 = vcombine.low %v1721, %v1723
        %v1745 = vcombine.high %v1721, %v1723
        %v1747 = vunpack.c.l.s4 1983009808
        %v1748 = vunpack.c.0.s8 %v1747
        %v1749 = vlaneseq
        %v1750 = vshrl.u32 %v1749, 7
        %v1751 = vsub.s32 %v1748, %v1750
        %v1752 = vrot.slane %v1744, %v1751
        %v1754 = vunpack.c.l.s4 1983009808
        %v1755 = vunpack.c.0.s8 %v1754
        %v1756 = vlaneseq
        %v1757 = vshrl.u32 %v1756, 7
        %v1758 = vsub.s32 %v1755, %v1757
        %v1759 = vrot.slane %v1745, %v1758
        %v1760 = vcombine.low %v1724, %v1726
        %v1761 = vcombine.high %v1724, %v1726
        %v1763 = vunpack.c.l.s4 1983009808
        %v1764 = vunpack.c.0.s8 %v1763
        %v1765 = vlaneseq
        %v1766 = vshrl.u32 %v1765, 7
        %v1767 = vsub.s32 %v1764, %v1766
        %v1768 = vrot.slane %v1760, %v1767
        %v1770 = vunpack.c.l.s4 1983009808
        %v1771 = vunpack.c.0.s8 %v1770
        %v1772 = vlaneseq
        %v1773 = vshrl.u32 %v1772, 7
        %v1774 = vsub.s32 %v1771, %v1773
        %v1775 = vrot.slane %v1761, %v1774
        %v1776 = vcombine.low %v1725, %v1727
        %v1777 = vcombine.high %v1725, %v1727
        %v1779 = vunpack.c.l.s4 1983009808
        %v1780 = vunpack.c.0.s8 %v1779
        %v1781 = vlaneseq
        %v1782 = vshrl.u32 %v1781, 7
        %v1783 = vsub.s32 %v1780, %v1782
        %v1784 = vrot.slane %v1776, %v1783
        %v1786 = vunpack.c.l.s4 1983009808
        %v1787 = vunpack.c.0.s8 %v1786
        %v1788 = vlaneseq
        %v1789 = vshrl.u32 %v1788, 7
        %v1790 = vsub.s32 %v1787, %v1789
        %v1791 = vrot.slane %v1777, %v1790
        %v1792 = vcombine.low %v1736, %v1752
        %v1793 = vcombine.high %v1736, %v1752
        %v1795 = vunpack.c.l.s4 1934713408
        %v1796 = vunpack.c.0.s8 %v1795
        %v1797 = vlaneseq
        %v1798 = vshrl.u32 %v1797, 7
        %v1799 = vsub.s32 %v1796, %v1798
        %v1800 = vrot.slane %v1792, %v1799
        %v1802 = vunpack.c.l.s4 1934713408
        %v1803 = vunpack.c.0.s8 %v1802
        %v1804 = vlaneseq
        %v1805 = vshrl.u32 %v1804, 7
        %v1806 = vsub.s32 %v1803, %v1805
        %v1807 = vrot.slane %v1793, %v1806
        %v1808 = vcombine.low %v1743, %v1759
        %v1809 = vcombine.high %v1743, %v1759
        %v1811 = vunpack.c.l.s4 1934713408
        %v1812 = vunpack.c.0.s8 %v1811
        %v1813 = vlaneseq
        %v1814 = vshrl.u32 %v1813, 7
        %v1815 = vsub.s32 %v1812, %v1814
        %v1816 = vrot.slane %v1808, %v1815
        %v1818 = vunpack.c.l.s4 1934713408
        %v1819 = vunpack.c.0.s8 %v1818
        %v1820 = vlaneseq
        %v1821 = vshrl.u32 %v1820, 7
        %v1822 = vsub.s32 %v1819, %v1821
        %v1823 = vrot.slane %v1809, %v1822
        %v1824 = vcombine.low %v1768, %v1784
        %v1825 = vcombine.high %v1768, %v1784
        %v1827 = vunpack.c.l.s4 1934713408
        %v1828 = vunpack.c.0.s8 %v1827
        %v1829 = vlaneseq
        %v1830 = vshrl.u32 %v1829, 7
        %v1831 = vsub.s32 %v1828, %v1830
        %v1832 = vrot.slane %v1824, %v1831
        %v1834 = vunpack.c.l.s4 1934713408
        %v1835 = vunpack.c.0.s8 %v1834
        %v1836 = vlaneseq
        %v1837 = vshrl.u32 %v1836, 7
        %v1838 = vsub.s32 %v1835, %v1837
        %v1839 = vrot.slane %v1825, %v1838
        %v1840 = vcombine.low %v1775, %v1791
        %v1841 = vcombine.high %v1775, %v1791
        %v1843 = vunpack.c.l.s4 1934713408
        %v1844 = vunpack.c.0.s8 %v1843
        %v1845 = vlaneseq
        %v1846 = vshrl.u32 %v1845, 7
        %v1847 = vsub.s32 %v1844, %v1846
        %v1848 = vrot.slane %v1840, %v1847
        %v1850 = vunpack.c.l.s4 1934713408
        %v1851 = vunpack.c.0.s8 %v1850
        %v1852 = vlaneseq
        %v1853 = vshrl.u32 %v1852, 7
        %v1854 = vsub.s32 %v1851, %v1853
        %v1855 = vrot.slane %v1841, %v1854
        %v1856 = vcombine.low %v1800, %v1832
        %v1857 = vcombine.high %v1800, %v1832
        %v1858 = vcombine.low %v1807, %v1839
        %v1859 = vcombine.high %v1807, %v1839
        %v1860 = vcombine.low %v1816, %v1848
        %v1861 = vcombine.high %v1816, %v1848
        %v1862 = vcombine.low %v1823, %v1855
        %v1863 = vcombine.high %v1823, %v1855
        %v1864 = vld [vmem:[%s363] sm:$0xf]
        %v1865 = vld [vmem:[%s363 + $0x4] sm:$0xf]
        %v1866 = vld [vmem:[%s363 + $0x8] sm:$0xf]
        %v1867 = vld [vmem:[%s363 + $0xc] sm:$0xf]
        %v1868 = vld [vmem:[%s363 + $0x10] sm:$0xf]
        %v1869 = vld [vmem:[%s363 + $0x14] sm:$0xf]
        %v1870 = vld [vmem:[%s363 + $0x18] sm:$0xf]
        %v1871 = vld [vmem:[%s363 + $0x1c] sm:$0xf]
        %v1872 = vld [vmem:[%s390] sm:$0xf]
        %v1873 = vld [vmem:[%s390 + $0x4] sm:$0xf]
        %v1874 = vld [vmem:[%s390 + $0x8] sm:$0xf]
        %v1875 = vld [vmem:[%s390 + $0xc] sm:$0xf]
        %v1876 = vld [vmem:[%s390 + $0x10] sm:$0xf]
        %v1877 = vld [vmem:[%s390 + $0x14] sm:$0xf]
        %v1878 = vld [vmem:[%s390 + $0x18] sm:$0xf]
        %v1879 = vld [vmem:[%s390 + $0x1c] sm:$0xf]
        %v1880 = vld [vmem:[%s399] sm:$0xf]
        %v1881 = vld [vmem:[%s399 + $0x4] sm:$0xf]
        %v1882 = vld [vmem:[%s399 + $0x8] sm:$0xf]
        %v1883 = vld [vmem:[%s399 + $0xc] sm:$0xf]
        %v1884 = vld [vmem:[%s399 + $0x10] sm:$0xf]
        %v1885 = vld [vmem:[%s399 + $0x14] sm:$0xf]
        %v1886 = vld [vmem:[%s399 + $0x18] sm:$0xf]
        %v1887 = vld [vmem:[%s399 + $0x1c] sm:$0xf]
        %v1889 = vsel %vm749, %v1864, 0
        %v1892 = vsel %vm749, %v1872, 0
        %1894 = vmatprep.subr.bf16.mxu0 0
        %1895 = vmatpush1.bf16.xpose.msra.mxu0 %v1892
        %1896 = vmatprep.subr.bf16.mxu0 0
        %1897 = vmatpush1.bf16.xpose.msra.mxu0 0
        %1898 = vmatprep.subr.bf16.mxu0 0
        %1899 = vmatpush1.bf16.xpose.msra.mxu0 0
        %1900 = vmatprep.subr.bf16.mxu0 0
        %1901 = vmatpush1.bf16.xpose.msra.mxu0 0
        %1902 = vmatprep.subr.bf16.mxu0 0
        %1903 = vmatpush1.bf16.xpose.msra.mxu0 0
        %1904 = vmatprep.subr.bf16.mxu0 0
        %1905 = vmatpush1.bf16.xpose.msra.mxu0 0
        %1906 = vmatprep.subr.bf16.mxu0 0
        %1907 = vmatpush1.bf16.xpose.msra.mxu0 0
        %1908 = vmatprep.subr.bf16.mxu0 0
        %1909 = vmatpush1.bf16.xpose.msra.mxu0 0
        %1910 = vmatprep.subr.bf16.mxu0 0
        %1911 = vmatpush1.bf16.xpose.msra.mxu0 0
        %1912 = vmatprep.subr.bf16.mxu0 0
        %1913 = vmatpush1.bf16.xpose.msra.mxu0 0
        %1914 = vmatprep.subr.bf16.mxu0 0
        %1915 = vmatpush1.bf16.xpose.msra.mxu0 0
        %1916 = vmatprep.subr.bf16.mxu0 0
        %1917 = vmatpush1.bf16.xpose.msra.mxu0 0
        %1918 = vmatprep.subr.bf16.mxu0 0
        %1919 = vmatpush1.bf16.xpose.msra.mxu0 0
        %1920 = vmatprep.subr.bf16.mxu0 0
        %1921 = vmatpush1.bf16.xpose.msra.mxu0 0
        %1922 = vmatprep.subr.bf16.mxu0 0
        %1923 = vmatpush1.bf16.xpose.msra.mxu0 0
        %1924 = vmatprep.subr.bf16.mxu0 0
        %1925 = vmatpush1.bf16.xpose.msra.mxu0 0
        %1926 = vmatprep.mubr.bf16.mxu0 0
        %1927 = vmatmul.mubr.bf16.gmra.mrb[0].mxu0 %v1889
        %v1928 = vpop.f32.mrb[0].mxu0
        %v1929 = vadd.f32 0.0, %v1928
        %v1930 = vpop.f32.mrb[0].mxu0
        %v1931 = vpop.f32.mrb[0].mxu0
        %v1932 = vpop.f32.mrb[0].mxu0
        %1933 = vdwg.mxu0
        %v1935 = vsel %vm749, %v1865, 0
        %v1938 = vsel %vm749, %v1873, 0
        %1940 = vmatprep.subr.bf16.mxu0 0
        %1941 = vmatpush1.bf16.xpose.msra.mxu0 %v1938
        %1942 = vmatprep.subr.bf16.mxu0 0
        %1943 = vmatpush1.bf16.xpose.msra.mxu0 0
        %1944 = vmatprep.subr.bf16.mxu0 0
        %1945 = vmatpush1.bf16.xpose.msra.mxu0 0
        %1946 = vmatprep.subr.bf16.mxu0 0
        %1947 = vmatpush1.bf16.xpose.msra.mxu0 0
        %1948 = vmatprep.subr.bf16.mxu0 0
        %1949 = vmatpush1.bf16.xpose.msra.mxu0 0
        %1950 = vmatprep.subr.bf16.mxu0 0
        %1951 = vmatpush1.bf16.xpose.msra.mxu0 0
        %1952 = vmatprep.subr.bf16.mxu0 0
        %1953 = vmatpush1.bf16.xpose.msra.mxu0 0
        %1954 = vmatprep.subr.bf16.mxu0 0
        %1955 = vmatpush1.bf16.xpose.msra.mxu0 0
        %1956 = vmatprep.subr.bf16.mxu0 0
        %1957 = vmatpush1.bf16.xpose.msra.mxu0 0
        %1958 = vmatprep.subr.bf16.mxu0 0
        %1959 = vmatpush1.bf16.xpose.msra.mxu0 0
        %1960 = vmatprep.subr.bf16.mxu0 0
        %1961 = vmatpush1.bf16.xpose.msra.mxu0 0
        %1962 = vmatprep.subr.bf16.mxu0 0
        %1963 = vmatpush1.bf16.xpose.msra.mxu0 0
        %1964 = vmatprep.subr.bf16.mxu0 0
        %1965 = vmatpush1.bf16.xpose.msra.mxu0 0
        %1966 = vmatprep.subr.bf16.mxu0 0
        %1967 = vmatpush1.bf16.xpose.msra.mxu0 0
        %1968 = vmatprep.subr.bf16.mxu0 0
        %1969 = vmatpush1.bf16.xpose.msra.mxu0 0
        %1970 = vmatprep.subr.bf16.mxu0 0
        %1971 = vmatpush1.bf16.xpose.msra.mxu0 0
        %1972 = vmatprep.mubr.bf16.mxu0 0
        %1973 = vmatmul.mubr.bf16.gmra.mrb[0].mxu0 %v1935
        %v1974 = vpop.f32.mrb[0].mxu0
        %v1975 = vadd.f32 0.0, %v1974
        %v1976 = vpop.f32.mrb[0].mxu0
        %v1977 = vpop.f32.mrb[0].mxu0
        %v1978 = vpop.f32.mrb[0].mxu0
        %1979 = vdwg.mxu0
        %v1981 = vsel %vm749, %v1866, 0
        %v1984 = vsel %vm749, %v1874, 0
        %1986 = vmatprep.subr.bf16.mxu0 0
        %1987 = vmatpush1.bf16.xpose.msra.mxu0 %v1984
        %1988 = vmatprep.subr.bf16.mxu0 0
        %1989 = vmatpush1.bf16.xpose.msra.mxu0 0
        %1990 = vmatprep.subr.bf16.mxu0 0
        %1991 = vmatpush1.bf16.xpose.msra.mxu0 0
        %1992 = vmatprep.subr.bf16.mxu0 0
        %1993 = vmatpush1.bf16.xpose.msra.mxu0 0
        %1994 = vmatprep.subr.bf16.mxu0 0
        %1995 = vmatpush1.bf16.xpose.msra.mxu0 0
        %1996 = vmatprep.subr.bf16.mxu0 0
        %1997 = vmatpush1.bf16.xpose.msra.mxu0 0
        %1998 = vmatprep.subr.bf16.mxu0 0
        %1999 = vmatpush1.bf16.xpose.msra.mxu0 0
        %2000 = vmatprep.subr.bf16.mxu0 0
        %2001 = vmatpush1.bf16.xpose.msra.mxu0 0
        %2002 = vmatprep.subr.bf16.mxu0 0
        %2003 = vmatpush1.bf16.xpose.msra.mxu0 0
        %2004 = vmatprep.subr.bf16.mxu0 0
        %2005 = vmatpush1.bf16.xpose.msra.mxu0 0
        %2006 = vmatprep.subr.bf16.mxu0 0
        %2007 = vmatpush1.bf16.xpose.msra.mxu0 0
        %2008 = vmatprep.subr.bf16.mxu0 0
        %2009 = vmatpush1.bf16.xpose.msra.mxu0 0
        %2010 = vmatprep.subr.bf16.mxu0 0
        %2011 = vmatpush1.bf16.xpose.msra.mxu0 0
        %2012 = vmatprep.subr.bf16.mxu0 0
        %2013 = vmatpush1.bf16.xpose.msra.mxu0 0
        %2014 = vmatprep.subr.bf16.mxu0 0
        %2015 = vmatpush1.bf16.xpose.msra.mxu0 0
        %2016 = vmatprep.subr.bf16.mxu0 0
        %2017 = vmatpush1.bf16.xpose.msra.mxu0 0
        %2018 = vmatprep.mubr.bf16.mxu0 0
        %2019 = vmatmul.mubr.bf16.gmra.mrb[0].mxu0 %v1981
        %v2020 = vpop.f32.mrb[0].mxu0
        %v2021 = vadd.f32 0.0, %v2020
        %v2022 = vpop.f32.mrb[0].mxu0
        %v2023 = vpop.f32.mrb[0].mxu0
        %v2024 = vpop.f32.mrb[0].mxu0
        %2025 = vdwg.mxu0
        %v2027 = vsel %vm749, %v1867, 0
        %v2030 = vsel %vm749, %v1875, 0
        %2032 = vmatprep.subr.bf16.mxu0 0
        %2033 = vmatpush1.bf16.xpose.msra.mxu0 %v2030
        %2034 = vmatprep.subr.bf16.mxu0 0
        %2035 = vmatpush1.bf16.xpose.msra.mxu0 0
        %2036 = vmatprep.subr.bf16.mxu0 0
        %2037 = vmatpush1.bf16.xpose.msra.mxu0 0
        %2038 = vmatprep.subr.bf16.mxu0 0
        %2039 = vmatpush1.bf16.xpose.msra.mxu0 0
        %2040 = vmatprep.subr.bf16.mxu0 0
        %2041 = vmatpush1.bf16.xpose.msra.mxu0 0
        %2042 = vmatprep.subr.bf16.mxu0 0
        %2043 = vmatpush1.bf16.xpose.msra.mxu0 0
        %2044 = vmatprep.subr.bf16.mxu0 0
        %2045 = vmatpush1.bf16.xpose.msra.mxu0 0
        %2046 = vmatprep.subr.bf16.mxu0 0
        %2047 = vmatpush1.bf16.xpose.msra.mxu0 0
        %2048 = vmatprep.subr.bf16.mxu0 0
        %2049 = vmatpush1.bf16.xpose.msra.mxu0 0
        %2050 = vmatprep.subr.bf16.mxu0 0
        %2051 = vmatpush1.bf16.xpose.msra.mxu0 0
        %2052 = vmatprep.subr.bf16.mxu0 0
        %2053 = vmatpush1.bf16.xpose.msra.mxu0 0
        %2054 = vmatprep.subr.bf16.mxu0 0
        %2055 = vmatpush1.bf16.xpose.msra.mxu0 0
        %2056 = vmatprep.subr.bf16.mxu0 0
        %2057 = vmatpush1.bf16.xpose.msra.mxu0 0
        %2058 = vmatprep.subr.bf16.mxu0 0
        %2059 = vmatpush1.bf16.xpose.msra.mxu0 0
        %2060 = vmatprep.subr.bf16.mxu0 0
        %2061 = vmatpush1.bf16.xpose.msra.mxu0 0
        %2062 = vmatprep.subr.bf16.mxu0 0
        %2063 = vmatpush1.bf16.xpose.msra.mxu0 0
        %2064 = vmatprep.mubr.bf16.mxu0 0
        %2065 = vmatmul.mubr.bf16.gmra.mrb[0].mxu0 %v2027
        %v2066 = vpop.f32.mrb[0].mxu0
        %v2067 = vadd.f32 0.0, %v2066
        %v2068 = vpop.f32.mrb[0].mxu0
        %v2069 = vpop.f32.mrb[0].mxu0
        %v2070 = vpop.f32.mrb[0].mxu0
        %2071 = vdwg.mxu0
        %v2073 = vsel %vm749, %v1868, 0
        %v2076 = vsel %vm749, %v1876, 0
        %2078 = vmatprep.subr.bf16.mxu0 0
        %2079 = vmatpush1.bf16.xpose.msra.mxu0 %v2076
        %2080 = vmatprep.subr.bf16.mxu0 0
        %2081 = vmatpush1.bf16.xpose.msra.mxu0 0
        %2082 = vmatprep.subr.bf16.mxu0 0
        %2083 = vmatpush1.bf16.xpose.msra.mxu0 0
        %2084 = vmatprep.subr.bf16.mxu0 0
        %2085 = vmatpush1.bf16.xpose.msra.mxu0 0
        %2086 = vmatprep.subr.bf16.mxu0 0
        %2087 = vmatpush1.bf16.xpose.msra.mxu0 0
        %2088 = vmatprep.subr.bf16.mxu0 0
        %2089 = vmatpush1.bf16.xpose.msra.mxu0 0
        %2090 = vmatprep.subr.bf16.mxu0 0
        %2091 = vmatpush1.bf16.xpose.msra.mxu0 0
        %2092 = vmatprep.subr.bf16.mxu0 0
        %2093 = vmatpush1.bf16.xpose.msra.mxu0 0
        %2094 = vmatprep.subr.bf16.mxu0 0
        %2095 = vmatpush1.bf16.xpose.msra.mxu0 0
        %2096 = vmatprep.subr.bf16.mxu0 0
        %2097 = vmatpush1.bf16.xpose.msra.mxu0 0
        %2098 = vmatprep.subr.bf16.mxu0 0
        %2099 = vmatpush1.bf16.xpose.msra.mxu0 0
        %2100 = vmatprep.subr.bf16.mxu0 0
        %2101 = vmatpush1.bf16.xpose.msra.mxu0 0
        %2102 = vmatprep.subr.bf16.mxu0 0
        %2103 = vmatpush1.bf16.xpose.msra.mxu0 0
        %2104 = vmatprep.subr.bf16.mxu0 0
        %2105 = vmatpush1.bf16.xpose.msra.mxu0 0
        %2106 = vmatprep.subr.bf16.mxu0 0
        %2107 = vmatpush1.bf16.xpose.msra.mxu0 0
        %2108 = vmatprep.subr.bf16.mxu0 0
        %2109 = vmatpush1.bf16.xpose.msra.mxu0 0
        %2110 = vmatprep.mubr.bf16.mxu0 0
        %2111 = vmatmul.mubr.bf16.gmra.mrb[0].mxu0 %v2073
        %v2112 = vpop.f32.mrb[0].mxu0
        %v2113 = vadd.f32 0.0, %v2112
        %v2114 = vpop.f32.mrb[0].mxu0
        %v2115 = vpop.f32.mrb[0].mxu0
        %v2116 = vpop.f32.mrb[0].mxu0
        %2117 = vdwg.mxu0
        %v2119 = vsel %vm749, %v1869, 0
        %v2122 = vsel %vm749, %v1877, 0
        %2124 = vmatprep.subr.bf16.mxu0 0
        %2125 = vmatpush1.bf16.xpose.msra.mxu0 %v2122
        %2126 = vmatprep.subr.bf16.mxu0 0
        %2127 = vmatpush1.bf16.xpose.msra.mxu0 0
        %2128 = vmatprep.subr.bf16.mxu0 0
        %2129 = vmatpush1.bf16.xpose.msra.mxu0 0
        %2130 = vmatprep.subr.bf16.mxu0 0
        %2131 = vmatpush1.bf16.xpose.msra.mxu0 0
        %2132 = vmatprep.subr.bf16.mxu0 0
        %2133 = vmatpush1.bf16.xpose.msra.mxu0 0
        %2134 = vmatprep.subr.bf16.mxu0 0
        %2135 = vmatpush1.bf16.xpose.msra.mxu0 0
        %2136 = vmatprep.subr.bf16.mxu0 0
        %2137 = vmatpush1.bf16.xpose.msra.mxu0 0
        %2138 = vmatprep.subr.bf16.mxu0 0
        %2139 = vmatpush1.bf16.xpose.msra.mxu0 0
        %2140 = vmatprep.subr.bf16.mxu0 0
        %2141 = vmatpush1.bf16.xpose.msra.mxu0 0
        %2142 = vmatprep.subr.bf16.mxu0 0
        %2143 = vmatpush1.bf16.xpose.msra.mxu0 0
        %2144 = vmatprep.subr.bf16.mxu0 0
        %2145 = vmatpush1.bf16.xpose.msra.mxu0 0
        %2146 = vmatprep.subr.bf16.mxu0 0
        %2147 = vmatpush1.bf16.xpose.msra.mxu0 0
        %2148 = vmatprep.subr.bf16.mxu0 0
        %2149 = vmatpush1.bf16.xpose.msra.mxu0 0
        %2150 = vmatprep.subr.bf16.mxu0 0
        %2151 = vmatpush1.bf16.xpose.msra.mxu0 0
        %2152 = vmatprep.subr.bf16.mxu0 0
        %2153 = vmatpush1.bf16.xpose.msra.mxu0 0
        %2154 = vmatprep.subr.bf16.mxu0 0
        %2155 = vmatpush1.bf16.xpose.msra.mxu0 0
        %2156 = vmatprep.mubr.bf16.mxu0 0
        %2157 = vmatmul.mubr.bf16.gmra.mrb[0].mxu0 %v2119
        %v2158 = vpop.f32.mrb[0].mxu0
        %v2159 = vadd.f32 0.0, %v2158
        %v2160 = vpop.f32.mrb[0].mxu0
        %v2161 = vpop.f32.mrb[0].mxu0
        %v2162 = vpop.f32.mrb[0].mxu0
        %2163 = vdwg.mxu0
        %v2165 = vsel %vm749, %v1870, 0
        %v2168 = vsel %vm749, %v1878, 0
        %2170 = vmatprep.subr.bf16.mxu0 0
        %2171 = vmatpush1.bf16.xpose.msra.mxu0 %v2168
        %2172 = vmatprep.subr.bf16.mxu0 0
        %2173 = vmatpush1.bf16.xpose.msra.mxu0 0
        %2174 = vmatprep.subr.bf16.mxu0 0
        %2175 = vmatpush1.bf16.xpose.msra.mxu0 0
        %2176 = vmatprep.subr.bf16.mxu0 0
        %2177 = vmatpush1.bf16.xpose.msra.mxu0 0
        %2178 = vmatprep.subr.bf16.mxu0 0
        %2179 = vmatpush1.bf16.xpose.msra.mxu0 0
        %2180 = vmatprep.subr.bf16.mxu0 0
        %2181 = vmatpush1.bf16.xpose.msra.mxu0 0
        %2182 = vmatprep.subr.bf16.mxu0 0
        %2183 = vmatpush1.bf16.xpose.msra.mxu0 0
        %2184 = vmatprep.subr.bf16.mxu0 0
        %2185 = vmatpush1.bf16.xpose.msra.mxu0 0
        %2186 = vmatprep.subr.bf16.mxu0 0
        %2187 = vmatpush1.bf16.xpose.msra.mxu0 0
        %2188 = vmatprep.subr.bf16.mxu0 0
        %2189 = vmatpush1.bf16.xpose.msra.mxu0 0
        %2190 = vmatprep.subr.bf16.mxu0 0
        %2191 = vmatpush1.bf16.xpose.msra.mxu0 0
        %2192 = vmatprep.subr.bf16.mxu0 0
        %2193 = vmatpush1.bf16.xpose.msra.mxu0 0
        %2194 = vmatprep.subr.bf16.mxu0 0
        %2195 = vmatpush1.bf16.xpose.msra.mxu0 0
        %2196 = vmatprep.subr.bf16.mxu0 0
        %2197 = vmatpush1.bf16.xpose.msra.mxu0 0
        %2198 = vmatprep.subr.bf16.mxu0 0
        %2199 = vmatpush1.bf16.xpose.msra.mxu0 0
        %2200 = vmatprep.subr.bf16.mxu0 0
        %2201 = vmatpush1.bf16.xpose.msra.mxu0 0
        %2202 = vmatprep.mubr.bf16.mxu0 0
        %2203 = vmatmul.mubr.bf16.gmra.mrb[0].mxu0 %v2165
        %v2204 = vpop.f32.mrb[0].mxu0
        %v2205 = vadd.f32 0.0, %v2204
        %v2206 = vpop.f32.mrb[0].mxu0
        %v2207 = vpop.f32.mrb[0].mxu0
        %v2208 = vpop.f32.mrb[0].mxu0
        %2209 = vdwg.mxu0
        %v2211 = vsel %vm749, %v1871, 0
        %v2214 = vsel %vm749, %v1879, 0
        %2216 = vmatprep.subr.bf16.mxu0 0
        %2217 = vmatpush1.bf16.xpose.msra.mxu0 %v2214
        %2218 = vmatprep.subr.bf16.mxu0 0
        %2219 = vmatpush1.bf16.xpose.msra.mxu0 0
        %2220 = vmatprep.subr.bf16.mxu0 0
        %2221 = vmatpush1.bf16.xpose.msra.mxu0 0
        %2222 = vmatprep.subr.bf16.mxu0 0
        %2223 = vmatpush1.bf16.xpose.msra.mxu0 0
        %2224 = vmatprep.subr.bf16.mxu0 0
        %2225 = vmatpush1.bf16.xpose.msra.mxu0 0
        %2226 = vmatprep.subr.bf16.mxu0 0
        %2227 = vmatpush1.bf16.xpose.msra.mxu0 0
        %2228 = vmatprep.subr.bf16.mxu0 0
        %2229 = vmatpush1.bf16.xpose.msra.mxu0 0
        %2230 = vmatprep.subr.bf16.mxu0 0
        %2231 = vmatpush1.bf16.xpose.msra.mxu0 0
        %2232 = vmatprep.subr.bf16.mxu0 0
        %2233 = vmatpush1.bf16.xpose.msra.mxu0 0
        %2234 = vmatprep.subr.bf16.mxu0 0
        %2235 = vmatpush1.bf16.xpose.msra.mxu0 0
        %2236 = vmatprep.subr.bf16.mxu0 0
        %2237 = vmatpush1.bf16.xpose.msra.mxu0 0
        %2238 = vmatprep.subr.bf16.mxu0 0
        %2239 = vmatpush1.bf16.xpose.msra.mxu0 0
        %2240 = vmatprep.subr.bf16.mxu0 0
        %2241 = vmatpush1.bf16.xpose.msra.mxu0 0
        %2242 = vmatprep.subr.bf16.mxu0 0
        %2243 = vmatpush1.bf16.xpose.msra.mxu0 0
        %2244 = vmatprep.subr.bf16.mxu0 0
        %2245 = vmatpush1.bf16.xpose.msra.mxu0 0
        %2246 = vmatprep.subr.bf16.mxu0 0
        %2247 = vmatpush1.bf16.xpose.msra.mxu0 0
        %2248 = vmatprep.mubr.bf16.mxu0 0
        %2249 = vmatmul.mubr.bf16.gmra.mrb[0].mxu0 %v2211
        %v2250 = vpop.f32.mrb[0].mxu0
        %v2251 = vadd.f32 0.0, %v2250
        %v2252 = vpop.f32.mrb[0].mxu0
        %v2253 = vpop.f32.mrb[0].mxu0
        %v2254 = vpop.f32.mrb[0].mxu0
        %2255 = vdwg.mxu0
        %v2256 = vsel %vm1133, %v1929, -inf
        %2257 = vmax.xlane.f32.xlu0 %v2256
        %v2258 = vpop.xlane.xlu0 %2257
        %v2259 = vsel %vm1133, %v1975, -inf
        %2260 = vmax.xlane.f32.xlu0 %v2259
        %v2261 = vpop.xlane.xlu0 %2260
        %v2262 = vsel %vm1133, %v2021, -inf
        %2263 = vmax.xlane.f32.xlu0 %v2262
        %v2264 = vpop.xlane.xlu0 %2263
        %v2265 = vsel %vm1133, %v2067, -inf
        %2266 = vmax.xlane.f32.xlu0 %v2265
        %v2267 = vpop.xlane.xlu0 %2266
        %v2268 = vsel %vm1133, %v2113, -inf
        %2269 = vmax.xlane.f32.xlu0 %v2268
        %v2270 = vpop.xlane.xlu0 %2269
        %v2271 = vsel %vm1133, %v2159, -inf
        %2272 = vmax.xlane.f32.xlu0 %v2271
        %v2273 = vpop.xlane.xlu0 %2272
        %v2274 = vsel %vm1133, %v2205, -inf
        %2275 = vmax.xlane.f32.xlu0 %v2274
        %v2276 = vpop.xlane.xlu0 %2275
        %v2277 = vsel %vm1133, %v2251, -inf
        %2278 = vmax.xlane.f32.xlu0 %v2277
        %v2279 = vpop.xlane.xlu0 %2278
        %v2280 = vsub.f32 %v1929, %v2258
        %v2281 = vsub.f32 %v1975, %v2261
        %v2282 = vsub.f32 %v2021, %v2264
        %v2283 = vsub.f32 %v2067, %v2267
        %v2284 = vsub.f32 %v2113, %v2270
        %v2285 = vsub.f32 %v2159, %v2273
        %v2286 = vsub.f32 %v2205, %v2276
        %v2287 = vsub.f32 %v2251, %v2279
        %v2288 = vmul.f32 %v2280, 1.442695
        %v2289 = vpow.pop %v2288
        %v2290 = vmul.f32 %v2281, 1.442695
        %v2291 = vpow.pop %v2290
        %v2292 = vmul.f32 %v2282, 1.442695
        %v2293 = vpow.pop %v2292
        %v2294 = vmul.f32 %v2283, 1.442695
        %v2295 = vpow.pop %v2294
        %v2296 = vmul.f32 %v2284, 1.442695
        %v2297 = vpow.pop %v2296
        %v2298 = vmul.f32 %v2285, 1.442695
        %v2299 = vpow.pop %v2298
        %v2300 = vmul.f32 %v2286, 1.442695
        %v2301 = vpow.pop %v2300
        %v2302 = vmul.f32 %v2287, 1.442695
        %v2303 = vpow.pop %v2302
        %v2304 = vsel %vm1133, %v2289, 0.0
        %2305 = vadd.xlane.f32.xlu0 %v2304
        %v2306 = vpop.xlane.xlu0 %2305
        %v2307 = vsel %vm1133, %v2291, 0.0
        %2308 = vadd.xlane.f32.xlu0 %v2307
        %v2309 = vpop.xlane.xlu0 %2308
        %v2310 = vsel %vm1133, %v2293, 0.0
        %2311 = vadd.xlane.f32.xlu0 %v2310
        %v2312 = vpop.xlane.xlu0 %2311
        %v2313 = vsel %vm1133, %v2295, 0.0
        %2314 = vadd.xlane.f32.xlu0 %v2313
        %v2315 = vpop.xlane.xlu0 %2314
        %v2316 = vsel %vm1133, %v2297, 0.0
        %2317 = vadd.xlane.f32.xlu0 %v2316
        %v2318 = vpop.xlane.xlu0 %2317
        %v2319 = vsel %vm1133, %v2299, 0.0
        %2320 = vadd.xlane.f32.xlu0 %v2319
        %v2321 = vpop.xlane.xlu0 %2320
        %v2322 = vsel %vm1133, %v2301, 0.0
        %2323 = vadd.xlane.f32.xlu0 %v2322
        %v2324 = vpop.xlane.xlu0 %2323
        %v2325 = vsel %vm1133, %v2303, 0.0
        %2326 = vadd.xlane.f32.xlu0 %v2325
        %v2327 = vpop.xlane.xlu0 %2326
        %v2328 = vpack.c.bf16 %v2289, %v2289
        %v2329 = vpack.c.bf16 %v2291, %v2291
        %v2330 = vpack.c.bf16 %v2293, %v2293
        %v2331 = vpack.c.bf16 %v2295, %v2295
        %v2332 = vpack.c.bf16 %v2297, %v2297
        %v2333 = vpack.c.bf16 %v2299, %v2299
        %v2334 = vpack.c.bf16 %v2301, %v2301
        %v2335 = vpack.c.bf16 %v2303, %v2303
        %v2337 = vsel %vm1133, %v2328, 0
        %v2340 = vsel %vm1217, %v1880, 0
        %2342 = vmatprep.subr.bf16.mxu0 0
        %2343 = vmatpush1.bf16.msra.mxu0 %v2340
        %2344 = vmatprep.subr.bf16.mxu0 0
        %2345 = vmatpush1.bf16.msra.mxu0 0
        %2346 = vmatprep.subr.bf16.mxu0 0
        %2347 = vmatpush1.bf16.msra.mxu0 0
        %2348 = vmatprep.subr.bf16.mxu0 0
        %2349 = vmatpush1.bf16.msra.mxu0 0
        %2350 = vmatprep.subr.bf16.mxu0 0
        %2351 = vmatpush1.bf16.msra.mxu0 0
        %2352 = vmatprep.subr.bf16.mxu0 0
        %2353 = vmatpush1.bf16.msra.mxu0 0
        %2354 = vmatprep.subr.bf16.mxu0 0
        %2355 = vmatpush1.bf16.msra.mxu0 0
        %2356 = vmatprep.subr.bf16.mxu0 0
        %2357 = vmatpush1.bf16.msra.mxu0 0
        %2358 = vmatprep.subr.bf16.mxu0 0
        %2359 = vmatpush1.bf16.msra.mxu0 0
        %2360 = vmatprep.subr.bf16.mxu0 0
        %2361 = vmatpush1.bf16.msra.mxu0 0
        %2362 = vmatprep.subr.bf16.mxu0 0
        %2363 = vmatpush1.bf16.msra.mxu0 0
        %2364 = vmatprep.subr.bf16.mxu0 0
        %2365 = vmatpush1.bf16.msra.mxu0 0
        %2366 = vmatprep.subr.bf16.mxu0 0
        %2367 = vmatpush1.bf16.msra.mxu0 0
        %2368 = vmatprep.subr.bf16.mxu0 0
        %2369 = vmatpush1.bf16.msra.mxu0 0
        %2370 = vmatprep.subr.bf16.mxu0 0
        %2371 = vmatpush1.bf16.msra.mxu0 0
        %2372 = vmatprep.subr.bf16.mxu0 0
        %2373 = vmatpush1.bf16.msra.mxu0 0
        %2374 = vmatprep.mubr.bf16.mxu0 0
        %2375 = vmatmul.mubr.bf16.gmra.mrb[0].mxu0 %v2337
        %v2376 = vpop.f32.mrb[0].mxu0
        %v2377 = vadd.f32 0.0, %v2376
        %v2378 = vpop.f32.mrb[0].mxu0
        %v2379 = vpop.f32.mrb[0].mxu0
        %v2380 = vpop.f32.mrb[0].mxu0
        %2381 = vdwg.mxu0
        %v2383 = vsel %vm1133, %v2329, 0
        %v2386 = vsel %vm1217, %v1881, 0
        %2388 = vmatprep.subr.bf16.mxu0 0
        %2389 = vmatpush1.bf16.msra.mxu0 %v2386
        %2390 = vmatprep.subr.bf16.mxu0 0
        %2391 = vmatpush1.bf16.msra.mxu0 0
        %2392 = vmatprep.subr.bf16.mxu0 0
        %2393 = vmatpush1.bf16.msra.mxu0 0
        %2394 = vmatprep.subr.bf16.mxu0 0
        %2395 = vmatpush1.bf16.msra.mxu0 0
        %2396 = vmatprep.subr.bf16.mxu0 0
        %2397 = vmatpush1.bf16.msra.mxu0 0
        %2398 = vmatprep.subr.bf16.mxu0 0
        %2399 = vmatpush1.bf16.msra.mxu0 0
        %2400 = vmatprep.subr.bf16.mxu0 0
        %2401 = vmatpush1.bf16.msra.mxu0 0
        %2402 = vmatprep.subr.bf16.mxu0 0
        %2403 = vmatpush1.bf16.msra.mxu0 0
        %2404 = vmatprep.subr.bf16.mxu0 0
        %2405 = vmatpush1.bf16.msra.mxu0 0
        %2406 = vmatprep.subr.bf16.mxu0 0
        %2407 = vmatpush1.bf16.msra.mxu0 0
        %2408 = vmatprep.subr.bf16.mxu0 0
        %2409 = vmatpush1.bf16.msra.mxu0 0
        %2410 = vmatprep.subr.bf16.mxu0 0
        %2411 = vmatpush1.bf16.msra.mxu0 0
        %2412 = vmatprep.subr.bf16.mxu0 0
        %2413 = vmatpush1.bf16.msra.mxu0 0
        %2414 = vmatprep.subr.bf16.mxu0 0
        %2415 = vmatpush1.bf16.msra.mxu0 0
        %2416 = vmatprep.subr.bf16.mxu0 0
        %2417 = vmatpush1.bf16.msra.mxu0 0
        %2418 = vmatprep.subr.bf16.mxu0 0
        %2419 = vmatpush1.bf16.msra.mxu0 0
        %2420 = vmatprep.mubr.bf16.mxu0 0
        %2421 = vmatmul.mubr.bf16.gmra.mrb[0].mxu0 %v2383
        %v2422 = vpop.f32.mrb[0].mxu0
        %v2423 = vadd.f32 0.0, %v2422
        %v2424 = vpop.f32.mrb[0].mxu0
        %v2425 = vpop.f32.mrb[0].mxu0
        %v2426 = vpop.f32.mrb[0].mxu0
        %2427 = vdwg.mxu0
        %v2429 = vsel %vm1133, %v2330, 0
        %v2432 = vsel %vm1217, %v1882, 0
        %2434 = vmatprep.subr.bf16.mxu0 0
        %2435 = vmatpush1.bf16.msra.mxu0 %v2432
        %2436 = vmatprep.subr.bf16.mxu0 0
        %2437 = vmatpush1.bf16.msra.mxu0 0
        %2438 = vmatprep.subr.bf16.mxu0 0
        %2439 = vmatpush1.bf16.msra.mxu0 0
        %2440 = vmatprep.subr.bf16.mxu0 0
        %2441 = vmatpush1.bf16.msra.mxu0 0
        %2442 = vmatprep.subr.bf16.mxu0 0
        %2443 = vmatpush1.bf16.msra.mxu0 0
        %2444 = vmatprep.subr.bf16.mxu0 0
        %2445 = vmatpush1.bf16.msra.mxu0 0
        %2446 = vmatprep.subr.bf16.mxu0 0
        %2447 = vmatpush1.bf16.msra.mxu0 0
        %2448 = vmatprep.subr.bf16.mxu0 0
        %2449 = vmatpush1.bf16.msra.mxu0 0
        %2450 = vmatprep.subr.bf16.mxu0 0
        %2451 = vmatpush1.bf16.msra.mxu0 0
        %2452 = vmatprep.subr.bf16.mxu0 0
        %2453 = vmatpush1.bf16.msra.mxu0 0
        %2454 = vmatprep.subr.bf16.mxu0 0
        %2455 = vmatpush1.bf16.msra.mxu0 0
        %2456 = vmatprep.subr.bf16.mxu0 0
        %2457 = vmatpush1.bf16.msra.mxu0 0
        %2458 = vmatprep.subr.bf16.mxu0 0
        %2459 = vmatpush1.bf16.msra.mxu0 0
        %2460 = vmatprep.subr.bf16.mxu0 0
        %2461 = vmatpush1.bf16.msra.mxu0 0
        %2462 = vmatprep.subr.bf16.mxu0 0
        %2463 = vmatpush1.bf16.msra.mxu0 0
        %2464 = vmatprep.subr.bf16.mxu0 0
        %2465 = vmatpush1.bf16.msra.mxu0 0
        %2466 = vmatprep.mubr.bf16.mxu0 0
        %2467 = vmatmul.mubr.bf16.gmra.mrb[0].mxu0 %v2429
        %v2468 = vpop.f32.mrb[0].mxu0
        %v2469 = vadd.f32 0.0, %v2468
        %v2470 = vpop.f32.mrb[0].mxu0
        %v2471 = vpop.f32.mrb[0].mxu0
        %v2472 = vpop.f32.mrb[0].mxu0
        %2473 = vdwg.mxu0
        %v2475 = vsel %vm1133, %v2331, 0
        %v2478 = vsel %vm1217, %v1883, 0
        %2480 = vmatprep.subr.bf16.mxu0 0
        %2481 = vmatpush1.bf16.msra.mxu0 %v2478
        %2482 = vmatprep.subr.bf16.mxu0 0
        %2483 = vmatpush1.bf16.msra.mxu0 0
        %2484 = vmatprep.subr.bf16.mxu0 0
        %2485 = vmatpush1.bf16.msra.mxu0 0
        %2486 = vmatprep.subr.bf16.mxu0 0
        %2487 = vmatpush1.bf16.msra.mxu0 0
        %2488 = vmatprep.subr.bf16.mxu0 0
        %2489 = vmatpush1.bf16.msra.mxu0 0
        %2490 = vmatprep.subr.bf16.mxu0 0
        %2491 = vmatpush1.bf16.msra.mxu0 0
        %2492 = vmatprep.subr.bf16.mxu0 0
        %2493 = vmatpush1.bf16.msra.mxu0 0
        %2494 = vmatprep.subr.bf16.mxu0 0
        %2495 = vmatpush1.bf16.msra.mxu0 0
        %2496 = vmatprep.subr.bf16.mxu0 0
        %2497 = vmatpush1.bf16.msra.mxu0 0
        %2498 = vmatprep.subr.bf16.mxu0 0
        %2499 = vmatpush1.bf16.msra.mxu0 0
        %2500 = vmatprep.subr.bf16.mxu0 0
        %2501 = vmatpush1.bf16.msra.mxu0 0
        %2502 = vmatprep.subr.bf16.mxu0 0
        %2503 = vmatpush1.bf16.msra.mxu0 0
        %2504 = vmatprep.subr.bf16.mxu0 0
        %2505 = vmatpush1.bf16.msra.mxu0 0
        %2506 = vmatprep.subr.bf16.mxu0 0
        %2507 = vmatpush1.bf16.msra.mxu0 0
        %2508 = vmatprep.subr.bf16.mxu0 0
        %2509 = vmatpush1.bf16.msra.mxu0 0
        %2510 = vmatprep.subr.bf16.mxu0 0
        %2511 = vmatpush1.bf16.msra.mxu0 0
        %2512 = vmatprep.mubr.bf16.mxu0 0
        %2513 = vmatmul.mubr.bf16.gmra.mrb[0].mxu0 %v2475
        %v2514 = vpop.f32.mrb[0].mxu0
        %v2515 = vadd.f32 0.0, %v2514
        %v2516 = vpop.f32.mrb[0].mxu0
        %v2517 = vpop.f32.mrb[0].mxu0
        %v2518 = vpop.f32.mrb[0].mxu0
        %2519 = vdwg.mxu0
        %v2521 = vsel %vm1133, %v2332, 0
        %v2524 = vsel %vm1217, %v1884, 0
        %2526 = vmatprep.subr.bf16.mxu0 0
        %2527 = vmatpush1.bf16.msra.mxu0 %v2524
        %2528 = vmatprep.subr.bf16.mxu0 0
        %2529 = vmatpush1.bf16.msra.mxu0 0
        %2530 = vmatprep.subr.bf16.mxu0 0
        %2531 = vmatpush1.bf16.msra.mxu0 0
        %2532 = vmatprep.subr.bf16.mxu0 0
        %2533 = vmatpush1.bf16.msra.mxu0 0
        %2534 = vmatprep.subr.bf16.mxu0 0
        %2535 = vmatpush1.bf16.msra.mxu0 0
        %2536 = vmatprep.subr.bf16.mxu0 0
        %2537 = vmatpush1.bf16.msra.mxu0 0
        %2538 = vmatprep.subr.bf16.mxu0 0
        %2539 = vmatpush1.bf16.msra.mxu0 0
        %2540 = vmatprep.subr.bf16.mxu0 0
        %2541 = vmatpush1.bf16.msra.mxu0 0
        %2542 = vmatprep.subr.bf16.mxu0 0
        %2543 = vmatpush1.bf16.msra.mxu0 0
        %2544 = vmatprep.subr.bf16.mxu0 0
        %2545 = vmatpush1.bf16.msra.mxu0 0
        %2546 = vmatprep.subr.bf16.mxu0 0
        %2547 = vmatpush1.bf16.msra.mxu0 0
        %2548 = vmatprep.subr.bf16.mxu0 0
        %2549 = vmatpush1.bf16.msra.mxu0 0
        %2550 = vmatprep.subr.bf16.mxu0 0
        %2551 = vmatpush1.bf16.msra.mxu0 0
        %2552 = vmatprep.subr.bf16.mxu0 0
        %2553 = vmatpush1.bf16.msra.mxu0 0
        %2554 = vmatprep.subr.bf16.mxu0 0
        %2555 = vmatpush1.bf16.msra.mxu0 0
        %2556 = vmatprep.subr.bf16.mxu0 0
        %2557 = vmatpush1.bf16.msra.mxu0 0
        %2558 = vmatprep.mubr.bf16.mxu0 0
        %2559 = vmatmul.mubr.bf16.gmra.mrb[0].mxu0 %v2521
        %v2560 = vpop.f32.mrb[0].mxu0
        %v2561 = vadd.f32 0.0, %v2560
        %v2562 = vpop.f32.mrb[0].mxu0
        %v2563 = vpop.f32.mrb[0].mxu0
        %v2564 = vpop.f32.mrb[0].mxu0
        %2565 = vdwg.mxu0
        %v2567 = vsel %vm1133, %v2333, 0
        %v2570 = vsel %vm1217, %v1885, 0
        %2572 = vmatprep.subr.bf16.mxu0 0
        %2573 = vmatpush1.bf16.msra.mxu0 %v2570
        %2574 = vmatprep.subr.bf16.mxu0 0
        %2575 = vmatpush1.bf16.msra.mxu0 0
        %2576 = vmatprep.subr.bf16.mxu0 0
        %2577 = vmatpush1.bf16.msra.mxu0 0
        %2578 = vmatprep.subr.bf16.mxu0 0
        %2579 = vmatpush1.bf16.msra.mxu0 0
        %2580 = vmatprep.subr.bf16.mxu0 0
        %2581 = vmatpush1.bf16.msra.mxu0 0
        %2582 = vmatprep.subr.bf16.mxu0 0
        %2583 = vmatpush1.bf16.msra.mxu0 0
        %2584 = vmatprep.subr.bf16.mxu0 0
        %2585 = vmatpush1.bf16.msra.mxu0 0
        %2586 = vmatprep.subr.bf16.mxu0 0
        %2587 = vmatpush1.bf16.msra.mxu0 0
        %2588 = vmatprep.subr.bf16.mxu0 0
        %2589 = vmatpush1.bf16.msra.mxu0 0
        %2590 = vmatprep.subr.bf16.mxu0 0
        %2591 = vmatpush1.bf16.msra.mxu0 0
        %2592 = vmatprep.subr.bf16.mxu0 0
        %2593 = vmatpush1.bf16.msra.mxu0 0
        %2594 = vmatprep.subr.bf16.mxu0 0
        %2595 = vmatpush1.bf16.msra.mxu0 0
        %2596 = vmatprep.subr.bf16.mxu0 0
        %2597 = vmatpush1.bf16.msra.mxu0 0
        %2598 = vmatprep.subr.bf16.mxu0 0
        %2599 = vmatpush1.bf16.msra.mxu0 0
        %2600 = vmatprep.subr.bf16.mxu0 0
        %2601 = vmatpush1.bf16.msra.mxu0 0
        %2602 = vmatprep.subr.bf16.mxu0 0
        %2603 = vmatpush1.bf16.msra.mxu0 0
        %2604 = vmatprep.mubr.bf16.mxu0 0
        %2605 = vmatmul.mubr.bf16.gmra.mrb[0].mxu0 %v2567
        %v2606 = vpop.f32.mrb[0].mxu0
        %v2607 = vadd.f32 0.0, %v2606
        %v2608 = vpop.f32.mrb[0].mxu0
        %v2609 = vpop.f32.mrb[0].mxu0
        %v2610 = vpop.f32.mrb[0].mxu0
        %2611 = vdwg.mxu0
        %v2613 = vsel %vm1133, %v2334, 0
        %v2616 = vsel %vm1217, %v1886, 0
        %2618 = vmatprep.subr.bf16.mxu0 0
        %2619 = vmatpush1.bf16.msra.mxu0 %v2616
        %2620 = vmatprep.subr.bf16.mxu0 0
        %2621 = vmatpush1.bf16.msra.mxu0 0
        %2622 = vmatprep.subr.bf16.mxu0 0
        %2623 = vmatpush1.bf16.msra.mxu0 0
        %2624 = vmatprep.subr.bf16.mxu0 0
        %2625 = vmatpush1.bf16.msra.mxu0 0
        %2626 = vmatprep.subr.bf16.mxu0 0
        %2627 = vmatpush1.bf16.msra.mxu0 0
        %2628 = vmatprep.subr.bf16.mxu0 0
        %2629 = vmatpush1.bf16.msra.mxu0 0
        %2630 = vmatprep.subr.bf16.mxu0 0
        %2631 = vmatpush1.bf16.msra.mxu0 0
        %2632 = vmatprep.subr.bf16.mxu0 0
        %2633 = vmatpush1.bf16.msra.mxu0 0
        %2634 = vmatprep.subr.bf16.mxu0 0
        %2635 = vmatpush1.bf16.msra.mxu0 0
        %2636 = vmatprep.subr.bf16.mxu0 0
        %2637 = vmatpush1.bf16.msra.mxu0 0
        %2638 = vmatprep.subr.bf16.mxu0 0
        %2639 = vmatpush1.bf16.msra.mxu0 0
        %2640 = vmatprep.subr.bf16.mxu0 0
        %2641 = vmatpush1.bf16.msra.mxu0 0
        %2642 = vmatprep.subr.bf16.mxu0 0
        %2643 = vmatpush1.bf16.msra.mxu0 0
        %2644 = vmatprep.subr.bf16.mxu0 0
        %2645 = vmatpush1.bf16.msra.mxu0 0
        %2646 = vmatprep.subr.bf16.mxu0 0
        %2647 = vmatpush1.bf16.msra.mxu0 0
        %2648 = vmatprep.subr.bf16.mxu0 0
        %2649 = vmatpush1.bf16.msra.mxu0 0
        %2650 = vmatprep.mubr.bf16.mxu0 0
        %2651 = vmatmul.mubr.bf16.gmra.mrb[0].mxu0 %v2613
        %v2652 = vpop.f32.mrb[0].mxu0
        %v2653 = vadd.f32 0.0, %v2652
        %v2654 = vpop.f32.mrb[0].mxu0
        %v2655 = vpop.f32.mrb[0].mxu0
        %v2656 = vpop.f32.mrb[0].mxu0
        %2657 = vdwg.mxu0
        %v2659 = vsel %vm1133, %v2335, 0
        %v2662 = vsel %vm1217, %v1887, 0
        %2664 = vmatprep.subr.bf16.mxu0 0
        %2665 = vmatpush1.bf16.msra.mxu0 %v2662
        %2666 = vmatprep.subr.bf16.mxu0 0
        %2667 = vmatpush1.bf16.msra.mxu0 0
        %2668 = vmatprep.subr.bf16.mxu0 0
        %2669 = vmatpush1.bf16.msra.mxu0 0
        %2670 = vmatprep.subr.bf16.mxu0 0
        %2671 = vmatpush1.bf16.msra.mxu0 0
        %2672 = vmatprep.subr.bf16.mxu0 0
        %2673 = vmatpush1.bf16.msra.mxu0 0
        %2674 = vmatprep.subr.bf16.mxu0 0
        %2675 = vmatpush1.bf16.msra.mxu0 0
        %2676 = vmatprep.subr.bf16.mxu0 0
        %2677 = vmatpush1.bf16.msra.mxu0 0
        %2678 = vmatprep.subr.bf16.mxu0 0
        %2679 = vmatpush1.bf16.msra.mxu0 0
        %2680 = vmatprep.subr.bf16.mxu0 0
        %2681 = vmatpush1.bf16.msra.mxu0 0
        %2682 = vmatprep.subr.bf16.mxu0 0
        %2683 = vmatpush1.bf16.msra.mxu0 0
        %2684 = vmatprep.subr.bf16.mxu0 0
        %2685 = vmatpush1.bf16.msra.mxu0 0
        %2686 = vmatprep.subr.bf16.mxu0 0
        %2687 = vmatpush1.bf16.msra.mxu0 0
        %2688 = vmatprep.subr.bf16.mxu0 0
        %2689 = vmatpush1.bf16.msra.mxu0 0
        %2690 = vmatprep.subr.bf16.mxu0 0
        %2691 = vmatpush1.bf16.msra.mxu0 0
        %2692 = vmatprep.subr.bf16.mxu0 0
        %2693 = vmatpush1.bf16.msra.mxu0 0
        %2694 = vmatprep.subr.bf16.mxu0 0
        %2695 = vmatpush1.bf16.msra.mxu0 0
        %2696 = vmatprep.mubr.bf16.mxu0 0
        %2697 = vmatmul.mubr.bf16.gmra.mrb[0].mxu0 %v2659
        %v2698 = vpop.f32.mrb[0].mxu0
        %v2699 = vadd.f32 0.0, %v2698
        %v2700 = vpop.f32.mrb[0].mxu0
        %v2701 = vpop.f32.mrb[0].mxu0
        %v2702 = vpop.f32.mrb[0].mxu0
        %2703 = vdwg.mxu0
        %v2704 = vmax.f32 %v1856, %v2258
        %v2705 = vmax.f32 %v1857, %v2261
        %v2706 = vmax.f32 %v1858, %v2264
        %v2707 = vmax.f32 %v1859, %v2267
        %v2708 = vmax.f32 %v1860, %v2270
        %v2709 = vmax.f32 %v1861, %v2273
        %v2710 = vmax.f32 %v1862, %v2276
        %v2711 = vmax.f32 %v1863, %v2279
        %v2712 = vsub.f32 %v1856, %v2704
        %v2713 = vsub.f32 %v1857, %v2705
        %v2714 = vsub.f32 %v1858, %v2706
        %v2715 = vsub.f32 %v1859, %v2707
        %v2716 = vsub.f32 %v1860, %v2708
        %v2717 = vsub.f32 %v1861, %v2709
        %v2718 = vsub.f32 %v1862, %v2710
        %v2719 = vsub.f32 %v1863, %v2711
        %v2720 = vmul.f32 %v2712, 1.442695
        %v2721 = vpow.pop %v2720
        %v2722 = vmul.f32 %v2713, 1.442695
        %v2723 = vpow.pop %v2722
        %v2724 = vmul.f32 %v2714, 1.442695
        %v2725 = vpow.pop %v2724
        %v2726 = vmul.f32 %v2715, 1.442695
        %v2727 = vpow.pop %v2726
        %v2728 = vmul.f32 %v2716, 1.442695
        %v2729 = vpow.pop %v2728
        %v2730 = vmul.f32 %v2717, 1.442695
        %v2731 = vpow.pop %v2730
        %v2732 = vmul.f32 %v2718, 1.442695
        %v2733 = vpow.pop %v2732
        %v2734 = vmul.f32 %v2719, 1.442695
        %v2735 = vpow.pop %v2734
        %v2736 = vsub.f32 %v2258, %v2704
        %v2737 = vsub.f32 %v2261, %v2705
        %v2738 = vsub.f32 %v2264, %v2706
        %v2739 = vsub.f32 %v2267, %v2707
        %v2740 = vsub.f32 %v2270, %v2708
        %v2741 = vsub.f32 %v2273, %v2709
        %v2742 = vsub.f32 %v2276, %v2710
        %v2743 = vsub.f32 %v2279, %v2711
        %v2744 = vmul.f32 %v2736, 1.442695
        %v2745 = vpow.pop %v2744
        %v2746 = vmul.f32 %v2737, 1.442695
        %v2747 = vpow.pop %v2746
        %v2748 = vmul.f32 %v2738, 1.442695
        %v2749 = vpow.pop %v2748
        %v2750 = vmul.f32 %v2739, 1.442695
        %v2751 = vpow.pop %v2750
        %v2752 = vmul.f32 %v2740, 1.442695
        %v2753 = vpow.pop %v2752
        %v2754 = vmul.f32 %v2741, 1.442695
        %v2755 = vpow.pop %v2754
        %v2756 = vmul.f32 %v2742, 1.442695
        %v2757 = vpow.pop %v2756
        %v2758 = vmul.f32 %v2743, 1.442695
        %v2759 = vpow.pop %v2758
        %2768 = vrot.lane.b32.xlu0 %v2721, 1
        %v2769 = vpop.permute.xlu0 %2768
        %2770 = vrot.lane.b32.xlu0 %v2723, 1
        %v2771 = vpop.permute.xlu0 %2770
        %2772 = vrot.lane.b32.xlu0 %v2725, 1
        %v2773 = vpop.permute.xlu0 %2772
        %2774 = vrot.lane.b32.xlu0 %v2727, 1
        %v2775 = vpop.permute.xlu0 %2774
        %2776 = vrot.lane.b32.xlu0 %v2729, 1
        %v2777 = vpop.permute.xlu0 %2776
        %2778 = vrot.lane.b32.xlu0 %v2731, 1
        %v2779 = vpop.permute.xlu0 %2778
        %2780 = vrot.lane.b32.xlu0 %v2733, 1
        %v2781 = vpop.permute.xlu0 %2780
        %2782 = vrot.lane.b32.xlu0 %v2735, 1
        %v2783 = vpop.permute.xlu0 %2782
        %v2792 = vmul.f32 %v1856, %v2769
        %v2793 = vmul.f32 %v1857, %v2771
        %v2794 = vmul.f32 %v1858, %v2773
        %v2795 = vmul.f32 %v1859, %v2775
        %v2796 = vmul.f32 %v1860, %v2777
        %v2797 = vmul.f32 %v1861, %v2779
        %v2798 = vmul.f32 %v1862, %v2781
        %v2799 = vmul.f32 %v1863, %v2783
        %v2800 = vmul.f32 %v2306, %v2745
        %v2801 = vmul.f32 %v2309, %v2747
        %v2802 = vmul.f32 %v2312, %v2749
        %v2803 = vmul.f32 %v2315, %v2751
        %v2804 = vmul.f32 %v2318, %v2753
        %v2805 = vmul.f32 %v2321, %v2755
        %v2806 = vmul.f32 %v2324, %v2757
        %v2807 = vmul.f32 %v2327, %v2759
        %2816 = vrot.lane.b32.xlu0 %v2800, 1
        %v2817 = vpop.permute.xlu0 %2816
        %2818 = vrot.lane.b32.xlu0 %v2801, 1
        %v2819 = vpop.permute.xlu0 %2818
        %2820 = vrot.lane.b32.xlu0 %v2802, 1
        %v2821 = vpop.permute.xlu0 %2820
        %2822 = vrot.lane.b32.xlu0 %v2803, 1
        %v2823 = vpop.permute.xlu0 %2822
        %2824 = vrot.lane.b32.xlu0 %v2804, 1
        %v2825 = vpop.permute.xlu0 %2824
        %2826 = vrot.lane.b32.xlu0 %v2805, 1
        %v2827 = vpop.permute.xlu0 %2826
        %2828 = vrot.lane.b32.xlu0 %v2806, 1
        %v2829 = vpop.permute.xlu0 %2828
        %2830 = vrot.lane.b32.xlu0 %v2807, 1
        %v2831 = vpop.permute.xlu0 %2830
        %v2840 = vadd.f32 %v2792, %v2817
        %v2841 = vadd.f32 %v2793, %v2819
        %v2842 = vadd.f32 %v2794, %v2821
        %v2843 = vadd.f32 %v2795, %v2823
        %v2844 = vadd.f32 %v2796, %v2825
        %v2845 = vadd.f32 %v2797, %v2827
        %v2846 = vadd.f32 %v2798, %v2829
        %v2847 = vadd.f32 %v2799, %v2831
        %s2848 = sld [smem:[#allocation2]]
        %v2849 = vrcp.pop %v2840
        %v2850 = vrcp.pop %v2841
        %v2851 = vrcp.pop %v2842
        %v2852 = vrcp.pop %v2843
        %v2853 = vrcp.pop %v2844
        %v2854 = vrcp.pop %v2845
        %v2855 = vrcp.pop %v2846
        %v2856 = vrcp.pop %v2847
        %v2857 = vstv %s2848
        %v2858 = vmul.f32 %v2857, %v2849
        %v2859 = vmul.f32 %v2857, %v2850
        %v2860 = vmul.f32 %v2857, %v2851
        %v2861 = vmul.f32 %v2857, %v2852
        %v2862 = vmul.f32 %v2857, %v2853
        %v2863 = vmul.f32 %v2857, %v2854
        %v2864 = vmul.f32 %v2857, %v2855
        %v2865 = vmul.f32 %v2857, %v2856
        %v2866 = vmul.f32 %v2858, %v2769
        %v2867 = vmul.f32 %v2859, %v2771
        %v2868 = vmul.f32 %v2860, %v2773
        %v2869 = vmul.f32 %v2861, %v2775
        %v2870 = vmul.f32 %v2862, %v2777
        %v2871 = vmul.f32 %v2863, %v2779
        %v2872 = vmul.f32 %v2864, %v2781
        %v2873 = vmul.f32 %v2865, %v2783
        %2875 = vset.pattern.permute.xlu0 1
        %2876 = vperm.xlu0 %2875, %v2866
        %v2877 = vpop.permute.xlu0 %2876
        %2880 = vset.pattern.permute.xlu0 1
        %2881 = vperm.xlu0 %2880, %v2867
        %v2882 = vpop.permute.xlu0 %2881
        %2885 = vset.pattern.permute.xlu0 1
        %2886 = vperm.xlu0 %2885, %v2868
        %v2887 = vpop.permute.xlu0 %2886
        %2890 = vset.pattern.permute.xlu0 1
        %2891 = vperm.xlu0 %2890, %v2869
        %v2892 = vpop.permute.xlu0 %2891
        %2895 = vset.pattern.permute.xlu0 1
        %2896 = vperm.xlu0 %2895, %v2870
        %v2897 = vpop.permute.xlu0 %2896
        %2900 = vset.pattern.permute.xlu0 1
        %2901 = vperm.xlu0 %2900, %v2871
        %v2902 = vpop.permute.xlu0 %2901
        %2905 = vset.pattern.permute.xlu0 1
        %2906 = vperm.xlu0 %2905, %v2872
        %v2907 = vpop.permute.xlu0 %2906
        %2910 = vset.pattern.permute.xlu0 1
        %2911 = vperm.xlu0 %2910, %v2873
        %v2912 = vpop.permute.xlu0 %2911
        %v2914 = vmul.f32 %v2877, %v1711
        %v2915 = vmul.f32 %v2882, %v1712
        %v2916 = vmul.f32 %v2887, %v1713
        %v2917 = vmul.f32 %v2892, %v1714
        %v2918 = vmul.f32 %v2897, %v1715
        %v2919 = vmul.f32 %v2902, %v1716
        %v2920 = vmul.f32 %v2907, %v1717
        %v2921 = vmul.f32 %v2912, %v1718
        %2930 = vrot.lane.b32.xlu0 %v2745, 1
        %v2931 = vpop.permute.xlu0 %2930
        %2932 = vrot.lane.b32.xlu0 %v2747, 1
        %v2933 = vpop.permute.xlu0 %2932
        %2934 = vrot.lane.b32.xlu0 %v2749, 1
        %v2935 = vpop.permute.xlu0 %2934
        %2936 = vrot.lane.b32.xlu0 %v2751, 1
        %v2937 = vpop.permute.xlu0 %2936
        %2938 = vrot.lane.b32.xlu0 %v2753, 1
        %v2939 = vpop.permute.xlu0 %2938
        %2940 = vrot.lane.b32.xlu0 %v2755, 1
        %v2941 = vpop.permute.xlu0 %2940
        %2942 = vrot.lane.b32.xlu0 %v2757, 1
        %v2943 = vpop.permute.xlu0 %2942
        %2944 = vrot.lane.b32.xlu0 %v2759, 1
        %v2945 = vpop.permute.xlu0 %2944
        %v2954 = vmul.f32 %v2858, %v2931
        %v2955 = vmul.f32 %v2859, %v2933
        %v2956 = vmul.f32 %v2860, %v2935
        %v2957 = vmul.f32 %v2861, %v2937
        %v2958 = vmul.f32 %v2862, %v2939
        %v2959 = vmul.f32 %v2863, %v2941
        %v2960 = vmul.f32 %v2864, %v2943
        %v2961 = vmul.f32 %v2865, %v2945
        %2963 = vset.pattern.permute.xlu0 1
        %2964 = vperm.xlu0 %2963, %v2954
        %v2965 = vpop.permute.xlu0 %2964
        %2968 = vset.pattern.permute.xlu0 1
        %2969 = vperm.xlu0 %2968, %v2955
        %v2970 = vpop.permute.xlu0 %2969
        %2973 = vset.pattern.permute.xlu0 1
        %2974 = vperm.xlu0 %2973, %v2956
        %v2975 = vpop.permute.xlu0 %2974
        %2978 = vset.pattern.permute.xlu0 1
        %2979 = vperm.xlu0 %2978, %v2957
        %v2980 = vpop.permute.xlu0 %2979
        %2983 = vset.pattern.permute.xlu0 1
        %2984 = vperm.xlu0 %2983, %v2958
        %v2985 = vpop.permute.xlu0 %2984
        %2988 = vset.pattern.permute.xlu0 1
        %2989 = vperm.xlu0 %2988, %v2959
        %v2990 = vpop.permute.xlu0 %2989
        %2993 = vset.pattern.permute.xlu0 1
        %2994 = vperm.xlu0 %2993, %v2960
        %v2995 = vpop.permute.xlu0 %2994
        %2998 = vset.pattern.permute.xlu0 1
        %2999 = vperm.xlu0 %2998, %v2961
        %v3000 = vpop.permute.xlu0 %2999
        %v3002 = vmul.f32 %v2965, %v2377
        %v3003 = vmul.f32 %v2970, %v2423
        %v3004 = vmul.f32 %v2975, %v2469
        %v3005 = vmul.f32 %v2980, %v2515
        %v3006 = vmul.f32 %v2985, %v2561
        %v3007 = vmul.f32 %v2990, %v2607
        %v3008 = vmul.f32 %v2995, %v2653
        %v3009 = vmul.f32 %v3000, %v2699
        %v3010 = vadd.f32 %v2914, %v3002
        %v3011 = vadd.f32 %v2915, %v3003
        %v3012 = vadd.f32 %v2916, %v3004
        %v3013 = vadd.f32 %v2917, %v3005
        %v3014 = vadd.f32 %v2918, %v3006
        %v3015 = vadd.f32 %v2919, %v3007
        %v3016 = vadd.f32 %v2920, %v3008
        %v3017 = vadd.f32 %v2921, %v3009
        %vm3018 = vcmask 130048
        %3019 = vst.msk [vmem:[%s447] sm:$0xff] %vm3018, %v3010
        %3020 = vst.msk [vmem:[%s447 + $0x8] sm:$0xff] %vm3018, %v3011
        %3021 = vst.msk [vmem:[%s447 + $0x10] sm:$0xff] %vm3018, %v3012
        %3022 = vst.msk [vmem:[%s447 + $0x18] sm:$0xff] %vm3018, %v3013
        %3023 = vst.msk [vmem:[%s447 + $0x20] sm:$0xff] %vm3018, %v3014
        %3024 = vst.msk [vmem:[%s447 + $0x28] sm:$0xff] %vm3018, %v3015
        %3025 = vst.msk [vmem:[%s447 + $0x30] sm:$0xff] %vm3018, %v3016
        %3026 = vst.msk [vmem:[%s447 + $0x38] sm:$0xff] %vm3018, %v3017
        %s3027 = sand.u32 %s209, 1
        %s3028 = scalar_lea.sflag [#allocation5], %s3027
        %s3029 = sand.u32 %s209, 1
        %s3030 = smul.addr %s3029, 64
        %s3031 = scalar_lea.vmem [#allocation12], %s3030
        // Predicated region
        $region65: #{criss_cross_attention.3} parent=43 // pred_check
          %p3032 = pneg %p219
        $region66: #{criss_cross_attention.3} parent=43 // pred_check_branch
          %3034 = sbr.rel (%p3032) target = $region68
        $region67: #{criss_cross_attention.3} parent=43 // pred_region
          %s3036 = ssub.s32 1024, 1024
          %3037 = vsyncadd %s3028, %s3036
          %s3038 = smul.addr %s34, 8
          %s3039 = sadd.s32 %s35, %s3038
          %s3040 = smul.addr %s3039, 128
          %s3041 = scalar_lea.hbm %s6, %s3040
          %s3042 = sshll.u32 %s3031, 4
          %s3043 = int_to_ptr.vmem [resolvable:$true] %s3042
          %3048 = dma.vmem_to_hbm [thread:$0]  %s3043, 1024, %s3041, %s3028, 128, 128, 8
        $region68: #{criss_cross_attention.3} parent=43 // pred_fallthru
          _
      $region44: #{criss_cross_attention.3} parent=5 // pred_fallthru
        _
      %p3049 = scmp.le.s32.totalorder 2, %s25
      // Predicated region
      $region69: #{criss_cross_attention.3} parent=5 // pred_check
        %p3050 = pneg %p3049
      $region70: #{criss_cross_attention.3} parent=5 // pred_check_branch
        %3052 = sbr.rel (%p3050) target = $region72
      $region71: #{criss_cross_attention.3} parent=5 // pred_region
        %s3053 = ssub.s32 %s25, 2
        // Predicated region
        $region73: #{criss_cross_attention.3} parent=71 // pred_check
          %p3054 = pneg %p225
        $region74: #{criss_cross_attention.3} parent=71 // pred_check_branch
          %3056 = sbr.rel (%p3054) target = $region76
        $region75: #{criss_cross_attention.3} parent=71 // pred_region
          %s3057 = sand.u32 %s210, 1
          %s3058 = scalar_lea.sflag [#allocation5], %s3057
          %s3059 = sand.u32 %s210, 1
          %s3060 = smul.addr %s3059, 64
          %s3061 = scalar_lea.vmem [#allocation12], %s3060
          %3062 = dma.done %s3058, 1024
        $region76: #{criss_cross_attention.3} parent=71 // pred_fallthru
          _
      $region72: #{criss_cross_attention.3} parent=5 // pred_fallthru
        _
    $region6: #{criss_cross_attention.3} parent=1 // loop_footer
      %s29 = sadd.s32 1, %s25
    $region7: #{criss_cross_attention.3} parent=1 // loop_footer_branch
      %24 = sbr.rel target = $region3
    $region8: #{criss_cross_attention.3} parent=1 // loop_exit
      _
    %3063 = vsyncpa [#allocation4], 1
    %s3064 = scalar_lea.sflag [#allocation4], 1
    %3065 = vsyncpa %s3064, 1
    %3066 = vsyncpa [#allocation7], 1
    %s3067 = scalar_lea.sflag [#allocation7], 1
    %3068 = vsyncpa %s3067, 1
    %3069 = vsyncpa [#allocation10], 1
    %s3070 = scalar_lea.sflag [#allocation10], 1
    %3071 = vsyncpa %s3070, 1
    %3072 = vsyncpa [#allocation5], 1
    %s3073 = scalar_lea.sflag [#allocation5], 1
    %3074 = vsyncpa %s3073, 1

</llo_original>
